<compile_context>
chip_gen: v5e
topology: v5e:2x2
jax: 0.10.0
libtpu: 0.0.40
codegen_flags: <defaults>
</compile_context>

<pallas_src>
import functools

import jax
import jax.numpy as jnp
import numpy as np
from jax.experimental import pallas as pl
from jax.experimental.pallas import tpu as pltpu


# ----------------------------------------------------------------------------
# Pallas kernel: the WHOLE TemporalConvNet (all levels fused).
# ----------------------------------------------------------------------------
def _tcn_kernel(*refs, n_shift, layer_cfg, K, NL):
    """refs = [x, S_0..S_{n_shift-1},
               per layer: w1, b1, g1, be1, w2, b2, g2, be2 [, wd, bd],
               out]

      x      : (C0, N*L)      channels-major, flat batch*time lanes
      S_i    : (N*L, N*L)     causal-shift permutation matrices
      w*     : (K, Cout, Cin) conv taps ; b*/g*/be* : (Cout, 1)
      wd     : (Cout, Cin), bd : (Cout, 1)   optional 1x1 downsample
    layer_cfg: static tuple of (has_downsample, tap_shift_indices) per layer.
    """
    x_ref = refs[0]
    s_refs = refs[1:1 + n_shift]
    o_ref = refs[-1]
    p_refs = refs[1 + n_shift:-1]

    inv_nl = 1.0 / NL
    eps = 1e-5

    def batchnorm(a, g, be):
        # training-mode stats over (batch, time) == the flat lane axis
        m = jnp.sum(a, axis=-1, keepdims=True) * inv_nl
        c = a - m
        v = jnp.sum(c * c, axis=-1, keepdims=True) * inv_nl
        return c * jax.lax.rsqrt(v + eps) * g + be

    def causal_conv_relu(a, w_ref, b, tap_idx):
        # tap K-1 is the "current time" tap (shift 0): plain matmul
        acc = jnp.dot(w_ref[K - 1], a, preferred_element_type=jnp.float32)
        # earlier taps: shift via the banded permutation matmul, then matmul
        for k in range(K - 1):
            shifted = jnp.dot(a, s_refs[tap_idx[k]][...],
                              preferred_element_type=jnp.float32)
            acc = acc + jnp.dot(w_ref[k], shifted,
                                preferred_element_type=jnp.float32)
        return jnp.maximum(acc + b, 0.0)

    x = x_ref[...]                                        # (C0, N*L) f32
    i = 0
    for has_ds, tap_idx in layer_cfg:                     # static unroll
        w1_ref = p_refs[i]
        b1 = p_refs[i + 1][...]
        g1 = p_refs[i + 2][...]
        be1 = p_refs[i + 3][...]
        w2_ref = p_refs[i + 4]
        b2 = p_refs[i + 5][...]
        g2 = p_refs[i + 6][...]
        be2 = p_refs[i + 7][...]
        i += 8

        h = batchnorm(causal_conv_relu(x, w1_ref, b1, tap_idx), g1, be1)
        h = batchnorm(causal_conv_relu(h, w2_ref, b2, tap_idx), g2, be2)

        if has_ds:
            wd = p_refs[i][...]
            bd = p_refs[i + 1][...]
            i += 2
            res = jnp.dot(wd, x, preferred_element_type=jnp.float32) + bd
        else:
            res = x
        x = jnp.maximum(h + res, 0.0)

    o_ref[...] = x                                        # (C_last, N*L)


# ----------------------------------------------------------------------------
# Wrapper.
# ----------------------------------------------------------------------------
def _shift_matrix(NL, L, s):
    """S such that (x @ S)[:, j] == x[:, j - s] when (j % L) >= s else 0.

    Keeps the causal zero fill and never mixes time across the per-batch
    segments of the flattened (N*L) lane axis.
    """
    j = np.arange(NL)
    valid = (j % L) >= s
    S = np.zeros((NL, NL), np.float32)
    S[(j - s)[valid], j[valid]] = 1.0
    return jnp.asarray(S)


def temporal_conv_net(x, params, kernel_size=2):
    """x: (N, C_in, L) float32 (PyTorch NCL layout)."""
    N, c0, L = x.shape
    K = kernel_size
    NL = N * L

    # channels-major, flat batch*time lanes (one transpose for the whole net)
    x2d = jnp.transpose(x.astype(jnp.float32), (1, 0, 2)).reshape(c0, NL)

    shifts = []                 # distinct causal shifts, shared across layers
    layer_cfg = []
    args = []
    for i, p in enumerate(params):
        d = 2 ** i
        cout = p['w1'].shape[0]
        tap_idx = []
        for k in range(K - 1):
            s = (K - 1 - k) * d
            if s not in shifts:
                shifts.append(s)
            tap_idx.append(shifts.index(s))
        has_ds = 'wd' in p
        layer_cfg.append((has_ds, tuple(tap_idx)))

        args += [
            jnp.transpose(p['w1'], (2, 0, 1)),            # (K, Cout, Cin)
            p['b1'].reshape(cout, 1),
            p['g1'].reshape(cout, 1), p['be1'].reshape(cout, 1),
            jnp.transpose(p['w2'], (2, 0, 1)),            # (K, Cout, Cout)
            p['b2'].reshape(cout, 1),
            p['g2'].reshape(cout, 1), p['be2'].reshape(cout, 1),
        ]
        if has_ds:
            args += [p['wd'], p['bd'].reshape(cout, 1)]

    smats = [_shift_matrix(NL, L, s) for s in shifts]
    c_last = params[-1]['w1'].shape[0]

    kernel = functools.partial(
        _tcn_kernel, n_shift=len(smats), layer_cfg=tuple(layer_cfg), K=K, NL=NL)

    # Small working set -> whole-array VMEM blocks, single program, no grid.
    # TODO(synk): for production shapes (C~512, L~4K, N~8) tile the time axis
    # with a grid + (K-1)*d halo in the index_map, mark it "parallel" for
    # v7x's second TensorCore (two-pass BN stats), and re-derive tile sizes
    # for v7x's 64 MiB VMEM.
    out2d = pl.pallas_call(
        kernel,
        out_shape=jax.ShapeDtypeStruct((c_last, NL), jnp.float32),
        compiler_params=pltpu.CompilerParams(vmem_limit_bytes=32 * 1024 * 1024),
    )(x2d, *smats, *args)

    return jnp.transpose(out2d.reshape(c_last, N, L), (1, 0, 2))   # (N, C, L)


# ----------------------------------------------------------------------------
# Deterministic parameter init (shapes as in the PyTorch module __init__).
# ----------------------------------------------------------------------------
def init_params(key, num_inputs, num_channels, K):
    params = []
    cin = num_inputs
    for cout in num_channels:
        key, k0, k1, k2, k3, k4, k5 = jax.random.split(key, 7)
        a1 = 1.0 / np.sqrt(cin * K)
        a2 = 1.0 / np.sqrt(cout * K)
        p = dict(
            w1=jax.random.uniform(k0, (cout, cin, K), jnp.float32, -a1, a1),
            b1=jax.random.uniform(k1, (cout,), jnp.float32, -a1, a1),
            w2=jax.random.uniform(k2, (cout, cout, K), jnp.float32, -a2, a2),
            b2=jax.random.uniform(k3, (cout,), jnp.float32, -a2, a2),
            g1=jnp.ones((cout,), jnp.float32), be1=jnp.zeros((cout,), jnp.float32),
            g2=jnp.ones((cout,), jnp.float32), be2=jnp.zeros((cout,), jnp.float32),
        )
        if cin != cout:   # downsample 1x1 conv
            ad = 1.0 / np.sqrt(cin)
            p['wd'] = 0.01 * jax.random.normal(k4, (cout, cin), jnp.float32)
            p['bd'] = jax.random.uniform(k5, (cout,), jnp.float32, -ad, ad)
        params.append(p)
        cin = cout
    return params


# ----------------------------------------------------------------------------
# Pure-JAX reference (self-check of the Pallas kernel).
# ----------------------------------------------------------------------------
def _ref_bn_train(x, g, b, eps=1e-5):
    m = jnp.mean(x, axis=(0, 2), keepdims=True)
    c = x - m
    v = jnp.mean(c * c, axis=(0, 2), keepdims=True)
    return c * jax.lax.rsqrt(v + eps) * g[None, :, None] + b[None, :, None]


def _ref_causal_conv(x, w, b, d):
    K = w.shape[-1]
    P = (K - 1) * d
    y = jax.lax.conv_general_dilated(
        x, w, window_strides=(1,), padding=[(P, 0)], rhs_dilation=(d,),
        dimension_numbers=('NCH', 'OIH', 'NCH'),
        precision=jax.lax.Precision.HIGHEST)
    return y + b[None, :, None]


def _ref_block(x, p, d):
    h = jax.nn.relu(_ref_causal_conv(x, p['w1'], p['b1'], d))
    h = _ref_bn_train(h, p['g1'], p['be1'])
    h = jax.nn.relu(_ref_causal_conv(h, p['w2'], p['b2'], d))
    h = _ref_bn_train(h, p['g2'], p['be2'])
    if 'wd' in p:
        res = jnp.einsum('oc,ncl->nol', p['wd'], x) + p['bd'][None, :, None]
    else:
        res = x
    return jax.nn.relu(h + res)


def _ref_net(x, params):
    for i, p in enumerate(params):
        x = _ref_block(x, p, 2 ** i)
    return x


# ----------------------------------------------------------------------------
if __name__ == "__main__":
    key = jax.random.PRNGKey(0)
    N, C_IN, L = 2, 4, 128
    NUM_CHANNELS = (16, 16, 32)   # 3 levels: dilations 1, 2, 4
    K = 2

    kx, kp = jax.random.split(key)
    x = jax.random.normal(kx, (N, C_IN, L), jnp.float32)
    params = init_params(kp, C_IN, NUM_CHANNELS, K)

    run = jax.jit(functools.partial(temporal_conv_net, kernel_size=K))
    out = jax.block_until_ready(run(x, params))

    assert out.shape == (N, NUM_CHANNELS[-1], L)
    ref = _ref_net(x, params)
    np.testing.assert_allclose(np.asarray(out), np.asarray(ref),
                               atol=2e-3, rtol=2e-3)
    print("KERNEL_OK")
</pallas_src>

<mosaic_0001>
module attributes {stable_mosaic.version = 11 : i64} {
  func.func @_tcn_kernel(%arg0: memref<4x256xf32, #tpu.memory_space<vmem>>, %arg1: memref<256x256xf32, #tpu.memory_space<vmem>>, %arg2: memref<256x256xf32, #tpu.memory_space<vmem>>, %arg3: memref<256x256xf32, #tpu.memory_space<vmem>>, %arg4: memref<2x16x4xf32, #tpu.memory_space<vmem>>, %arg5: memref<16x1xf32, #tpu.memory_space<vmem>>, %arg6: memref<16x1xf32, #tpu.memory_space<vmem>>, %arg7: memref<16x1xf32, #tpu.memory_space<vmem>>, %arg8: memref<2x16x16xf32, #tpu.memory_space<vmem>>, %arg9: memref<16x1xf32, #tpu.memory_space<vmem>>, %arg10: memref<16x1xf32, #tpu.memory_space<vmem>>, %arg11: memref<16x1xf32, #tpu.memory_space<vmem>>, %arg12: memref<16x4xf32, #tpu.memory_space<vmem>>, %arg13: memref<16x1xf32, #tpu.memory_space<vmem>>, %arg14: memref<2x16x16xf32, #tpu.memory_space<vmem>>, %arg15: memref<16x1xf32, #tpu.memory_space<vmem>>, %arg16: memref<16x1xf32, #tpu.memory_space<vmem>>, %arg17: memref<16x1xf32, #tpu.memory_space<vmem>>, %arg18: memref<2x16x16xf32, #tpu.memory_space<vmem>>, %arg19: memref<16x1xf32, #tpu.memory_space<vmem>>, %arg20: memref<16x1xf32, #tpu.memory_space<vmem>>, %arg21: memref<16x1xf32, #tpu.memory_space<vmem>>, %arg22: memref<2x32x16xf32, #tpu.memory_space<vmem>>, %arg23: memref<32x1xf32, #tpu.memory_space<vmem>>, %arg24: memref<32x1xf32, #tpu.memory_space<vmem>>, %arg25: memref<32x1xf32, #tpu.memory_space<vmem>>, %arg26: memref<2x32x32xf32, #tpu.memory_space<vmem>>, %arg27: memref<32x1xf32, #tpu.memory_space<vmem>>, %arg28: memref<32x1xf32, #tpu.memory_space<vmem>>, %arg29: memref<32x1xf32, #tpu.memory_space<vmem>>, %arg30: memref<32x16xf32, #tpu.memory_space<vmem>>, %arg31: memref<32x1xf32, #tpu.memory_space<vmem>>, %arg32: memref<32x256xf32, #tpu.memory_space<vmem>>) attributes {dimension_semantics = [], scalar_prefetch = 0 : i64, scratch_operands = 0 : i64, tpu.core_type = #tpu.core_type<tc>} {
    %c0 = arith.constant 0 : index
    %c0_0 = arith.constant 0 : index
    %0 = vector.load %arg0[%c0, %c0_0] : memref<4x256xf32, #tpu.memory_space<vmem>>, vector<4x256xf32>
    %c0_1 = arith.constant 0 : index
    %c0_2 = arith.constant 0 : index
    %1 = vector.load %arg5[%c0_1, %c0_2] : memref<16x1xf32, #tpu.memory_space<vmem>>, vector<16x1xf32>
    %c0_3 = arith.constant 0 : index
    %c0_4 = arith.constant 0 : index
    %2 = vector.load %arg6[%c0_3, %c0_4] : memref<16x1xf32, #tpu.memory_space<vmem>>, vector<16x1xf32>
    %c0_5 = arith.constant 0 : index
    %c0_6 = arith.constant 0 : index
    %3 = vector.load %arg7[%c0_5, %c0_6] : memref<16x1xf32, #tpu.memory_space<vmem>>, vector<16x1xf32>
    %c0_7 = arith.constant 0 : index
    %c0_8 = arith.constant 0 : index
    %4 = vector.load %arg9[%c0_7, %c0_8] : memref<16x1xf32, #tpu.memory_space<vmem>>, vector<16x1xf32>
    %c0_9 = arith.constant 0 : index
    %c0_10 = arith.constant 0 : index
    %5 = vector.load %arg10[%c0_9, %c0_10] : memref<16x1xf32, #tpu.memory_space<vmem>>, vector<16x1xf32>
    %c0_11 = arith.constant 0 : index
    %c0_12 = arith.constant 0 : index
    %6 = vector.load %arg11[%c0_11, %c0_12] : memref<16x1xf32, #tpu.memory_space<vmem>>, vector<16x1xf32>
    %c1 = arith.constant 1 : index
    %c0_13 = arith.constant 0 : index
    %c0_14 = arith.constant 0 : index
    %7 = vector.load %arg4[%c1, %c0_13, %c0_14] : memref<2x16x4xf32, #tpu.memory_space<vmem>>, vector<1x16x4xf32>
    %8 = vector.shape_cast %7 : vector<1x16x4xf32> to vector<16x4xf32>
    %cst = arith.constant dense<0.000000e+00> : vector<16x256xf32>
    %9 = tpu.matmul %8, %0, %cst {dimension_numbers = #tpu.dot_dimension_numbers<[1], [0], [0], [1], [0, 0, 1, 1], [], []>} : vector<16x4xf32>, vector<4x256xf32>, vector<16x256xf32> -> vector<16x256xf32>
    %c0_15 = arith.constant 0 : index
    %c0_16 = arith.constant 0 : index
    %10 = vector.load %arg1[%c0_15, %c0_16] : memref<256x256xf32, #tpu.memory_space<vmem>>, vector<256x256xf32>
    %cst_17 = arith.constant dense<0.000000e+00> : vector<4x256xf32>
    %11 = tpu.matmul %0, %10, %cst_17 {dimension_numbers = #tpu.dot_dimension_numbers<[1], [0], [0], [1], [0, 0, 1, 1], [], []>} : vector<4x256xf32>, vector<256x256xf32>, vector<4x256xf32> -> vector<4x256xf32>
    %c0_18 = arith.constant 0 : index
    %c0_19 = arith.constant 0 : index
    %c0_20 = arith.constant 0 : index
    %12 = vector.load %arg4[%c0_18, %c0_19, %c0_20] : memref<2x16x4xf32, #tpu.memory_space<vmem>>, vector<1x16x4xf32>
    %13 = vector.shape_cast %12 : vector<1x16x4xf32> to vector<16x4xf32>
    %cst_21 = arith.constant dense<0.000000e+00> : vector<16x256xf32>
    %14 = tpu.matmul %13, %11, %cst_21 {dimension_numbers = #tpu.dot_dimension_numbers<[1], [0], [0], [1], [0, 0, 1, 1], [], []>} : vector<16x4xf32>, vector<4x256xf32>, vector<16x256xf32> -> vector<16x256xf32>
    %15 = arith.addf %9, %14 : vector<16x256xf32>
    %16 = vector.broadcast %1 : vector<16x1xf32> to vector<16x256xf32>
    %17 = arith.addf %15, %16 : vector<16x256xf32>
    %cst_22 = arith.constant 0.000000e+00 : f32
    %18 = vector.broadcast %cst_22 : f32 to vector<16x256xf32>
    %19 = arith.maximumf %17, %18 : vector<16x256xf32>
    %cst_23 = arith.constant dense<0.000000e+00> : vector<16xf32>
    %20 = vector.multi_reduction <add>, %19, %cst_23 [1] : vector<16x256xf32> to vector<16xf32>
    %21 = vector.shape_cast %20 : vector<16xf32> to vector<16x1xf32>
    %cst_24 = arith.constant 3.906250e-03 : f32
    %22 = vector.broadcast %cst_24 : f32 to vector<16x1xf32>
    %23 = arith.mulf %21, %22 : vector<16x1xf32>
    %24 = vector.broadcast %23 : vector<16x1xf32> to vector<16x256xf32>
    %25 = arith.subf %19, %24 : vector<16x256xf32>
    %26 = arith.mulf %25, %25 : vector<16x256xf32>
    %cst_25 = arith.constant dense<0.000000e+00> : vector<16xf32>
    %27 = vector.multi_reduction <add>, %26, %cst_25 [1] : vector<16x256xf32> to vector<16xf32>
    %28 = vector.shape_cast %27 : vector<16xf32> to vector<16x1xf32>
    %cst_26 = arith.constant 3.906250e-03 : f32
    %29 = vector.broadcast %cst_26 : f32 to vector<16x1xf32>
    %30 = arith.mulf %28, %29 : vector<16x1xf32>
    %cst_27 = arith.constant 9.99999974E-6 : f32
    %31 = vector.broadcast %cst_27 : f32 to vector<16x1xf32>
    %32 = arith.addf %30, %31 : vector<16x1xf32>
    %33 = math.rsqrt %32 : vector<16x1xf32>
    %34 = vector.broadcast %33 : vector<16x1xf32> to vector<16x256xf32>
    %35 = arith.mulf %25, %34 : vector<16x256xf32>
    %36 = vector.broadcast %2 : vector<16x1xf32> to vector<16x256xf32>
    %37 = arith.mulf %35, %36 : vector<16x256xf32>
    %38 = vector.broadcast %3 : vector<16x1xf32> to vector<16x256xf32>
    %39 = arith.addf %37, %38 : vector<16x256xf32>
    %c1_28 = arith.constant 1 : index
    %c0_29 = arith.constant 0 : index
    %c0_30 = arith.constant 0 : index
    %40 = vector.load %arg8[%c1_28, %c0_29, %c0_30] : memref<2x16x16xf32, #tpu.memory_space<vmem>>, vector<1x16x16xf32>
    %41 = vector.shape_cast %40 : vector<1x16x16xf32> to vector<16x16xf32>
    %cst_31 = arith.constant dense<0.000000e+00> : vector<16x256xf32>
    %42 = tpu.matmul %41, %39, %cst_31 {dimension_numbers = #tpu.dot_dimension_numbers<[1], [0], [0], [1], [0, 0, 1, 1], [], []>} : vector<16x16xf32>, vector<16x256xf32>, vector<16x256xf32> -> vector<16x256xf32>
    %c0_32 = arith.constant 0 : index
    %c0_33 = arith.constant 0 : index
    %43 = vector.load %arg1[%c0_32, %c0_33] : memref<256x256xf32, #tpu.memory_space<vmem>>, vector<256x256xf32>
    %cst_34 = arith.constant dense<0.000000e+00> : vector<16x256xf32>
    %44 = tpu.matmul %39, %43, %cst_34 {dimension_numbers = #tpu.dot_dimension_numbers<[1], [0], [0], [1], [0, 0, 1, 1], [], []>} : vector<16x256xf32>, vector<256x256xf32>, vector<16x256xf32> -> vector<16x256xf32>
    %c0_35 = arith.constant 0 : index
    %c0_36 = arith.constant 0 : index
    %c0_37 = arith.constant 0 : index
    %45 = vector.load %arg8[%c0_35, %c0_36, %c0_37] : memref<2x16x16xf32, #tpu.memory_space<vmem>>, vector<1x16x16xf32>
    %46 = vector.shape_cast %45 : vector<1x16x16xf32> to vector<16x16xf32>
    %cst_38 = arith.constant dense<0.000000e+00> : vector<16x256xf32>
    %47 = tpu.matmul %46, %44, %cst_38 {dimension_numbers = #tpu.dot_dimension_numbers<[1], [0], [0], [1], [0, 0, 1, 1], [], []>} : vector<16x16xf32>, vector<16x256xf32>, vector<16x256xf32> -> vector<16x256xf32>
    %48 = arith.addf %42, %47 : vector<16x256xf32>
    %49 = vector.broadcast %4 : vector<16x1xf32> to vector<16x256xf32>
    %50 = arith.addf %48, %49 : vector<16x256xf32>
    %cst_39 = arith.constant 0.000000e+00 : f32
    %51 = vector.broadcast %cst_39 : f32 to vector<16x256xf32>
    %52 = arith.maximumf %50, %51 : vector<16x256xf32>
    %cst_40 = arith.constant dense<0.000000e+00> : vector<16xf32>
    %53 = vector.multi_reduction <add>, %52, %cst_40 [1] : vector<16x256xf32> to vector<16xf32>
    %54 = vector.shape_cast %53 : vector<16xf32> to vector<16x1xf32>
    %cst_41 = arith.constant 3.906250e-03 : f32
    %55 = vector.broadcast %cst_41 : f32 to vector<16x1xf32>
    %56 = arith.mulf %54, %55 : vector<16x1xf32>
    %57 = vector.broadcast %56 : vector<16x1xf32> to vector<16x256xf32>
    %58 = arith.subf %52, %57 : vector<16x256xf32>
    %59 = arith.mulf %58, %58 : vector<16x256xf32>
    %cst_42 = arith.constant dense<0.000000e+00> : vector<16xf32>
    %60 = vector.multi_reduction <add>, %59, %cst_42 [1] : vector<16x256xf32> to vector<16xf32>
    %61 = vector.shape_cast %60 : vector<16xf32> to vector<16x1xf32>
    %cst_43 = arith.constant 3.906250e-03 : f32
    %62 = vector.broadcast %cst_43 : f32 to vector<16x1xf32>
    %63 = arith.mulf %61, %62 : vector<16x1xf32>
    %cst_44 = arith.constant 9.99999974E-6 : f32
    %64 = vector.broadcast %cst_44 : f32 to vector<16x1xf32>
    %65 = arith.addf %63, %64 : vector<16x1xf32>
    %66 = math.rsqrt %65 : vector<16x1xf32>
    %67 = vector.broadcast %66 : vector<16x1xf32> to vector<16x256xf32>
    %68 = arith.mulf %58, %67 : vector<16x256xf32>
    %69 = vector.broadcast %5 : vector<16x1xf32> to vector<16x256xf32>
    %70 = arith.mulf %68, %69 : vector<16x256xf32>
    %71 = vector.broadcast %6 : vector<16x1xf32> to vector<16x256xf32>
    %72 = arith.addf %70, %71 : vector<16x256xf32>
    %c0_45 = arith.constant 0 : index
    %c0_46 = arith.constant 0 : index
    %73 = vector.load %arg12[%c0_45, %c0_46] : memref<16x4xf32, #tpu.memory_space<vmem>>, vector<16x4xf32>
    %c0_47 = arith.constant 0 : index
    %c0_48 = arith.constant 0 : index
    %74 = vector.load %arg13[%c0_47, %c0_48] : memref<16x1xf32, #tpu.memory_space<vmem>>, vector<16x1xf32>
    %cst_49 = arith.constant dense<0.000000e+00> : vector<16x256xf32>
    %75 = tpu.matmul %73, %0, %cst_49 {dimension_numbers = #tpu.dot_dimension_numbers<[1], [0], [0], [1], [0, 0, 1, 1], [], []>} : vector<16x4xf32>, vector<4x256xf32>, vector<16x256xf32> -> vector<16x256xf32>
    %76 = vector.broadcast %74 : vector<16x1xf32> to vector<16x256xf32>
    %77 = arith.addf %75, %76 : vector<16x256xf32>
    %78 = arith.addf %72, %77 : vector<16x256xf32>
    %cst_50 = arith.constant 0.000000e+00 : f32
    %79 = vector.broadcast %cst_50 : f32 to vector<16x256xf32>
    %80 = arith.maximumf %78, %79 : vector<16x256xf32>
    %c0_51 = arith.constant 0 : index
    %c0_52 = arith.constant 0 : index
    %81 = vector.load %arg15[%c0_51, %c0_52] : memref<16x1xf32, #tpu.memory_space<vmem>>, vector<16x1xf32>
    %c0_53 = arith.constant 0 : index
    %c0_54 = arith.constant 0 : index
    %82 = vector.load %arg16[%c0_53, %c0_54] : memref<16x1xf32, #tpu.memory_space<vmem>>, vector<16x1xf32>
    %c0_55 = arith.constant 0 : index
    %c0_56 = arith.constant 0 : index
    %83 = vector.load %arg17[%c0_55, %c0_56] : memref<16x1xf32, #tpu.memory_space<vmem>>, vector<16x1xf32>
    %c0_57 = arith.constant 0 : index
    %c0_58 = arith.constant 0 : index
    %84 = vector.load %arg19[%c0_57, %c0_58] : memref<16x1xf32, #tpu.memory_space<vmem>>, vector<16x1xf32>
    %c0_59 = arith.constant 0 : index
    %c0_60 = arith.constant 0 : index
    %85 = vector.load %arg20[%c0_59, %c0_60] : memref<16x1xf32, #tpu.memory_space<vmem>>, vector<16x1xf32>
    %c0_61 = arith.constant 0 : index
    %c0_62 = arith.constant 0 : index
    %86 = vector.load %arg21[%c0_61, %c0_62] : memref<16x1xf32, #tpu.memory_space<vmem>>, vector<16x1xf32>
    %c1_63 = arith.constant 1 : index
    %c0_64 = arith.constant 0 : index
    %c0_65 = arith.constant 0 : index
    %87 = vector.load %arg14[%c1_63, %c0_64, %c0_65] : memref<2x16x16xf32, #tpu.memory_space<vmem>>, vector<1x16x16xf32>
    %88 = vector.shape_cast %87 : vector<1x16x16xf32> to vector<16x16xf32>
    %cst_66 = arith.constant dense<0.000000e+00> : vector<16x256xf32>
    %89 = tpu.matmul %88, %80, %cst_66 {dimension_numbers = #tpu.dot_dimension_numbers<[1], [0], [0], [1], [0, 0, 1, 1], [], []>} : vector<16x16xf32>, vector<16x256xf32>, vector<16x256xf32> -> vector<16x256xf32>
    %c0_67 = arith.constant 0 : index
    %c0_68 = arith.constant 0 : index
    %90 = vector.load %arg2[%c0_67, %c0_68] : memref<256x256xf32, #tpu.memory_space<vmem>>, vector<256x256xf32>
    %cst_69 = arith.constant dense<0.000000e+00> : vector<16x256xf32>
    %91 = tpu.matmul %80, %90, %cst_69 {dimension_numbers = #tpu.dot_dimension_numbers<[1], [0], [0], [1], [0, 0, 1, 1], [], []>} : vector<16x256xf32>, vector<256x256xf32>, vector<16x256xf32> -> vector<16x256xf32>
    %c0_70 = arith.constant 0 : index
    %c0_71 = arith.constant 0 : index
    %c0_72 = arith.constant 0 : index
    %92 = vector.load %arg14[%c0_70, %c0_71, %c0_72] : memref<2x16x16xf32, #tpu.memory_space<vmem>>, vector<1x16x16xf32>
    %93 = vector.shape_cast %92 : vector<1x16x16xf32> to vector<16x16xf32>
    %cst_73 = arith.constant dense<0.000000e+00> : vector<16x256xf32>
    %94 = tpu.matmul %93, %91, %cst_73 {dimension_numbers = #tpu.dot_dimension_numbers<[1], [0], [0], [1], [0, 0, 1, 1], [], []>} : vector<16x16xf32>, vector<16x256xf32>, vector<16x256xf32> -> vector<16x256xf32>
    %95 = arith.addf %89, %94 : vector<16x256xf32>
    %96 = vector.broadcast %81 : vector<16x1xf32> to vector<16x256xf32>
    %97 = arith.addf %95, %96 : vector<16x256xf32>
    %cst_74 = arith.constant 0.000000e+00 : f32
    %98 = vector.broadcast %cst_74 : f32 to vector<16x256xf32>
    %99 = arith.maximumf %97, %98 : vector<16x256xf32>
    %cst_75 = arith.constant dense<0.000000e+00> : vector<16xf32>
    %100 = vector.multi_reduction <add>, %99, %cst_75 [1] : vector<16x256xf32> to vector<16xf32>
    %101 = vector.shape_cast %100 : vector<16xf32> to vector<16x1xf32>
    %cst_76 = arith.constant 3.906250e-03 : f32
    %102 = vector.broadcast %cst_76 : f32 to vector<16x1xf32>
    %103 = arith.mulf %101, %102 : vector<16x1xf32>
    %104 = vector.broadcast %103 : vector<16x1xf32> to vector<16x256xf32>
    %105 = arith.subf %99, %104 : vector<16x256xf32>
    %106 = arith.mulf %105, %105 : vector<16x256xf32>
    %cst_77 = arith.constant dense<0.000000e+00> : vector<16xf32>
    %107 = vector.multi_reduction <add>, %106, %cst_77 [1] : vector<16x256xf32> to vector<16xf32>
    %108 = vector.shape_cast %107 : vector<16xf32> to vector<16x1xf32>
    %cst_78 = arith.constant 3.906250e-03 : f32
    %109 = vector.broadcast %cst_78 : f32 to vector<16x1xf32>
    %110 = arith.mulf %108, %109 : vector<16x1xf32>
    %cst_79 = arith.constant 9.99999974E-6 : f32
    %111 = vector.broadcast %cst_79 : f32 to vector<16x1xf32>
    %112 = arith.addf %110, %111 : vector<16x1xf32>
    %113 = math.rsqrt %112 : vector<16x1xf32>
    %114 = vector.broadcast %113 : vector<16x1xf32> to vector<16x256xf32>
    %115 = arith.mulf %105, %114 : vector<16x256xf32>
    %116 = vector.broadcast %82 : vector<16x1xf32> to vector<16x256xf32>
    %117 = arith.mulf %115, %116 : vector<16x256xf32>
    %118 = vector.broadcast %83 : vector<16x1xf32> to vector<16x256xf32>
    %119 = arith.addf %117, %118 : vector<16x256xf32>
    %c1_80 = arith.constant 1 : index
    %c0_81 = arith.constant 0 : index
    %c0_82 = arith.constant 0 : index
    %120 = vector.load %arg18[%c1_80, %c0_81, %c0_82] : memref<2x16x16xf32, #tpu.memory_space<vmem>>, vector<1x16x16xf32>
    %121 = vector.shape_cast %120 : vector<1x16x16xf32> to vector<16x16xf32>
    %cst_83 = arith.constant dense<0.000000e+00> : vector<16x256xf32>
    %122 = tpu.matmul %121, %119, %cst_83 {dimension_numbers = #tpu.dot_dimension_numbers<[1], [0], [0], [1], [0, 0, 1, 1], [], []>} : vector<16x16xf32>, vector<16x256xf32>, vector<16x256xf32> -> vector<16x256xf32>
    %c0_84 = arith.constant 0 : index
    %c0_85 = arith.constant 0 : index
    %123 = vector.load %arg2[%c0_84, %c0_85] : memref<256x256xf32, #tpu.memory_space<vmem>>, vector<256x256xf32>
    %cst_86 = arith.constant dense<0.000000e+00> : vector<16x256xf32>
    %124 = tpu.matmul %119, %123, %cst_86 {dimension_numbers = #tpu.dot_dimension_numbers<[1], [0], [0], [1], [0, 0, 1, 1], [], []>} : vector<16x256xf32>, vector<256x256xf32>, vector<16x256xf32> -> vector<16x256xf32>
    %c0_87 = arith.constant 0 : index
    %c0_88 = arith.constant 0 : index
    %c0_89 = arith.constant 0 : index
    %125 = vector.load %arg18[%c0_87, %c0_88, %c0_89] : memref<2x16x16xf32, #tpu.memory_space<vmem>>, vector<1x16x16xf32>
    %126 = vector.shape_cast %125 : vector<1x16x16xf32> to vector<16x16xf32>
    %cst_90 = arith.constant dense<0.000000e+00> : vector<16x256xf32>
    %127 = tpu.matmul %126, %124, %cst_90 {dimension_numbers = #tpu.dot_dimension_numbers<[1], [0], [0], [1], [0, 0, 1, 1], [], []>} : vector<16x16xf32>, vector<16x256xf32>, vector<16x256xf32> -> vector<16x256xf32>
    %128 = arith.addf %122, %127 : vector<16x256xf32>
    %129 = vector.broadcast %84 : vector<16x1xf32> to vector<16x256xf32>
    %130 = arith.addf %128, %129 : vector<16x256xf32>
    %cst_91 = arith.constant 0.000000e+00 : f32
    %131 = vector.broadcast %cst_91 : f32 to vector<16x256xf32>
    %132 = arith.maximumf %130, %131 : vector<16x256xf32>
    %cst_92 = arith.constant dense<0.000000e+00> : vector<16xf32>
    %133 = vector.multi_reduction <add>, %132, %cst_92 [1] : vector<16x256xf32> to vector<16xf32>
    %134 = vector.shape_cast %133 : vector<16xf32> to vector<16x1xf32>
    %cst_93 = arith.constant 3.906250e-03 : f32
    %135 = vector.broadcast %cst_93 : f32 to vector<16x1xf32>
    %136 = arith.mulf %134, %135 : vector<16x1xf32>
    %137 = vector.broadcast %136 : vector<16x1xf32> to vector<16x256xf32>
    %138 = arith.subf %132, %137 : vector<16x256xf32>
    %139 = arith.mulf %138, %138 : vector<16x256xf32>
    %cst_94 = arith.constant dense<0.000000e+00> : vector<16xf32>
    %140 = vector.multi_reduction <add>, %139, %cst_94 [1] : vector<16x256xf32> to vector<16xf32>
    %141 = vector.shape_cast %140 : vector<16xf32> to vector<16x1xf32>
    %cst_95 = arith.constant 3.906250e-03 : f32
    %142 = vector.broadcast %cst_95 : f32 to vector<16x1xf32>
    %143 = arith.mulf %141, %142 : vector<16x1xf32>
    %cst_96 = arith.constant 9.99999974E-6 : f32
    %144 = vector.broadcast %cst_96 : f32 to vector<16x1xf32>
    %145 = arith.addf %143, %144 : vector<16x1xf32>
    %146 = math.rsqrt %145 : vector<16x1xf32>
    %147 = vector.broadcast %146 : vector<16x1xf32> to vector<16x256xf32>
    %148 = arith.mulf %138, %147 : vector<16x256xf32>
    %149 = vector.broadcast %85 : vector<16x1xf32> to vector<16x256xf32>
    %150 = arith.mulf %148, %149 : vector<16x256xf32>
    %151 = vector.broadcast %86 : vector<16x1xf32> to vector<16x256xf32>
    %152 = arith.addf %150, %151 : vector<16x256xf32>
    %153 = arith.addf %152, %80 : vector<16x256xf32>
    %cst_97 = arith.constant 0.000000e+00 : f32
    %154 = vector.broadcast %cst_97 : f32 to vector<16x256xf32>
    %155 = arith.maximumf %153, %154 : vector<16x256xf32>
    %c0_98 = arith.constant 0 : index
    %c0_99 = arith.constant 0 : index
    %156 = vector.load %arg23[%c0_98, %c0_99] : memref<32x1xf32, #tpu.memory_space<vmem>>, vector<32x1xf32>
    %c0_100 = arith.constant 0 : index
    %c0_101 = arith.constant 0 : index
    %157 = vector.load %arg24[%c0_100, %c0_101] : memref<32x1xf32, #tpu.memory_space<vmem>>, vector<32x1xf32>
    %c0_102 = arith.constant 0 : index
    %c0_103 = arith.constant 0 : index
    %158 = vector.load %arg25[%c0_102, %c0_103] : memref<32x1xf32, #tpu.memory_space<vmem>>, vector<32x1xf32>
    %c0_104 = arith.constant 0 : index
    %c0_105 = arith.constant 0 : index
    %159 = vector.load %arg27[%c0_104, %c0_105] : memref<32x1xf32, #tpu.memory_space<vmem>>, vector<32x1xf32>
    %c0_106 = arith.constant 0 : index
    %c0_107 = arith.constant 0 : index
    %160 = vector.load %arg28[%c0_106, %c0_107] : memref<32x1xf32, #tpu.memory_space<vmem>>, vector<32x1xf32>
    %c0_108 = arith.constant 0 : index
    %c0_109 = arith.constant 0 : index
    %161 = vector.load %arg29[%c0_108, %c0_109] : memref<32x1xf32, #tpu.memory_space<vmem>>, vector<32x1xf32>
    %c1_110 = arith.constant 1 : index
    %c0_111 = arith.constant 0 : index
    %c0_112 = arith.constant 0 : index
    %162 = vector.load %arg22[%c1_110, %c0_111, %c0_112] : memref<2x32x16xf32, #tpu.memory_space<vmem>>, vector<1x32x16xf32>
    %163 = vector.shape_cast %162 : vector<1x32x16xf32> to vector<32x16xf32>
    %cst_113 = arith.constant dense<0.000000e+00> : vector<32x256xf32>
    %164 = tpu.matmul %163, %155, %cst_113 {dimension_numbers = #tpu.dot_dimension_numbers<[1], [0], [0], [1], [0, 0, 1, 1], [], []>} : vector<32x16xf32>, vector<16x256xf32>, vector<32x256xf32> -> vector<32x256xf32>
    %c0_114 = arith.constant 0 : index
    %c0_115 = arith.constant 0 : index
    %165 = vector.load %arg3[%c0_114, %c0_115] : memref<256x256xf32, #tpu.memory_space<vmem>>, vector<256x256xf32>
    %cst_116 = arith.constant dense<0.000000e+00> : vector<16x256xf32>
    %166 = tpu.matmul %155, %165, %cst_116 {dimension_numbers = #tpu.dot_dimension_numbers<[1], [0], [0], [1], [0, 0, 1, 1], [], []>} : vector<16x256xf32>, vector<256x256xf32>, vector<16x256xf32> -> vector<16x256xf32>
    %c0_117 = arith.constant 0 : index
    %c0_118 = arith.constant 0 : index
    %c0_119 = arith.constant 0 : index
    %167 = vector.load %arg22[%c0_117, %c0_118, %c0_119] : memref<2x32x16xf32, #tpu.memory_space<vmem>>, vector<1x32x16xf32>
    %168 = vector.shape_cast %167 : vector<1x32x16xf32> to vector<32x16xf32>
    %cst_120 = arith.constant dense<0.000000e+00> : vector<32x256xf32>
    %169 = tpu.matmul %168, %166, %cst_120 {dimension_numbers = #tpu.dot_dimension_numbers<[1], [0], [0], [1], [0, 0, 1, 1], [], []>} : vector<32x16xf32>, vector<16x256xf32>, vector<32x256xf32> -> vector<32x256xf32>
    %170 = arith.addf %164, %169 : vector<32x256xf32>
    %171 = vector.broadcast %156 : vector<32x1xf32> to vector<32x256xf32>
    %172 = arith.addf %170, %171 : vector<32x256xf32>
    %cst_121 = arith.constant 0.000000e+00 : f32
    %173 = vector.broadcast %cst_121 : f32 to vector<32x256xf32>
    %174 = arith.maximumf %172, %173 : vector<32x256xf32>
    %cst_122 = arith.constant dense<0.000000e+00> : vector<32xf32>
    %175 = vector.multi_reduction <add>, %174, %cst_122 [1] : vector<32x256xf32> to vector<32xf32>
    %176 = vector.shape_cast %175 : vector<32xf32> to vector<32x1xf32>
    %cst_123 = arith.constant 3.906250e-03 : f32
    %177 = vector.broadcast %cst_123 : f32 to vector<32x1xf32>
    %178 = arith.mulf %176, %177 : vector<32x1xf32>
    %179 = vector.broadcast %178 : vector<32x1xf32> to vector<32x256xf32>
    %180 = arith.subf %174, %179 : vector<32x256xf32>
    %181 = arith.mulf %180, %180 : vector<32x256xf32>
    %cst_124 = arith.constant dense<0.000000e+00> : vector<32xf32>
    %182 = vector.multi_reduction <add>, %181, %cst_124 [1] : vector<32x256xf32> to vector<32xf32>
    %183 = vector.shape_cast %182 : vector<32xf32> to vector<32x1xf32>
    %cst_125 = arith.constant 3.906250e-03 : f32
    %184 = vector.broadcast %cst_125 : f32 to vector<32x1xf32>
    %185 = arith.mulf %183, %184 : vector<32x1xf32>
    %cst_126 = arith.constant 9.99999974E-6 : f32
    %186 = vector.broadcast %cst_126 : f32 to vector<32x1xf32>
    %187 = arith.addf %185, %186 : vector<32x1xf32>
    %188 = math.rsqrt %187 : vector<32x1xf32>
    %189 = vector.broadcast %188 : vector<32x1xf32> to vector<32x256xf32>
    %190 = arith.mulf %180, %189 : vector<32x256xf32>
    %191 = vector.broadcast %157 : vector<32x1xf32> to vector<32x256xf32>
    %192 = arith.mulf %190, %191 : vector<32x256xf32>
    %193 = vector.broadcast %158 : vector<32x1xf32> to vector<32x256xf32>
    %194 = arith.addf %192, %193 : vector<32x256xf32>
    %c1_127 = arith.constant 1 : index
    %c0_128 = arith.constant 0 : index
    %c0_129 = arith.constant 0 : index
    %195 = vector.load %arg26[%c1_127, %c0_128, %c0_129] : memref<2x32x32xf32, #tpu.memory_space<vmem>>, vector<1x32x32xf32>
    %196 = vector.shape_cast %195 : vector<1x32x32xf32> to vector<32x32xf32>
    %cst_130 = arith.constant dense<0.000000e+00> : vector<32x256xf32>
    %197 = tpu.matmul %196, %194, %cst_130 {dimension_numbers = #tpu.dot_dimension_numbers<[1], [0], [0], [1], [0, 0, 1, 1], [], []>} : vector<32x32xf32>, vector<32x256xf32>, vector<32x256xf32> -> vector<32x256xf32>
    %c0_131 = arith.constant 0 : index
    %c0_132 = arith.constant 0 : index
    %198 = vector.load %arg3[%c0_131, %c0_132] : memref<256x256xf32, #tpu.memory_space<vmem>>, vector<256x256xf32>
    %cst_133 = arith.constant dense<0.000000e+00> : vector<32x256xf32>
    %199 = tpu.matmul %194, %198, %cst_133 {dimension_numbers = #tpu.dot_dimension_numbers<[1], [0], [0], [1], [0, 0, 1, 1], [], []>} : vector<32x256xf32>, vector<256x256xf32>, vector<32x256xf32> -> vector<32x256xf32>
    %c0_134 = arith.constant 0 : index
    %c0_135 = arith.constant 0 : index
    %c0_136 = arith.constant 0 : index
    %200 = vector.load %arg26[%c0_134, %c0_135, %c0_136] : memref<2x32x32xf32, #tpu.memory_space<vmem>>, vector<1x32x32xf32>
    %201 = vector.shape_cast %200 : vector<1x32x32xf32> to vector<32x32xf32>
    %cst_137 = arith.constant dense<0.000000e+00> : vector<32x256xf32>
    %202 = tpu.matmul %201, %199, %cst_137 {dimension_numbers = #tpu.dot_dimension_numbers<[1], [0], [0], [1], [0, 0, 1, 1], [], []>} : vector<32x32xf32>, vector<32x256xf32>, vector<32x256xf32> -> vector<32x256xf32>
    %203 = arith.addf %197, %202 : vector<32x256xf32>
    %204 = vector.broadcast %159 : vector<32x1xf32> to vector<32x256xf32>
    %205 = arith.addf %203, %204 : vector<32x256xf32>
    %cst_138 = arith.constant 0.000000e+00 : f32
    %206 = vector.broadcast %cst_138 : f32 to vector<32x256xf32>
    %207 = arith.maximumf %205, %206 : vector<32x256xf32>
    %cst_139 = arith.constant dense<0.000000e+00> : vector<32xf32>
    %208 = vector.multi_reduction <add>, %207, %cst_139 [1] : vector<32x256xf32> to vector<32xf32>
    %209 = vector.shape_cast %208 : vector<32xf32> to vector<32x1xf32>
    %cst_140 = arith.constant 3.906250e-03 : f32
    %210 = vector.broadcast %cst_140 : f32 to vector<32x1xf32>
    %211 = arith.mulf %209, %210 : vector<32x1xf32>
    %212 = vector.broadcast %211 : vector<32x1xf32> to vector<32x256xf32>
    %213 = arith.subf %207, %212 : vector<32x256xf32>
    %214 = arith.mulf %213, %213 : vector<32x256xf32>
    %cst_141 = arith.constant dense<0.000000e+00> : vector<32xf32>
    %215 = vector.multi_reduction <add>, %214, %cst_141 [1] : vector<32x256xf32> to vector<32xf32>
    %216 = vector.shape_cast %215 : vector<32xf32> to vector<32x1xf32>
    %cst_142 = arith.constant 3.906250e-03 : f32
    %217 = vector.broadcast %cst_142 : f32 to vector<32x1xf32>
    %218 = arith.mulf %216, %217 : vector<32x1xf32>
    %cst_143 = arith.constant 9.99999974E-6 : f32
    %219 = vector.broadcast %cst_143 : f32 to vector<32x1xf32>
    %220 = arith.addf %218, %219 : vector<32x1xf32>
    %221 = math.rsqrt %220 : vector<32x1xf32>
    %222 = vector.broadcast %221 : vector<32x1xf32> to vector<32x256xf32>
    %223 = arith.mulf %213, %222 : vector<32x256xf32>
    %224 = vector.broadcast %160 : vector<32x1xf32> to vector<32x256xf32>
    %225 = arith.mulf %223, %224 : vector<32x256xf32>
    %226 = vector.broadcast %161 : vector<32x1xf32> to vector<32x256xf32>
    %227 = arith.addf %225, %226 : vector<32x256xf32>
    %c0_144 = arith.constant 0 : index
    %c0_145 = arith.constant 0 : index
    %228 = vector.load %arg30[%c0_144, %c0_145] : memref<32x16xf32, #tpu.memory_space<vmem>>, vector<32x16xf32>
    %c0_146 = arith.constant 0 : index
    %c0_147 = arith.constant 0 : index
    %229 = vector.load %arg31[%c0_146, %c0_147] : memref<32x1xf32, #tpu.memory_space<vmem>>, vector<32x1xf32>
    %cst_148 = arith.constant dense<0.000000e+00> : vector<32x256xf32>
    %230 = tpu.matmul %228, %155, %cst_148 {dimension_numbers = #tpu.dot_dimension_numbers<[1], [0], [0], [1], [0, 0, 1, 1], [], []>} : vector<32x16xf32>, vector<16x256xf32>, vector<32x256xf32> -> vector<32x256xf32>
    %231 = vector.broadcast %229 : vector<32x1xf32> to vector<32x256xf32>
    %232 = arith.addf %230, %231 : vector<32x256xf32>
    %233 = arith.addf %227, %232 : vector<32x256xf32>
    %cst_149 = arith.constant 0.000000e+00 : f32
    %234 = vector.broadcast %cst_149 : f32 to vector<32x256xf32>
    %235 = arith.maximumf %233, %234 : vector<32x256xf32>
    %c0_150 = arith.constant 0 : index
    %c0_151 = arith.constant 0 : index
    %236 = vector.load %arg32[%c0_150, %c0_151] : memref<32x256xf32, #tpu.memory_space<vmem>>, vector<32x256xf32>
    tpu.vector_store %arg32[%c0_150, %c0_151], %235 {strides = array<i32>} : memref<32x256xf32, #tpu.memory_space<vmem>>, vector<32x256xf32>,
    return
  }
}

</mosaic_0001>

<llo_original>
// kernel: temporal_conv_net.1
$region0: #{temporal_conv_net.1}
  #allocation0 [shape = 'u32[]', space=smem, size = 0x4, offset = 0x4, fixed_abs, tag = 'smem constant byte address 0x4 - core index']
  #allocation1 [shape = 'u32[72,128]{1,0:T(1,128)}', space=vmem, size = 0x9000, scoped, tag = 'internal scratch']
  %s0 = inlined_call_operand.smem [shape: u32[33], index: -1, kind: input, shape index: {}]
  %s1 = sld [smem:[%s0]]
  %s2 = scalar_lea.smem %s0, 1
  %s3 = sld [smem:[%s2]]
  %s4 = scalar_lea.smem %s0, 2
  %s5 = sld [smem:[%s4]]
  %s6 = scalar_lea.smem %s0, 3
  %s7 = sld [smem:[%s6]]
  %s8 = scalar_lea.smem %s0, 4
  %s9 = sld [smem:[%s8]]
  %s10 = scalar_lea.smem %s0, 5
  %s11 = sld [smem:[%s10]]
  %s12 = scalar_lea.smem %s0, 6
  %s13 = sld [smem:[%s12]]
  %s14 = scalar_lea.smem %s0, 7
  %s15 = sld [smem:[%s14]]
  %s16 = scalar_lea.smem %s0, 8
  %s17 = sld [smem:[%s16]]
  %s18 = scalar_lea.smem %s0, 9
  %s19 = sld [smem:[%s18]]
  %s20 = scalar_lea.smem %s0, 10
  %s21 = sld [smem:[%s20]]
  %s22 = scalar_lea.smem %s0, 11
  %s23 = sld [smem:[%s22]]
  %s24 = scalar_lea.smem %s0, 12
  %s25 = sld [smem:[%s24]]
  %s26 = scalar_lea.smem %s0, 13
  %s27 = sld [smem:[%s26]]
  %s28 = scalar_lea.smem %s0, 14
  %s29 = sld [smem:[%s28]]
  %s30 = scalar_lea.smem %s0, 15
  %s31 = sld [smem:[%s30]]
  %s32 = scalar_lea.smem %s0, 16
  %s33 = sld [smem:[%s32]]
  %s34 = scalar_lea.smem %s0, 17
  %s35 = sld [smem:[%s34]]
  %s36 = scalar_lea.smem %s0, 18
  %s37 = sld [smem:[%s36]]
  %s38 = scalar_lea.smem %s0, 19
  %s39 = sld [smem:[%s38]]
  %s40 = scalar_lea.smem %s0, 20
  %s41 = sld [smem:[%s40]]
  %s42 = scalar_lea.smem %s0, 21
  %s43 = sld [smem:[%s42]]
  %s44 = scalar_lea.smem %s0, 22
  %s45 = sld [smem:[%s44]]
  %s46 = scalar_lea.smem %s0, 23
  %s47 = sld [smem:[%s46]]
  %s48 = scalar_lea.smem %s0, 24
  %s49 = sld [smem:[%s48]]
  %s50 = scalar_lea.smem %s0, 25
  %s51 = sld [smem:[%s50]]
  %s52 = scalar_lea.smem %s0, 26
  %s53 = sld [smem:[%s52]]
  %s54 = scalar_lea.smem %s0, 27
  %s55 = sld [smem:[%s54]]
  %s56 = scalar_lea.smem %s0, 28
  %s57 = sld [smem:[%s56]]
  %s58 = scalar_lea.smem %s0, 29
  %s59 = sld [smem:[%s58]]
  %s60 = scalar_lea.smem %s0, 30
  %s61 = sld [smem:[%s60]]
  %s62 = scalar_lea.smem %s0, 31
  %s63 = sld [smem:[%s62]]
  %s64 = scalar_lea.smem %s0, 32
  %s65 = sld [smem:[%s64]]
  %s66 = sld [smem:[#allocation0]]
  $region150: #{temporal_conv_net.1} parent=0
    _
  %s68 = ssub.s32 1, %s66
  %s69 = scalar_select 0, %s68, %s66
  $region1: #{temporal_conv_net.1} parent=0
    #allocation2 [shape = 'u8[262144]{0}', space=vmem, size = 0x40000, scoped, tag = 'input window, operand 1, single buffered']
    #allocation3 [shape = 's32[1]{0}', space=sflag, size = 0x4, scoped, tag = 'scoped memory for temporal_conv_net.1']
    #allocation4 [shape = 'u8[262144]{0}', space=vmem, size = 0x40000, scoped, tag = 'input window, operand 2, single buffered']
    #allocation5 [shape = 's32[1]{0}', space=sflag, size = 0x4, scoped, tag = 'scoped memory for temporal_conv_net.1']
    #allocation6 [shape = 'u8[262144]{0}', space=vmem, size = 0x40000, scoped, tag = 'input window, operand 3, single buffered']
    %70 = vsyncpa [#allocation3], 0
    %71 = vsyncpa [#allocation5], 0
    // Predicated region
    $region2: #{temporal_conv_net.1} parent=1 // pred_check
      _
    $region3: #{temporal_conv_net.1} parent=1 // pred_check_branch
      %73 = sbr.rel (0) target = $region5
    $region4: #{temporal_conv_net.1} parent=1 // pred_region
      _
    $region5: #{temporal_conv_net.1} parent=1 // pred_fallthru
      _
    // Predicated region
    $region6: #{temporal_conv_net.1} parent=1 // pred_check
      _
    $region7: #{temporal_conv_net.1} parent=1 // pred_check_branch
      %75 = sbr.rel (0) target = $region9
    $region8: #{temporal_conv_net.1} parent=1 // pred_region
      %77 = vsyncadd [#allocation3], 0
      %s78 = sshll.u32 %s3, 4
      %s79 = int_to_ptr.hbm [resolvable:$true] %s78
      %s80 = sshll.u32 [#allocation2], 4
      %s81 = int_to_ptr.vmem [resolvable:$true] %s80
      %86 = dma.hbm_to_vmem [thread:$0]  %s79, 8192, %s81, [#allocation3], 256, 256, 16
    $region9: #{temporal_conv_net.1} parent=1 // pred_fallthru
      _
    // Predicated region
    $region10: #{temporal_conv_net.1} parent=1 // pred_check
      _
    $region11: #{temporal_conv_net.1} parent=1 // pred_check_branch
      %88 = sbr.rel (0) target = $region13
    $region12: #{temporal_conv_net.1} parent=1 // pred_region
      %90 = vsyncadd [#allocation5], 0
      %s91 = sshll.u32 %s5, 4
      %s92 = int_to_ptr.hbm [resolvable:$true] %s91
      %s93 = sshll.u32 [#allocation4], 4
      %s94 = int_to_ptr.vmem [resolvable:$true] %s93
      %99 = dma.hbm_to_vmem [thread:$0]  %s92, 8192, %s94, [#allocation5], 256, 256, 16
    $region13: #{temporal_conv_net.1} parent=1 // pred_fallthru
      _
    // Predicated region
    $region14: #{temporal_conv_net.1} parent=1 // pred_check
      _
    $region15: #{temporal_conv_net.1} parent=1 // pred_check_branch
      %101 = sbr.rel (0) target = $region17
    $region16: #{temporal_conv_net.1} parent=1 // pred_region
      %103 = vsyncadd [#allocation5], 0
      %s104 = sshll.u32 %s7, 4
      %s105 = int_to_ptr.hbm [resolvable:$true] %s104
      %s106 = sshll.u32 [#allocation6], 4
      %s107 = int_to_ptr.vmem [resolvable:$true] %s106
      %112 = dma.hbm_to_vmem [thread:$0]  %s105, 8192, %s107, [#allocation5], 256, 256, 16
    $region17: #{temporal_conv_net.1} parent=1 // pred_fallthru
      _
    // Predicated region
    $region18: #{temporal_conv_net.1} parent=1 // pred_check
      _
    $region19: #{temporal_conv_net.1} parent=1 // pred_check_branch
      %114 = sbr.rel (0) target = $region21
    $region20: #{temporal_conv_net.1} parent=1 // pred_region
      _
    $region21: #{temporal_conv_net.1} parent=1 // pred_fallthru
      _
    // Predicated region
    $region22: #{temporal_conv_net.1} parent=1 // pred_check
      _
    $region23: #{temporal_conv_net.1} parent=1 // pred_check_branch
      %116 = sbr.rel (0) target = $region25
    $region24: #{temporal_conv_net.1} parent=1 // pred_region
      _
    $region25: #{temporal_conv_net.1} parent=1 // pred_fallthru
      _
    // Predicated region
    $region26: #{temporal_conv_net.1} parent=1 // pred_check
      _
    $region27: #{temporal_conv_net.1} parent=1 // pred_check_branch
      %118 = sbr.rel (0) target = $region29
    $region28: #{temporal_conv_net.1} parent=1 // pred_region
      _
    $region29: #{temporal_conv_net.1} parent=1 // pred_fallthru
      _
    // Predicated region
    $region30: #{temporal_conv_net.1} parent=1 // pred_check
      _
    $region31: #{temporal_conv_net.1} parent=1 // pred_check_branch
      %120 = sbr.rel (0) target = $region33
    $region32: #{temporal_conv_net.1} parent=1 // pred_region
      _
    $region33: #{temporal_conv_net.1} parent=1 // pred_fallthru
      _
    // Predicated region
    $region34: #{temporal_conv_net.1} parent=1 // pred_check
      _
    $region35: #{temporal_conv_net.1} parent=1 // pred_check_branch
      %122 = sbr.rel (0) target = $region37
    $region36: #{temporal_conv_net.1} parent=1 // pred_region
      _
    $region37: #{temporal_conv_net.1} parent=1 // pred_fallthru
      _
    // Predicated region
    $region38: #{temporal_conv_net.1} parent=1 // pred_check
      _
    $region39: #{temporal_conv_net.1} parent=1 // pred_check_branch
      %124 = sbr.rel (0) target = $region41
    $region40: #{temporal_conv_net.1} parent=1 // pred_region
      _
    $region41: #{temporal_conv_net.1} parent=1 // pred_fallthru
      _
    // Predicated region
    $region42: #{temporal_conv_net.1} parent=1 // pred_check
      _
    $region43: #{temporal_conv_net.1} parent=1 // pred_check_branch
      %126 = sbr.rel (0) target = $region45
    $region44: #{temporal_conv_net.1} parent=1 // pred_region
      _
    $region45: #{temporal_conv_net.1} parent=1 // pred_fallthru
      _
    // Predicated region
    $region46: #{temporal_conv_net.1} parent=1 // pred_check
      _
    $region47: #{temporal_conv_net.1} parent=1 // pred_check_branch
      %128 = sbr.rel (0) target = $region49
    $region48: #{temporal_conv_net.1} parent=1 // pred_region
      _
    $region49: #{temporal_conv_net.1} parent=1 // pred_fallthru
      _
    // Predicated region
    $region50: #{temporal_conv_net.1} parent=1 // pred_check
      _
    $region51: #{temporal_conv_net.1} parent=1 // pred_check_branch
      %130 = sbr.rel (0) target = $region53
    $region52: #{temporal_conv_net.1} parent=1 // pred_region
      _
    $region53: #{temporal_conv_net.1} parent=1 // pred_fallthru
      _
    // Predicated region
    $region54: #{temporal_conv_net.1} parent=1 // pred_check
      _
    $region55: #{temporal_conv_net.1} parent=1 // pred_check_branch
      %132 = sbr.rel (0) target = $region57
    $region56: #{temporal_conv_net.1} parent=1 // pred_region
      _
    $region57: #{temporal_conv_net.1} parent=1 // pred_fallthru
      _
    // Predicated region
    $region58: #{temporal_conv_net.1} parent=1 // pred_check
      _
    $region59: #{temporal_conv_net.1} parent=1 // pred_check_branch
      %134 = sbr.rel (0) target = $region61
    $region60: #{temporal_conv_net.1} parent=1 // pred_region
      _
    $region61: #{temporal_conv_net.1} parent=1 // pred_fallthru
      _
    // Predicated region
    $region62: #{temporal_conv_net.1} parent=1 // pred_check
      _
    $region63: #{temporal_conv_net.1} parent=1 // pred_check_branch
      %136 = sbr.rel (0) target = $region65
    $region64: #{temporal_conv_net.1} parent=1 // pred_region
      _
    $region65: #{temporal_conv_net.1} parent=1 // pred_fallthru
      _
    // Predicated region
    $region66: #{temporal_conv_net.1} parent=1 // pred_check
      _
    $region67: #{temporal_conv_net.1} parent=1 // pred_check_branch
      %138 = sbr.rel (0) target = $region69
    $region68: #{temporal_conv_net.1} parent=1 // pred_region
      _
    $region69: #{temporal_conv_net.1} parent=1 // pred_fallthru
      _
    // Predicated region
    $region70: #{temporal_conv_net.1} parent=1 // pred_check
      _
    $region71: #{temporal_conv_net.1} parent=1 // pred_check_branch
      %140 = sbr.rel (0) target = $region73
    $region72: #{temporal_conv_net.1} parent=1 // pred_region
      _
    $region73: #{temporal_conv_net.1} parent=1 // pred_fallthru
      _
    // Predicated region
    $region74: #{temporal_conv_net.1} parent=1 // pred_check
      _
    $region75: #{temporal_conv_net.1} parent=1 // pred_check_branch
      %142 = sbr.rel (0) target = $region77
    $region76: #{temporal_conv_net.1} parent=1 // pred_region
      _
    $region77: #{temporal_conv_net.1} parent=1 // pred_fallthru
      _
    // Predicated region
    $region78: #{temporal_conv_net.1} parent=1 // pred_check
      _
    $region79: #{temporal_conv_net.1} parent=1 // pred_check_branch
      %144 = sbr.rel (0) target = $region81
    $region80: #{temporal_conv_net.1} parent=1 // pred_region
      _
    $region81: #{temporal_conv_net.1} parent=1 // pred_fallthru
      _
    // Predicated region
    $region82: #{temporal_conv_net.1} parent=1 // pred_check
      _
    $region83: #{temporal_conv_net.1} parent=1 // pred_check_branch
      %146 = sbr.rel (0) target = $region85
    $region84: #{temporal_conv_net.1} parent=1 // pred_region
      _
    $region85: #{temporal_conv_net.1} parent=1 // pred_fallthru
      _
    // Predicated region
    $region86: #{temporal_conv_net.1} parent=1 // pred_check
      _
    $region87: #{temporal_conv_net.1} parent=1 // pred_check_branch
      %148 = sbr.rel (0) target = $region89
    $region88: #{temporal_conv_net.1} parent=1 // pred_region
      _
    $region89: #{temporal_conv_net.1} parent=1 // pred_fallthru
      _
    // Predicated region
    $region90: #{temporal_conv_net.1} parent=1 // pred_check
      _
    $region91: #{temporal_conv_net.1} parent=1 // pred_check_branch
      %150 = sbr.rel (0) target = $region93
    $region92: #{temporal_conv_net.1} parent=1 // pred_region
      _
    $region93: #{temporal_conv_net.1} parent=1 // pred_fallthru
      _
    // Predicated region
    $region94: #{temporal_conv_net.1} parent=1 // pred_check
      _
    $region95: #{temporal_conv_net.1} parent=1 // pred_check_branch
      %152 = sbr.rel (0) target = $region97
    $region96: #{temporal_conv_net.1} parent=1 // pred_region
      _
    $region97: #{temporal_conv_net.1} parent=1 // pred_fallthru
      _
    // Predicated region
    $region98: #{temporal_conv_net.1} parent=1 // pred_check
      _
    $region99: #{temporal_conv_net.1} parent=1 // pred_check_branch
      %154 = sbr.rel (0) target = $region101
    $region100: #{temporal_conv_net.1} parent=1 // pred_region
      _
    $region101: #{temporal_conv_net.1} parent=1 // pred_fallthru
      _
    // Predicated region
    $region102: #{temporal_conv_net.1} parent=1 // pred_check
      _
    $region103: #{temporal_conv_net.1} parent=1 // pred_check_branch
      %156 = sbr.rel (0) target = $region105
    $region104: #{temporal_conv_net.1} parent=1 // pred_region
      _
    $region105: #{temporal_conv_net.1} parent=1 // pred_fallthru
      _
    // Predicated region
    $region106: #{temporal_conv_net.1} parent=1 // pred_check
      _
    $region107: #{temporal_conv_net.1} parent=1 // pred_check_branch
      %158 = sbr.rel (0) target = $region109
    $region108: #{temporal_conv_net.1} parent=1 // pred_region
      _
    $region109: #{temporal_conv_net.1} parent=1 // pred_fallthru
      _
    // Predicated region
    $region110: #{temporal_conv_net.1} parent=1 // pred_check
      _
    $region111: #{temporal_conv_net.1} parent=1 // pred_check_branch
      %160 = sbr.rel (0) target = $region113
    $region112: #{temporal_conv_net.1} parent=1 // pred_region
      _
    $region113: #{temporal_conv_net.1} parent=1 // pred_fallthru
      _
    // Predicated region
    $region114: #{temporal_conv_net.1} parent=1 // pred_check
      _
    $region115: #{temporal_conv_net.1} parent=1 // pred_check_branch
      %162 = sbr.rel (0) target = $region117
    $region116: #{temporal_conv_net.1} parent=1 // pred_region
      _
    $region117: #{temporal_conv_net.1} parent=1 // pred_fallthru
      _
    // Predicated region
    $region118: #{temporal_conv_net.1} parent=1 // pred_check
      _
    $region119: #{temporal_conv_net.1} parent=1 // pred_check_branch
      %164 = sbr.rel (0) target = $region121
    $region120: #{temporal_conv_net.1} parent=1 // pred_region
      _
    $region121: #{temporal_conv_net.1} parent=1 // pred_fallthru
      _
    // Predicated region
    $region122: #{temporal_conv_net.1} parent=1 // pred_check
      _
    $region123: #{temporal_conv_net.1} parent=1 // pred_check_branch
      %166 = sbr.rel (0) target = $region125
    $region124: #{temporal_conv_net.1} parent=1 // pred_region
      _
    $region125: #{temporal_conv_net.1} parent=1 // pred_fallthru
      _
    // Predicated region
    $region126: #{temporal_conv_net.1} parent=1 // pred_check
      _
    $region127: #{temporal_conv_net.1} parent=1 // pred_check_branch
      %168 = sbr.rel (0) target = $region129
    $region128: #{temporal_conv_net.1} parent=1 // pred_region
      _
    $region129: #{temporal_conv_net.1} parent=1 // pred_fallthru
      _
    // Predicated region
    $region130: #{temporal_conv_net.1} parent=1 // pred_check
      _
    $region131: #{temporal_conv_net.1} parent=1 // pred_check_branch
      %170 = sbr.rel (0) target = $region133
    $region132: #{temporal_conv_net.1} parent=1 // pred_region
      %172 = dma.done [#allocation3], 8192
    $region133: #{temporal_conv_net.1} parent=1 // pred_fallthru
      _
    // Predicated region
    $region134: #{temporal_conv_net.1} parent=1 // pred_check
      _
    $region135: #{temporal_conv_net.1} parent=1 // pred_check_branch
      %174 = sbr.rel (0) target = $region137
    $region136: #{temporal_conv_net.1} parent=1 // pred_region
      %176 = dma.done [#allocation5], 8192
    $region137: #{temporal_conv_net.1} parent=1 // pred_fallthru
      _
    // Predicated region
    $region138: #{temporal_conv_net.1} parent=1 // pred_check
      _
    $region139: #{temporal_conv_net.1} parent=1 // pred_check_branch
      %178 = sbr.rel (0) target = $region141
    $region140: #{temporal_conv_net.1} parent=1 // pred_region
      %180 = dma.done [#allocation5], 8192
    $region141: #{temporal_conv_net.1} parent=1 // pred_fallthru
      _
    %v181 = vld [vmem:[%s1] sm:$0xff]
    %v182 = vld [vmem:[%s11] sm:$0xff]
    %v183 = vld [vmem:[%s11 + $0x8] sm:$0xff]
    %v184 = vld [vmem:[%s13] sm:$0xff]
    %v185 = vld [vmem:[%s13 + $0x8] sm:$0xff]
    %v186 = vld [vmem:[%s15] sm:$0xff]
    %v187 = vld [vmem:[%s15 + $0x8] sm:$0xff]
    %v188 = vld [vmem:[%s19] sm:$0xff]
    %v189 = vld [vmem:[%s19 + $0x8] sm:$0xff]
    %v190 = vld [vmem:[%s21] sm:$0xff]
    %v191 = vld [vmem:[%s21 + $0x8] sm:$0xff]
    %v192 = vld [vmem:[%s23] sm:$0xff]
    %v193 = vld [vmem:[%s23 + $0x8] sm:$0xff]
    %s194 = scalar_lea.vmem %s9, 16
    %v195 = vld [vmem:[%s194] sm:$0xff]
    %v196 = vld [vmem:[%s194 + $0x8] sm:$0xff]
    %v197 = vld [vmem:[#allocation2] sm:$0xff]
    %v198 = vld [vmem:[#allocation2 + $0x8] sm:$0xff]
    %v199 = vld [vmem:[#allocation2 + $0x10] sm:$0xff]
    %v200 = vld [vmem:[#allocation2 + $0x18] sm:$0xff]
    %v201 = vld [vmem:[#allocation2 + $0x20] sm:$0xff]
    %v202 = vld [vmem:[#allocation2 + $0x28] sm:$0xff]
    %v203 = vld [vmem:[#allocation2 + $0x30] sm:$0xff]
    %v204 = vld [vmem:[#allocation2 + $0x38] sm:$0xff]
    %v205 = vld [vmem:[#allocation2 + $0x40] sm:$0xff]
    %v206 = vld [vmem:[#allocation2 + $0x48] sm:$0xff]
    %v207 = vld [vmem:[#allocation2 + $0x50] sm:$0xff]
    %v208 = vld [vmem:[#allocation2 + $0x58] sm:$0xff]
    %v209 = vld [vmem:[#allocation2 + $0x60] sm:$0xff]
    %v210 = vld [vmem:[#allocation2 + $0x68] sm:$0xff]
    %v211 = vld [vmem:[#allocation2 + $0x70] sm:$0xff]
    %v212 = vld [vmem:[#allocation2 + $0x78] sm:$0xff]
    %v213 = vld [vmem:[#allocation2 + $0x80] sm:$0xff]
    %v214 = vld [vmem:[#allocation2 + $0x88] sm:$0xff]
    %v215 = vld [vmem:[#allocation2 + $0x90] sm:$0xff]
    %v216 = vld [vmem:[#allocation2 + $0x98] sm:$0xff]
    %v217 = vld [vmem:[#allocation2 + $0xa0] sm:$0xff]
    %v218 = vld [vmem:[#allocation2 + $0xa8] sm:$0xff]
    %v219 = vld [vmem:[#allocation2 + $0xb0] sm:$0xff]
    %v220 = vld [vmem:[#allocation2 + $0xb8] sm:$0xff]
    %v221 = vld [vmem:[#allocation2 + $0xc0] sm:$0xff]
    %v222 = vld [vmem:[#allocation2 + $0xc8] sm:$0xff]
    %v223 = vld [vmem:[#allocation2 + $0xd0] sm:$0xff]
    %v224 = vld [vmem:[#allocation2 + $0xd8] sm:$0xff]
    %v225 = vld [vmem:[#allocation2 + $0xe0] sm:$0xff]
    %v226 = vld [vmem:[#allocation2 + $0xe8] sm:$0xff]
    %v227 = vld [vmem:[#allocation2 + $0xf0] sm:$0xff]
    %v228 = vld [vmem:[#allocation2 + $0xf8] sm:$0xff]
    %v229 = vld [vmem:[#allocation2 + $0x100] sm:$0xff]
    %v230 = vld [vmem:[#allocation2 + $0x108] sm:$0xff]
    %v231 = vld [vmem:[#allocation2 + $0x110] sm:$0xff]
    %v232 = vld [vmem:[#allocation2 + $0x118] sm:$0xff]
    %v233 = vld [vmem:[#allocation2 + $0x120] sm:$0xff]
    %v234 = vld [vmem:[#allocation2 + $0x128] sm:$0xff]
    %v235 = vld [vmem:[#allocation2 + $0x130] sm:$0xff]
    %v236 = vld [vmem:[#allocation2 + $0x138] sm:$0xff]
    %v237 = vld [vmem:[#allocation2 + $0x140] sm:$0xff]
    %v238 = vld [vmem:[#allocation2 + $0x148] sm:$0xff]
    %v239 = vld [vmem:[#allocation2 + $0x150] sm:$0xff]
    %v240 = vld [vmem:[#allocation2 + $0x158] sm:$0xff]
    %v241 = vld [vmem:[#allocation2 + $0x160] sm:$0xff]
    %v242 = vld [vmem:[#allocation2 + $0x168] sm:$0xff]
    %v243 = vld [vmem:[#allocation2 + $0x170] sm:$0xff]
    %v244 = vld [vmem:[#allocation2 + $0x178] sm:$0xff]
    %v245 = vld [vmem:[#allocation2 + $0x180] sm:$0xff]
    %v246 = vld [vmem:[#allocation2 + $0x188] sm:$0xff]
    %v247 = vld [vmem:[#allocation2 + $0x190] sm:$0xff]
    %v248 = vld [vmem:[#allocation2 + $0x198] sm:$0xff]
    %v249 = vld [vmem:[#allocation2 + $0x1a0] sm:$0xff]
    %v250 = vld [vmem:[#allocation2 + $0x1a8] sm:$0xff]
    %v251 = vld [vmem:[#allocation2 + $0x1b0] sm:$0xff]
    %v252 = vld [vmem:[#allocation2 + $0x1b8] sm:$0xff]
    %v253 = vld [vmem:[#allocation2 + $0x1c0] sm:$0xff]
    %v254 = vld [vmem:[#allocation2 + $0x1c8] sm:$0xff]
    %v255 = vld [vmem:[#allocation2 + $0x1d0] sm:$0xff]
    %v256 = vld [vmem:[#allocation2 + $0x1d8] sm:$0xff]
    %v257 = vld [vmem:[#allocation2 + $0x1e0] sm:$0xff]
    %v258 = vld [vmem:[#allocation2 + $0x1e8] sm:$0xff]
    %v259 = vld [vmem:[#allocation2 + $0x1f0] sm:$0xff]
    %v260 = vld [vmem:[#allocation2 + $0x1f8] sm:$0xff]
    %262 = vst [vmem:[#allocation1] ss:$2 sm:$0xff] %v181
    %v263 = vld.sshfl [vmem:[#allocation1] sm:$0xff pattern:$0x75316420]
    %v264 = vld.sshfl [vmem:[#allocation1 + $0x8] sm:$0xff pattern:$0x75316420]
    %267 = vmatpush.msra.mxu0 %v227
    %268 = vmatpush.msra.mxu0 %v225
    %269 = vmatpush.msra.mxu0 %v223
    %270 = vmatpush.msra.mxu0 %v221
    %271 = vmatpush.msra.mxu0 %v219
    %272 = vmatpush.msra.mxu0 %v217
    %273 = vmatpush.msra.mxu0 %v215
    %274 = vmatpush.msra.mxu0 %v213
    %275 = vmatpush.msra.mxu0 %v211
    %276 = vmatpush.msra.mxu0 %v209
    %277 = vmatpush.msra.mxu0 %v207
    %278 = vmatpush.msra.mxu0 %v205
    %279 = vmatpush.msra.mxu0 %v203
    %280 = vmatpush.msra.mxu0 %v201
    %281 = vmatpush.msra.mxu0 %v199
    %282 = vmatpush.msra.mxu0 %v197
    %283 = vmatmul.f32.gmra.mxu0 %v263
    %v284 = vpop.f32.mrf.mxu0
    %v285 = vadd.f32 0.0, %v284
    %286 = vdwg.mxu0
    %287 = vmatpush.msra.mxu0 %v259
    %288 = vmatpush.msra.mxu0 %v257
    %289 = vmatpush.msra.mxu0 %v255
    %290 = vmatpush.msra.mxu0 %v253
    %291 = vmatpush.msra.mxu0 %v251
    %292 = vmatpush.msra.mxu0 %v249
    %293 = vmatpush.msra.mxu0 %v247
    %294 = vmatpush.msra.mxu0 %v245
    %295 = vmatpush.msra.mxu0 %v243
    %296 = vmatpush.msra.mxu0 %v241
    %297 = vmatpush.msra.mxu0 %v239
    %298 = vmatpush.msra.mxu0 %v237
    %299 = vmatpush.msra.mxu0 %v235
    %300 = vmatpush.msra.mxu0 %v233
    %301 = vmatpush.msra.mxu0 %v231
    %302 = vmatpush.msra.mxu0 %v229
    %303 = vmatmul.f32.gmra.mxu0 %v264
    %v304 = vpop.f32.mrf.mxu0
    %v305 = vadd.f32 %v285, %v304
    %306 = vdwg.mxu0
    %307 = vmatpush.msra.mxu0 %v228
    %308 = vmatpush.msra.mxu0 %v226
    %309 = vmatpush.msra.mxu0 %v224
    %310 = vmatpush.msra.mxu0 %v222
    %311 = vmatpush.msra.mxu0 %v220
    %312 = vmatpush.msra.mxu0 %v218
    %313 = vmatpush.msra.mxu0 %v216
    %314 = vmatpush.msra.mxu0 %v214
    %315 = vmatpush.msra.mxu0 %v212
    %316 = vmatpush.msra.mxu0 %v210
    %317 = vmatpush.msra.mxu0 %v208
    %318 = vmatpush.msra.mxu0 %v206
    %319 = vmatpush.msra.mxu0 %v204
    %320 = vmatpush.msra.mxu0 %v202
    %321 = vmatpush.msra.mxu0 %v200
    %322 = vmatpush.msra.mxu0 %v198
    %323 = vmatmul.f32.gmra.mxu0 %v263
    %v324 = vpop.f32.mrf.mxu0
    %v325 = vadd.f32 0.0, %v324
    %326 = vdwg.mxu0
    %327 = vmatpush.msra.mxu0 %v260
    %328 = vmatpush.msra.mxu0 %v258
    %329 = vmatpush.msra.mxu0 %v256
    %330 = vmatpush.msra.mxu0 %v254
    %331 = vmatpush.msra.mxu0 %v252
    %332 = vmatpush.msra.mxu0 %v250
    %333 = vmatpush.msra.mxu0 %v248
    %334 = vmatpush.msra.mxu0 %v246
    %335 = vmatpush.msra.mxu0 %v244
    %336 = vmatpush.msra.mxu0 %v242
    %337 = vmatpush.msra.mxu0 %v240
    %338 = vmatpush.msra.mxu0 %v238
    %339 = vmatpush.msra.mxu0 %v236
    %340 = vmatpush.msra.mxu0 %v234
    %341 = vmatpush.msra.mxu0 %v232
    %342 = vmatpush.msra.mxu0 %v230
    %343 = vmatmul.f32.gmra.mxu0 %v264
    %v344 = vpop.f32.mrf.mxu0
    %v345 = vadd.f32 %v325, %v344
    %346 = vdwg.mxu0
    %v347 = vld [vmem:[%s9] sm:$0xff]
    %v348 = vld [vmem:[%s9 + $0x8] sm:$0xff]
    %vm349 = vcmask 31744
    %v351 = vsel %vm349, %v347, 0
    %v354 = vsel %vm349, %v348, 0
    %vm356 = vcmask 1043456
    %v358 = vsel %vm356, %v305, 0
    %v361 = vsel %vm356, %v345, 0
    %363 = vmatpush.msra.mxu0 0.0
    %364 = vmatpush.msra.mxu0 0.0
    %365 = vmatpush.msra.mxu0 0.0
    %366 = vmatpush.msra.mxu0 0.0
    %367 = vmatpush.msra.mxu0 0.0
    %368 = vmatpush.msra.mxu0 0.0
    %369 = vmatpush.msra.mxu0 0.0
    %370 = vmatpush.msra.mxu0 0.0
    %371 = vmatpush.msra.mxu0 0.0
    %372 = vmatpush.msra.mxu0 0.0
    %373 = vmatpush.msra.mxu0 0.0
    %374 = vmatpush.msra.mxu0 0.0
    %375 = vmatpush.msra.mxu0 0.0
    %376 = vmatpush.msra.mxu0 0.0
    %377 = vmatpush.msra.mxu0 0.0
    %378 = vmatpush.msra.mxu0 %v358
    %379 = vmatmul.f32.gmra.mxu0 %v351
    %v380 = vpop.f32.mrf.mxu0
    %v381 = vadd.f32 0.0, %v380
    %382 = vmatmul.f32.gmra.mxu0 %v354
    %v383 = vpop.f32.mrf.mxu0
    %v384 = vadd.f32 0.0, %v383
    %385 = vdwg.mxu0
    %386 = vmatpush.msra.mxu0 0.0
    %387 = vmatpush.msra.mxu0 0.0
    %388 = vmatpush.msra.mxu0 0.0
    %389 = vmatpush.msra.mxu0 0.0
    %390 = vmatpush.msra.mxu0 0.0
    %391 = vmatpush.msra.mxu0 0.0
    %392 = vmatpush.msra.mxu0 0.0
    %393 = vmatpush.msra.mxu0 0.0
    %394 = vmatpush.msra.mxu0 0.0
    %395 = vmatpush.msra.mxu0 0.0
    %396 = vmatpush.msra.mxu0 0.0
    %397 = vmatpush.msra.mxu0 0.0
    %398 = vmatpush.msra.mxu0 0.0
    %399 = vmatpush.msra.mxu0 0.0
    %400 = vmatpush.msra.mxu0 0.0
    %401 = vmatpush.msra.mxu0 %v361
    %402 = vmatmul.f32.gmra.mxu0 %v351
    %v403 = vpop.f32.mrf.mxu0
    %v404 = vadd.f32 0.0, %v403
    %405 = vmatmul.f32.gmra.mxu0 %v354
    %v406 = vpop.f32.mrf.mxu0
    %v407 = vadd.f32 0.0, %v406
    %408 = vdwg.mxu0
    %409 = vst [vmem:[#allocation1] ss:$2 sm:$0xff] %v181
    %v410 = vld.sshfl [vmem:[#allocation1] sm:$0xff pattern:$0x75316420]
    %v411 = vld.sshfl [vmem:[#allocation1 + $0x8] sm:$0xff pattern:$0x75316420]
    %v413 = vsel %vm349, %v195, 0
    %v416 = vsel %vm349, %v196, 0
    %v418 = vsel %vm356, %v410, 0
    %v420 = vsel %vm356, %v411, 0
    %422 = vmatpush.msra.mxu0 0.0
    %423 = vmatpush.msra.mxu0 0.0
    %424 = vmatpush.msra.mxu0 0.0
    %425 = vmatpush.msra.mxu0 0.0
    %426 = vmatpush.msra.mxu0 0.0
    %427 = vmatpush.msra.mxu0 0.0
    %428 = vmatpush.msra.mxu0 0.0
    %429 = vmatpush.msra.mxu0 0.0
    %430 = vmatpush.msra.mxu0 0.0
    %431 = vmatpush.msra.mxu0 0.0
    %432 = vmatpush.msra.mxu0 0.0
    %433 = vmatpush.msra.mxu0 0.0
    %434 = vmatpush.msra.mxu0 0.0
    %435 = vmatpush.msra.mxu0 0.0
    %436 = vmatpush.msra.mxu0 0.0
    %437 = vmatpush.msra.mxu0 %v418
    %438 = vmatmul.f32.gmra.mxu0 %v413
    %v439 = vpop.f32.mrf.mxu0
    %v440 = vadd.f32 %v381, %v439
    %441 = vmatmul.f32.gmra.mxu0 %v416
    %v442 = vpop.f32.mrf.mxu0
    %v443 = vadd.f32 %v384, %v442
    %444 = vdwg.mxu0
    %445 = vmatpush.msra.mxu0 0.0
    %446 = vmatpush.msra.mxu0 0.0
    %447 = vmatpush.msra.mxu0 0.0
    %448 = vmatpush.msra.mxu0 0.0
    %449 = vmatpush.msra.mxu0 0.0
    %450 = vmatpush.msra.mxu0 0.0
    %451 = vmatpush.msra.mxu0 0.0
    %452 = vmatpush.msra.mxu0 0.0
    %453 = vmatpush.msra.mxu0 0.0
    %454 = vmatpush.msra.mxu0 0.0
    %455 = vmatpush.msra.mxu0 0.0
    %456 = vmatpush.msra.mxu0 0.0
    %457 = vmatpush.msra.mxu0 0.0
    %458 = vmatpush.msra.mxu0 0.0
    %459 = vmatpush.msra.mxu0 0.0
    %460 = vmatpush.msra.mxu0 %v420
    %461 = vmatmul.f32.gmra.mxu0 %v413
    %v462 = vpop.f32.mrf.mxu0
    %v463 = vadd.f32 %v404, %v462
    %464 = vmatmul.f32.gmra.mxu0 %v416
    %v465 = vpop.f32.mrf.mxu0
    %v466 = vadd.f32 %v407, %v465
    %467 = vdwg.mxu0
    %469 = vset.pattern.permute.xlu0 0
    %470 = vperm.xlu0 %469, %v182
    %v471 = vpop.permute.xlu0 %470
    %474 = vset.pattern.permute.xlu0 0
    %475 = vperm.xlu0 %474, %v183
    %v476 = vpop.permute.xlu0 %475
    %v478 = vadd.f32 %v440, %v471
    %v479 = vadd.f32 %v463, %v471
    %v480 = vadd.f32 %v443, %v476
    %v481 = vadd.f32 %v466, %v476
    %v482 = vmax.f32 %v478, 0.0
    %v483 = vmax.f32 %v479, 0.0
    %v484 = vmax.f32 %v480, 0.0
    %v485 = vmax.f32 %v481, 0.0
    %v486 = vadd.f32 %v482, %v483
    %487 = vadd.xlane.f32.xlu0 %v486
    %v488 = vpop.xlane.xlu0 %487
    %v489 = vadd.f32 %v484, %v485
    %490 = vadd.xlane.f32.xlu0 %v489
    %v491 = vpop.xlane.xlu0 %490
    %v492 = vmul.f32 %v488, 0.00390625
    %v493 = vmul.f32 %v491, 0.00390625
    %v494 = vsub.f32 %v482, %v492
    %v495 = vsub.f32 %v483, %v492
    %v496 = vsub.f32 %v484, %v493
    %v497 = vsub.f32 %v485, %v493
    %v498 = vmul.f32 %v494, %v494
    %v499 = vmul.f32 %v495, %v495
    %v500 = vmul.f32 %v496, %v496
    %v501 = vmul.f32 %v497, %v497
    %v502 = vadd.f32 %v498, %v499
    %503 = vadd.xlane.f32.xlu0 %v502
    %v504 = vpop.xlane.xlu0 %503
    %v505 = vadd.f32 %v500, %v501
    %506 = vadd.xlane.f32.xlu0 %v505
    %v507 = vpop.xlane.xlu0 %506
    %v508 = vmul.f32 %v504, 0.00390625
    %v509 = vmul.f32 %v507, 0.00390625
    %v510 = vadd.f32 %v508, 1e-05
    %v511 = vadd.f32 %v509, 1e-05
    %v512 = vrsqrt.pop %v510
    %v513 = vmul.f32 %v512, %v510
    %v514 = vmul.f32 %v513, %v512
    %v515 = vmul.f32 0.5, %v514
    %v516 = vsub.f32 1.5, %v515
    %v517 = vmul.f32 %v512, %v516
    %vm518 = vweird.f32 %v510
    %vm519 = vweird.f32 %v512
    %vm520 = vmor %vm518, %vm519
    %v521 = vsel %vm520, %v512, %v517
    %v522 = vrsqrt.pop %v511
    %v523 = vmul.f32 %v522, %v511
    %v524 = vmul.f32 %v523, %v522
    %v525 = vmul.f32 0.5, %v524
    %v526 = vsub.f32 1.5, %v525
    %v527 = vmul.f32 %v522, %v526
    %vm528 = vweird.f32 %v511
    %vm529 = vweird.f32 %v522
    %vm530 = vmor %vm528, %vm529
    %v531 = vsel %vm530, %v522, %v527
    %v532 = vmul.f32 %v494, %v521
    %v533 = vmul.f32 %v495, %v521
    %v534 = vmul.f32 %v496, %v531
    %v535 = vmul.f32 %v497, %v531
    %537 = vset.pattern.permute.xlu0 0
    %538 = vperm.xlu0 %537, %v184
    %v539 = vpop.permute.xlu0 %538
    %542 = vset.pattern.permute.xlu0 0
    %543 = vperm.xlu0 %542, %v185
    %v544 = vpop.permute.xlu0 %543
    %v546 = vmul.f32 %v532, %v539
    %v547 = vmul.f32 %v533, %v539
    %v548 = vmul.f32 %v534, %v544
    %v549 = vmul.f32 %v535, %v544
    %551 = vset.pattern.permute.xlu0 0
    %552 = vperm.xlu0 %551, %v186
    %v553 = vpop.permute.xlu0 %552
    %556 = vset.pattern.permute.xlu0 0
    %557 = vperm.xlu0 %556, %v187
    %v558 = vpop.permute.xlu0 %557
    %v560 = vadd.f32 %v546, %v553
    %v561 = vadd.f32 %v547, %v553
    %v562 = vadd.f32 %v548, %v558
    %v563 = vadd.f32 %v549, %v558
    %s564 = scalar_lea.vmem %s17, 16
    %v565 = vld [vmem:[%s564] sm:$0xff]
    %v566 = vld [vmem:[%s564 + $0x8] sm:$0xff]
    %567 = vmatpush.msra.mxu0 %v227
    %568 = vmatpush.msra.mxu0 %v225
    %569 = vmatpush.msra.mxu0 %v223
    %570 = vmatpush.msra.mxu0 %v221
    %571 = vmatpush.msra.mxu0 %v219
    %572 = vmatpush.msra.mxu0 %v217
    %573 = vmatpush.msra.mxu0 %v215
    %574 = vmatpush.msra.mxu0 %v213
    %575 = vmatpush.msra.mxu0 %v211
    %576 = vmatpush.msra.mxu0 %v209
    %577 = vmatpush.msra.mxu0 %v207
    %578 = vmatpush.msra.mxu0 %v205
    %579 = vmatpush.msra.mxu0 %v203
    %580 = vmatpush.msra.mxu0 %v201
    %581 = vmatpush.msra.mxu0 %v199
    %582 = vmatpush.msra.mxu0 %v197
    %583 = vmatmul.f32.gmra.mxu0 %v560
    %v584 = vpop.f32.mrf.mxu0
    %v585 = vadd.f32 0.0, %v584
    %586 = vmatmul.f32.gmra.mxu0 %v562
    %v587 = vpop.f32.mrf.mxu0
    %v588 = vadd.f32 0.0, %v587
    %589 = vdwg.mxu0
    %590 = vmatpush.msra.mxu0 %v259
    %591 = vmatpush.msra.mxu0 %v257
    %592 = vmatpush.msra.mxu0 %v255
    %593 = vmatpush.msra.mxu0 %v253
    %594 = vmatpush.msra.mxu0 %v251
    %595 = vmatpush.msra.mxu0 %v249
    %596 = vmatpush.msra.mxu0 %v247
    %597 = vmatpush.msra.mxu0 %v245
    %598 = vmatpush.msra.mxu0 %v243
    %599 = vmatpush.msra.mxu0 %v241
    %600 = vmatpush.msra.mxu0 %v239
    %601 = vmatpush.msra.mxu0 %v237
    %602 = vmatpush.msra.mxu0 %v235
    %603 = vmatpush.msra.mxu0 %v233
    %604 = vmatpush.msra.mxu0 %v231
    %605 = vmatpush.msra.mxu0 %v229
    %606 = vmatmul.f32.gmra.mxu0 %v561
    %v607 = vpop.f32.mrf.mxu0
    %v608 = vadd.f32 %v585, %v607
    %609 = vmatmul.f32.gmra.mxu0 %v563
    %v610 = vpop.f32.mrf.mxu0
    %v611 = vadd.f32 %v588, %v610
    %612 = vdwg.mxu0
    %613 = vmatpush.msra.mxu0 %v228
    %614 = vmatpush.msra.mxu0 %v226
    %615 = vmatpush.msra.mxu0 %v224
    %616 = vmatpush.msra.mxu0 %v222
    %617 = vmatpush.msra.mxu0 %v220
    %618 = vmatpush.msra.mxu0 %v218
    %619 = vmatpush.msra.mxu0 %v216
    %620 = vmatpush.msra.mxu0 %v214
    %621 = vmatpush.msra.mxu0 %v212
    %622 = vmatpush.msra.mxu0 %v210
    %623 = vmatpush.msra.mxu0 %v208
    %624 = vmatpush.msra.mxu0 %v206
    %625 = vmatpush.msra.mxu0 %v204
    %626 = vmatpush.msra.mxu0 %v202
    %627 = vmatpush.msra.mxu0 %v200
    %628 = vmatpush.msra.mxu0 %v198
    %629 = vmatmul.f32.gmra.mxu0 %v560
    %v630 = vpop.f32.mrf.mxu0
    %v631 = vadd.f32 0.0, %v630
    %632 = vmatmul.f32.gmra.mxu0 %v562
    %v633 = vpop.f32.mrf.mxu0
    %v634 = vadd.f32 0.0, %v633
    %635 = vdwg.mxu0
    %636 = vmatpush.msra.mxu0 %v260
    %637 = vmatpush.msra.mxu0 %v258
    %638 = vmatpush.msra.mxu0 %v256
    %639 = vmatpush.msra.mxu0 %v254
    %640 = vmatpush.msra.mxu0 %v252
    %641 = vmatpush.msra.mxu0 %v250
    %642 = vmatpush.msra.mxu0 %v248
    %643 = vmatpush.msra.mxu0 %v246
    %644 = vmatpush.msra.mxu0 %v244
    %645 = vmatpush.msra.mxu0 %v242
    %646 = vmatpush.msra.mxu0 %v240
    %647 = vmatpush.msra.mxu0 %v238
    %648 = vmatpush.msra.mxu0 %v236
    %649 = vmatpush.msra.mxu0 %v234
    %650 = vmatpush.msra.mxu0 %v232
    %651 = vmatpush.msra.mxu0 %v230
    %652 = vmatmul.f32.gmra.mxu0 %v561
    %v653 = vpop.f32.mrf.mxu0
    %v654 = vadd.f32 %v631, %v653
    %655 = vmatmul.f32.gmra.mxu0 %v563
    %v656 = vpop.f32.mrf.mxu0
    %v657 = vadd.f32 %v634, %v656
    %658 = vdwg.mxu0
    %v659 = vld [vmem:[%s17] sm:$0xff]
    %v660 = vld [vmem:[%s17 + $0x8] sm:$0xff]
    %vm661 = vcmask 130048
    %v663 = vsel %vm661, %v659, 0
    %v666 = vsel %vm661, %v660, 0
    %668 = vmatpush.msra.mxu0 0.0
    %669 = vmatpush.msra.mxu0 0.0
    %670 = vmatpush.msra.mxu0 0.0
    %671 = vmatpush.msra.mxu0 0.0
    %672 = vmatpush.msra.mxu0 0.0
    %673 = vmatpush.msra.mxu0 0.0
    %674 = vmatpush.msra.mxu0 0.0
    %675 = vmatpush.msra.mxu0 0.0
    %676 = vmatpush.msra.mxu0 0.0
    %677 = vmatpush.msra.mxu0 0.0
    %678 = vmatpush.msra.mxu0 0.0
    %679 = vmatpush.msra.mxu0 0.0
    %680 = vmatpush.msra.mxu0 0.0
    %681 = vmatpush.msra.mxu0 0.0
    %682 = vmatpush.msra.mxu0 %v611
    %683 = vmatpush.msra.mxu0 %v608
    %684 = vmatmul.f32.gmra.mxu0 %v663
    %v685 = vpop.f32.mrf.mxu0
    %v686 = vadd.f32 0.0, %v685
    %687 = vmatmul.f32.gmra.mxu0 %v666
    %v688 = vpop.f32.mrf.mxu0
    %v689 = vadd.f32 0.0, %v688
    %690 = vdwg.mxu0
    %691 = vmatpush.msra.mxu0 0.0
    %692 = vmatpush.msra.mxu0 0.0
    %693 = vmatpush.msra.mxu0 0.0
    %694 = vmatpush.msra.mxu0 0.0
    %695 = vmatpush.msra.mxu0 0.0
    %696 = vmatpush.msra.mxu0 0.0
    %697 = vmatpush.msra.mxu0 0.0
    %698 = vmatpush.msra.mxu0 0.0
    %699 = vmatpush.msra.mxu0 0.0
    %700 = vmatpush.msra.mxu0 0.0
    %701 = vmatpush.msra.mxu0 0.0
    %702 = vmatpush.msra.mxu0 0.0
    %703 = vmatpush.msra.mxu0 0.0
    %704 = vmatpush.msra.mxu0 0.0
    %705 = vmatpush.msra.mxu0 %v657
    %706 = vmatpush.msra.mxu0 %v654
    %707 = vmatmul.f32.gmra.mxu0 %v663
    %v708 = vpop.f32.mrf.mxu0
    %v709 = vadd.f32 0.0, %v708
    %710 = vmatmul.f32.gmra.mxu0 %v666
    %v711 = vpop.f32.mrf.mxu0
    %v712 = vadd.f32 0.0, %v711
    %713 = vdwg.mxu0
    %v715 = vsel %vm661, %v565, 0
    %v718 = vsel %vm661, %v566, 0
    %720 = vmatpush.msra.mxu0 0.0
    %721 = vmatpush.msra.mxu0 0.0
    %722 = vmatpush.msra.mxu0 0.0
    %723 = vmatpush.msra.mxu0 0.0
    %724 = vmatpush.msra.mxu0 0.0
    %725 = vmatpush.msra.mxu0 0.0
    %726 = vmatpush.msra.mxu0 0.0
    %727 = vmatpush.msra.mxu0 0.0
    %728 = vmatpush.msra.mxu0 0.0
    %729 = vmatpush.msra.mxu0 0.0
    %730 = vmatpush.msra.mxu0 0.0
    %731 = vmatpush.msra.mxu0 0.0
    %732 = vmatpush.msra.mxu0 0.0
    %733 = vmatpush.msra.mxu0 0.0
    %734 = vmatpush.msra.mxu0 %v562
    %735 = vmatpush.msra.mxu0 %v560
    %736 = vmatmul.f32.gmra.mxu0 %v715
    %v737 = vpop.f32.mrf.mxu0
    %v738 = vadd.f32 %v686, %v737
    %739 = vmatmul.f32.gmra.mxu0 %v718
    %v740 = vpop.f32.mrf.mxu0
    %v741 = vadd.f32 %v689, %v740
    %742 = vdwg.mxu0
    %743 = vmatpush.msra.mxu0 0.0
    %744 = vmatpush.msra.mxu0 0.0
    %745 = vmatpush.msra.mxu0 0.0
    %746 = vmatpush.msra.mxu0 0.0
    %747 = vmatpush.msra.mxu0 0.0
    %748 = vmatpush.msra.mxu0 0.0
    %749 = vmatpush.msra.mxu0 0.0
    %750 = vmatpush.msra.mxu0 0.0
    %751 = vmatpush.msra.mxu0 0.0
    %752 = vmatpush.msra.mxu0 0.0
    %753 = vmatpush.msra.mxu0 0.0
    %754 = vmatpush.msra.mxu0 0.0
    %755 = vmatpush.msra.mxu0 0.0
    %756 = vmatpush.msra.mxu0 0.0
    %757 = vmatpush.msra.mxu0 %v563
    %758 = vmatpush.msra.mxu0 %v561
    %759 = vmatmul.f32.gmra.mxu0 %v715
    %v760 = vpop.f32.mrf.mxu0
    %v761 = vadd.f32 %v709, %v760
    %762 = vmatmul.f32.gmra.mxu0 %v718
    %v763 = vpop.f32.mrf.mxu0
    %v764 = vadd.f32 %v712, %v763
    %765 = vdwg.mxu0
    %767 = vset.pattern.permute.xlu0 0
    %768 = vperm.xlu0 %767, %v188
    %v769 = vpop.permute.xlu0 %768
    %772 = vset.pattern.permute.xlu0 0
    %773 = vperm.xlu0 %772, %v189
    %v774 = vpop.permute.xlu0 %773
    %v776 = vadd.f32 %v738, %v769
    %v777 = vadd.f32 %v761, %v769
    %v778 = vadd.f32 %v741, %v774
    %v779 = vadd.f32 %v764, %v774
    %v780 = vmax.f32 %v776, 0.0
    %v781 = vmax.f32 %v777, 0.0
    %v782 = vmax.f32 %v778, 0.0
    %v783 = vmax.f32 %v779, 0.0
    %v784 = vadd.f32 %v780, %v781
    %785 = vadd.xlane.f32.xlu0 %v784
    %v786 = vpop.xlane.xlu0 %785
    %v787 = vadd.f32 %v782, %v783
    %788 = vadd.xlane.f32.xlu0 %v787
    %v789 = vpop.xlane.xlu0 %788
    %v790 = vmul.f32 %v786, 0.00390625
    %v791 = vmul.f32 %v789, 0.00390625
    %v792 = vsub.f32 %v780, %v790
    %v793 = vsub.f32 %v781, %v790
    %v794 = vsub.f32 %v782, %v791
    %v795 = vsub.f32 %v783, %v791
    %v796 = vmul.f32 %v792, %v792
    %v797 = vmul.f32 %v793, %v793
    %v798 = vmul.f32 %v794, %v794
    %v799 = vmul.f32 %v795, %v795
    %v800 = vadd.f32 %v796, %v797
    %801 = vadd.xlane.f32.xlu0 %v800
    %v802 = vpop.xlane.xlu0 %801
    %v803 = vadd.f32 %v798, %v799
    %804 = vadd.xlane.f32.xlu0 %v803
    %v805 = vpop.xlane.xlu0 %804
    %v806 = vmul.f32 %v802, 0.00390625
    %v807 = vmul.f32 %v805, 0.00390625
    %v808 = vadd.f32 %v806, 1e-05
    %v809 = vadd.f32 %v807, 1e-05
    %v810 = vrsqrt.pop %v808
    %v811 = vmul.f32 %v810, %v808
    %v812 = vmul.f32 %v811, %v810
    %v813 = vmul.f32 0.5, %v812
    %v814 = vsub.f32 1.5, %v813
    %v815 = vmul.f32 %v810, %v814
    %vm816 = vweird.f32 %v808
    %vm817 = vweird.f32 %v810
    %vm818 = vmor %vm816, %vm817
    %v819 = vsel %vm818, %v810, %v815
    %v820 = vrsqrt.pop %v809
    %v821 = vmul.f32 %v820, %v809
    %v822 = vmul.f32 %v821, %v820
    %v823 = vmul.f32 0.5, %v822
    %v824 = vsub.f32 1.5, %v823
    %v825 = vmul.f32 %v820, %v824
    %vm826 = vweird.f32 %v809
    %vm827 = vweird.f32 %v820
    %vm828 = vmor %vm826, %vm827
    %v829 = vsel %vm828, %v820, %v825
    %v830 = vmul.f32 %v792, %v819
    %v831 = vmul.f32 %v793, %v819
    %v832 = vmul.f32 %v794, %v829
    %v833 = vmul.f32 %v795, %v829
    %835 = vset.pattern.permute.xlu0 0
    %836 = vperm.xlu0 %835, %v190
    %v837 = vpop.permute.xlu0 %836
    %840 = vset.pattern.permute.xlu0 0
    %841 = vperm.xlu0 %840, %v191
    %v842 = vpop.permute.xlu0 %841
    %v844 = vmul.f32 %v830, %v837
    %v845 = vmul.f32 %v831, %v837
    %v846 = vmul.f32 %v832, %v842
    %v847 = vmul.f32 %v833, %v842
    %849 = vset.pattern.permute.xlu0 0
    %850 = vperm.xlu0 %849, %v192
    %v851 = vpop.permute.xlu0 %850
    %854 = vset.pattern.permute.xlu0 0
    %855 = vperm.xlu0 %854, %v193
    %v856 = vpop.permute.xlu0 %855
    %v858 = vadd.f32 %v844, %v851
    %v859 = vadd.f32 %v845, %v851
    %v860 = vadd.f32 %v846, %v856
    %v861 = vadd.f32 %v847, %v856
    %v862 = vld [vmem:[%s25] sm:$0xff]
    %v863 = vld [vmem:[%s25 + $0x8] sm:$0xff]
    %v864 = vld [vmem:[%s27] sm:$0xff]
    %v865 = vld [vmem:[%s27 + $0x8] sm:$0xff]
    %867 = vset.pattern.permute.xlu0 0
    %868 = vperm.xlu0 %867, %v864
    %v869 = vpop.permute.xlu0 %868
    %872 = vset.pattern.permute.xlu0 0
    %873 = vperm.xlu0 %872, %v865
    %v874 = vpop.permute.xlu0 %873
    %876 = vst [vmem:[#allocation1] ss:$2 sm:$0xff] %v181
    %v877 = vld.sshfl [vmem:[#allocation1] sm:$0xff pattern:$0x75316420]
    %v878 = vld.sshfl [vmem:[#allocation1 + $0x8] sm:$0xff pattern:$0x75316420]
    %v880 = vsel %vm349, %v862, 0
    %v883 = vsel %vm349, %v863, 0
    %v885 = vsel %vm356, %v877, 0
    %v887 = vsel %vm356, %v878, 0
    %889 = vmatpush.msra.mxu0 0.0
    %890 = vmatpush.msra.mxu0 0.0
    %891 = vmatpush.msra.mxu0 0.0
    %892 = vmatpush.msra.mxu0 0.0
    %893 = vmatpush.msra.mxu0 0.0
    %894 = vmatpush.msra.mxu0 0.0
    %895 = vmatpush.msra.mxu0 0.0
    %896 = vmatpush.msra.mxu0 0.0
    %897 = vmatpush.msra.mxu0 0.0
    %898 = vmatpush.msra.mxu0 0.0
    %899 = vmatpush.msra.mxu0 0.0
    %900 = vmatpush.msra.mxu0 0.0
    %901 = vmatpush.msra.mxu0 0.0
    %902 = vmatpush.msra.mxu0 0.0
    %903 = vmatpush.msra.mxu0 0.0
    %904 = vmatpush.msra.mxu0 %v885
    %905 = vmatmul.f32.gmra.mxu0 %v880
    %v906 = vpop.f32.mrf.mxu0
    %v907 = vadd.f32 %v869, %v906
    %908 = vmatmul.f32.gmra.mxu0 %v883
    %v909 = vpop.f32.mrf.mxu0
    %v910 = vadd.f32 %v874, %v909
    %911 = vdwg.mxu0
    %912 = vmatpush.msra.mxu0 0.0
    %913 = vmatpush.msra.mxu0 0.0
    %914 = vmatpush.msra.mxu0 0.0
    %915 = vmatpush.msra.mxu0 0.0
    %916 = vmatpush.msra.mxu0 0.0
    %917 = vmatpush.msra.mxu0 0.0
    %918 = vmatpush.msra.mxu0 0.0
    %919 = vmatpush.msra.mxu0 0.0
    %920 = vmatpush.msra.mxu0 0.0
    %921 = vmatpush.msra.mxu0 0.0
    %922 = vmatpush.msra.mxu0 0.0
    %923 = vmatpush.msra.mxu0 0.0
    %924 = vmatpush.msra.mxu0 0.0
    %925 = vmatpush.msra.mxu0 0.0
    %926 = vmatpush.msra.mxu0 0.0
    %927 = vmatpush.msra.mxu0 %v887
    %928 = vmatmul.f32.gmra.mxu0 %v880
    %v929 = vpop.f32.mrf.mxu0
    %v930 = vadd.f32 %v869, %v929
    %931 = vmatmul.f32.gmra.mxu0 %v883
    %v932 = vpop.f32.mrf.mxu0
    %v933 = vadd.f32 %v874, %v932
    %934 = vdwg.mxu0
    %v935 = vadd.f32 %v858, %v907
    %v936 = vadd.f32 %v859, %v930
    %v937 = vadd.f32 %v860, %v910
    %v938 = vadd.f32 %v861, %v933
    %v939 = vmax.f32 %v935, 0.0
    %v940 = vmax.f32 %v936, 0.0
    %v941 = vmax.f32 %v937, 0.0
    %v942 = vmax.f32 %v938, 0.0
    %v943 = vld [vmem:[%s31] sm:$0xff]
    %v944 = vld [vmem:[%s31 + $0x8] sm:$0xff]
    %v945 = vld [vmem:[%s33] sm:$0xff]
    %v946 = vld [vmem:[%s33 + $0x8] sm:$0xff]
    %v947 = vld [vmem:[%s35] sm:$0xff]
    %v948 = vld [vmem:[%s35 + $0x8] sm:$0xff]
    %v949 = vld [vmem:[%s39] sm:$0xff]
    %v950 = vld [vmem:[%s39 + $0x8] sm:$0xff]
    %v951 = vld [vmem:[%s41] sm:$0xff]
    %v952 = vld [vmem:[%s41 + $0x8] sm:$0xff]
    %v953 = vld [vmem:[%s43] sm:$0xff]
    %v954 = vld [vmem:[%s43 + $0x8] sm:$0xff]
    %s955 = scalar_lea.vmem %s29, 16
    %v956 = vld [vmem:[%s955] sm:$0xff]
    %v957 = vld [vmem:[%s955 + $0x8] sm:$0xff]
    %v958 = vld [vmem:[#allocation4] sm:$0xff]
    %v959 = vld [vmem:[#allocation4 + $0x8] sm:$0xff]
    %v960 = vld [vmem:[#allocation4 + $0x10] sm:$0xff]
    %v961 = vld [vmem:[#allocation4 + $0x18] sm:$0xff]
    %v962 = vld [vmem:[#allocation4 + $0x20] sm:$0xff]
    %v963 = vld [vmem:[#allocation4 + $0x28] sm:$0xff]
    %v964 = vld [vmem:[#allocation4 + $0x30] sm:$0xff]
    %v965 = vld [vmem:[#allocation4 + $0x38] sm:$0xff]
    %v966 = vld [vmem:[#allocation4 + $0x40] sm:$0xff]
    %v967 = vld [vmem:[#allocation4 + $0x48] sm:$0xff]
    %v968 = vld [vmem:[#allocation4 + $0x50] sm:$0xff]
    %v969 = vld [vmem:[#allocation4 + $0x58] sm:$0xff]
    %v970 = vld [vmem:[#allocation4 + $0x60] sm:$0xff]
    %v971 = vld [vmem:[#allocation4 + $0x68] sm:$0xff]
    %v972 = vld [vmem:[#allocation4 + $0x70] sm:$0xff]
    %v973 = vld [vmem:[#allocation4 + $0x78] sm:$0xff]
    %v974 = vld [vmem:[#allocation4 + $0x80] sm:$0xff]
    %v975 = vld [vmem:[#allocation4 + $0x88] sm:$0xff]
    %v976 = vld [vmem:[#allocation4 + $0x90] sm:$0xff]
    %v977 = vld [vmem:[#allocation4 + $0x98] sm:$0xff]
    %v978 = vld [vmem:[#allocation4 + $0xa0] sm:$0xff]
    %v979 = vld [vmem:[#allocation4 + $0xa8] sm:$0xff]
    %v980 = vld [vmem:[#allocation4 + $0xb0] sm:$0xff]
    %v981 = vld [vmem:[#allocation4 + $0xb8] sm:$0xff]
    %v982 = vld [vmem:[#allocation4 + $0xc0] sm:$0xff]
    %v983 = vld [vmem:[#allocation4 + $0xc8] sm:$0xff]
    %v984 = vld [vmem:[#allocation4 + $0xd0] sm:$0xff]
    %v985 = vld [vmem:[#allocation4 + $0xd8] sm:$0xff]
    %v986 = vld [vmem:[#allocation4 + $0xe0] sm:$0xff]
    %v987 = vld [vmem:[#allocation4 + $0xe8] sm:$0xff]
    %v988 = vld [vmem:[#allocation4 + $0xf0] sm:$0xff]
    %v989 = vld [vmem:[#allocation4 + $0xf8] sm:$0xff]
    %v990 = vld [vmem:[#allocation4 + $0x100] sm:$0xff]
    %v991 = vld [vmem:[#allocation4 + $0x108] sm:$0xff]
    %v992 = vld [vmem:[#allocation4 + $0x110] sm:$0xff]
    %v993 = vld [vmem:[#allocation4 + $0x118] sm:$0xff]
    %v994 = vld [vmem:[#allocation4 + $0x120] sm:$0xff]
    %v995 = vld [vmem:[#allocation4 + $0x128] sm:$0xff]
    %v996 = vld [vmem:[#allocation4 + $0x130] sm:$0xff]
    %v997 = vld [vmem:[#allocation4 + $0x138] sm:$0xff]
    %v998 = vld [vmem:[#allocation4 + $0x140] sm:$0xff]
    %v999 = vld [vmem:[#allocation4 + $0x148] sm:$0xff]
    %v1000 = vld [vmem:[#allocation4 + $0x150] sm:$0xff]
    %v1001 = vld [vmem:[#allocation4 + $0x158] sm:$0xff]
    %v1002 = vld [vmem:[#allocation4 + $0x160] sm:$0xff]
    %v1003 = vld [vmem:[#allocation4 + $0x168] sm:$0xff]
    %v1004 = vld [vmem:[#allocation4 + $0x170] sm:$0xff]
    %v1005 = vld [vmem:[#allocation4 + $0x178] sm:$0xff]
    %v1006 = vld [vmem:[#allocation4 + $0x180] sm:$0xff]
    %v1007 = vld [vmem:[#allocation4 + $0x188] sm:$0xff]
    %v1008 = vld [vmem:[#allocation4 + $0x190] sm:$0xff]
    %v1009 = vld [vmem:[#allocation4 + $0x198] sm:$0xff]
    %v1010 = vld [vmem:[#allocation4 + $0x1a0] sm:$0xff]
    %v1011 = vld [vmem:[#allocation4 + $0x1a8] sm:$0xff]
    %v1012 = vld [vmem:[#allocation4 + $0x1b0] sm:$0xff]
    %v1013 = vld [vmem:[#allocation4 + $0x1b8] sm:$0xff]
    %v1014 = vld [vmem:[#allocation4 + $0x1c0] sm:$0xff]
    %v1015 = vld [vmem:[#allocation4 + $0x1c8] sm:$0xff]
    %v1016 = vld [vmem:[#allocation4 + $0x1d0] sm:$0xff]
    %v1017 = vld [vmem:[#allocation4 + $0x1d8] sm:$0xff]
    %v1018 = vld [vmem:[#allocation4 + $0x1e0] sm:$0xff]
    %v1019 = vld [vmem:[#allocation4 + $0x1e8] sm:$0xff]
    %v1020 = vld [vmem:[#allocation4 + $0x1f0] sm:$0xff]
    %v1021 = vld [vmem:[#allocation4 + $0x1f8] sm:$0xff]
    %1022 = vmatpush.msra.mxu0 %v988
    %1023 = vmatpush.msra.mxu0 %v986
    %1024 = vmatpush.msra.mxu0 %v984
    %1025 = vmatpush.msra.mxu0 %v982
    %1026 = vmatpush.msra.mxu0 %v980
    %1027 = vmatpush.msra.mxu0 %v978
    %1028 = vmatpush.msra.mxu0 %v976
    %1029 = vmatpush.msra.mxu0 %v974
    %1030 = vmatpush.msra.mxu0 %v972
    %1031 = vmatpush.msra.mxu0 %v970
    %1032 = vmatpush.msra.mxu0 %v968
    %1033 = vmatpush.msra.mxu0 %v966
    %1034 = vmatpush.msra.mxu0 %v964
    %1035 = vmatpush.msra.mxu0 %v962
    %1036 = vmatpush.msra.mxu0 %v960
    %1037 = vmatpush.msra.mxu0 %v958
    %1038 = vmatmul.f32.gmra.mxu0 %v939
    %v1039 = vpop.f32.mrf.mxu0
    %v1040 = vadd.f32 0.0, %v1039
    %1041 = vmatmul.f32.gmra.mxu0 %v941
    %v1042 = vpop.f32.mrf.mxu0
    %v1043 = vadd.f32 0.0, %v1042
    %1044 = vdwg.mxu0
    %1045 = vmatpush.msra.mxu0 %v1020
    %1046 = vmatpush.msra.mxu0 %v1018
    %1047 = vmatpush.msra.mxu0 %v1016
    %1048 = vmatpush.msra.mxu0 %v1014
    %1049 = vmatpush.msra.mxu0 %v1012
    %1050 = vmatpush.msra.mxu0 %v1010
    %1051 = vmatpush.msra.mxu0 %v1008
    %1052 = vmatpush.msra.mxu0 %v1006
    %1053 = vmatpush.msra.mxu0 %v1004
    %1054 = vmatpush.msra.mxu0 %v1002
    %1055 = vmatpush.msra.mxu0 %v1000
    %1056 = vmatpush.msra.mxu0 %v998
    %1057 = vmatpush.msra.mxu0 %v996
    %1058 = vmatpush.msra.mxu0 %v994
    %1059 = vmatpush.msra.mxu0 %v992
    %1060 = vmatpush.msra.mxu0 %v990
    %1061 = vmatmul.f32.gmra.mxu0 %v940
    %v1062 = vpop.f32.mrf.mxu0
    %v1063 = vadd.f32 %v1040, %v1062
    %1064 = vmatmul.f32.gmra.mxu0 %v942
    %v1065 = vpop.f32.mrf.mxu0
    %v1066 = vadd.f32 %v1043, %v1065
    %1067 = vdwg.mxu0
    %1068 = vmatpush.msra.mxu0 %v989
    %1069 = vmatpush.msra.mxu0 %v987
    %1070 = vmatpush.msra.mxu0 %v985
    %1071 = vmatpush.msra.mxu0 %v983
    %1072 = vmatpush.msra.mxu0 %v981
    %1073 = vmatpush.msra.mxu0 %v979
    %1074 = vmatpush.msra.mxu0 %v977
    %1075 = vmatpush.msra.mxu0 %v975
    %1076 = vmatpush.msra.mxu0 %v973
    %1077 = vmatpush.msra.mxu0 %v971
    %1078 = vmatpush.msra.mxu0 %v969
    %1079 = vmatpush.msra.mxu0 %v967
    %1080 = vmatpush.msra.mxu0 %v965
    %1081 = vmatpush.msra.mxu0 %v963
    %1082 = vmatpush.msra.mxu0 %v961
    %1083 = vmatpush.msra.mxu0 %v959
    %1084 = vmatmul.f32.gmra.mxu0 %v939
    %v1085 = vpop.f32.mrf.mxu0
    %v1086 = vadd.f32 0.0, %v1085
    %1087 = vmatmul.f32.gmra.mxu0 %v941
    %v1088 = vpop.f32.mrf.mxu0
    %v1089 = vadd.f32 0.0, %v1088
    %1090 = vdwg.mxu0
    %1091 = vmatpush.msra.mxu0 %v1021
    %1092 = vmatpush.msra.mxu0 %v1019
    %1093 = vmatpush.msra.mxu0 %v1017
    %1094 = vmatpush.msra.mxu0 %v1015
    %1095 = vmatpush.msra.mxu0 %v1013
    %1096 = vmatpush.msra.mxu0 %v1011
    %1097 = vmatpush.msra.mxu0 %v1009
    %1098 = vmatpush.msra.mxu0 %v1007
    %1099 = vmatpush.msra.mxu0 %v1005
    %1100 = vmatpush.msra.mxu0 %v1003
    %1101 = vmatpush.msra.mxu0 %v1001
    %1102 = vmatpush.msra.mxu0 %v999
    %1103 = vmatpush.msra.mxu0 %v997
    %1104 = vmatpush.msra.mxu0 %v995
    %1105 = vmatpush.msra.mxu0 %v993
    %1106 = vmatpush.msra.mxu0 %v991
    %1107 = vmatmul.f32.gmra.mxu0 %v940
    %v1108 = vpop.f32.mrf.mxu0
    %v1109 = vadd.f32 %v1086, %v1108
    %1110 = vmatmul.f32.gmra.mxu0 %v942
    %v1111 = vpop.f32.mrf.mxu0
    %v1112 = vadd.f32 %v1089, %v1111
    %1113 = vdwg.mxu0
    %v1114 = vld [vmem:[%s29] sm:$0xff]
    %v1115 = vld [vmem:[%s29 + $0x8] sm:$0xff]
    %v1117 = vsel %vm661, %v1114, 0
    %v1120 = vsel %vm661, %v1115, 0
    %1122 = vmatpush.msra.mxu0 0.0
    %1123 = vmatpush.msra.mxu0 0.0
    %1124 = vmatpush.msra.mxu0 0.0
    %1125 = vmatpush.msra.mxu0 0.0
    %1126 = vmatpush.msra.mxu0 0.0
    %1127 = vmatpush.msra.mxu0 0.0
    %1128 = vmatpush.msra.mxu0 0.0
    %1129 = vmatpush.msra.mxu0 0.0
    %1130 = vmatpush.msra.mxu0 0.0
    %1131 = vmatpush.msra.mxu0 0.0
    %1132 = vmatpush.msra.mxu0 0.0
    %1133 = vmatpush.msra.mxu0 0.0
    %1134 = vmatpush.msra.mxu0 0.0
    %1135 = vmatpush.msra.mxu0 0.0
    %1136 = vmatpush.msra.mxu0 %v1066
    %1137 = vmatpush.msra.mxu0 %v1063
    %1138 = vmatmul.f32.gmra.mxu0 %v1117
    %v1139 = vpop.f32.mrf.mxu0
    %v1140 = vadd.f32 0.0, %v1139
    %1141 = vmatmul.f32.gmra.mxu0 %v1120
    %v1142 = vpop.f32.mrf.mxu0
    %v1143 = vadd.f32 0.0, %v1142
    %1144 = vdwg.mxu0
    %1145 = vmatpush.msra.mxu0 0.0
    %1146 = vmatpush.msra.mxu0 0.0
    %1147 = vmatpush.msra.mxu0 0.0
    %1148 = vmatpush.msra.mxu0 0.0
    %1149 = vmatpush.msra.mxu0 0.0
    %1150 = vmatpush.msra.mxu0 0.0
    %1151 = vmatpush.msra.mxu0 0.0
    %1152 = vmatpush.msra.mxu0 0.0
    %1153 = vmatpush.msra.mxu0 0.0
    %1154 = vmatpush.msra.mxu0 0.0
    %1155 = vmatpush.msra.mxu0 0.0
    %1156 = vmatpush.msra.mxu0 0.0
    %1157 = vmatpush.msra.mxu0 0.0
    %1158 = vmatpush.msra.mxu0 0.0
    %1159 = vmatpush.msra.mxu0 %v1112
    %1160 = vmatpush.msra.mxu0 %v1109
    %1161 = vmatmul.f32.gmra.mxu0 %v1117
    %v1162 = vpop.f32.mrf.mxu0
    %v1163 = vadd.f32 0.0, %v1162
    %1164 = vmatmul.f32.gmra.mxu0 %v1120
    %v1165 = vpop.f32.mrf.mxu0
    %v1166 = vadd.f32 0.0, %v1165
    %1167 = vdwg.mxu0
    %v1169 = vsel %vm661, %v956, 0
    %v1172 = vsel %vm661, %v957, 0
    %1174 = vmatpush.msra.mxu0 0.0
    %1175 = vmatpush.msra.mxu0 0.0
    %1176 = vmatpush.msra.mxu0 0.0
    %1177 = vmatpush.msra.mxu0 0.0
    %1178 = vmatpush.msra.mxu0 0.0
    %1179 = vmatpush.msra.mxu0 0.0
    %1180 = vmatpush.msra.mxu0 0.0
    %1181 = vmatpush.msra.mxu0 0.0
    %1182 = vmatpush.msra.mxu0 0.0
    %1183 = vmatpush.msra.mxu0 0.0
    %1184 = vmatpush.msra.mxu0 0.0
    %1185 = vmatpush.msra.mxu0 0.0
    %1186 = vmatpush.msra.mxu0 0.0
    %1187 = vmatpush.msra.mxu0 0.0
    %1188 = vmatpush.msra.mxu0 %v941
    %1189 = vmatpush.msra.mxu0 %v939
    %1190 = vmatmul.f32.gmra.mxu0 %v1169
    %v1191 = vpop.f32.mrf.mxu0
    %v1192 = vadd.f32 %v1140, %v1191
    %1193 = vmatmul.f32.gmra.mxu0 %v1172
    %v1194 = vpop.f32.mrf.mxu0
    %v1195 = vadd.f32 %v1143, %v1194
    %1196 = vdwg.mxu0
    %1197 = vmatpush.msra.mxu0 0.0
    %1198 = vmatpush.msra.mxu0 0.0
    %1199 = vmatpush.msra.mxu0 0.0
    %1200 = vmatpush.msra.mxu0 0.0
    %1201 = vmatpush.msra.mxu0 0.0
    %1202 = vmatpush.msra.mxu0 0.0
    %1203 = vmatpush.msra.mxu0 0.0
    %1204 = vmatpush.msra.mxu0 0.0
    %1205 = vmatpush.msra.mxu0 0.0
    %1206 = vmatpush.msra.mxu0 0.0
    %1207 = vmatpush.msra.mxu0 0.0
    %1208 = vmatpush.msra.mxu0 0.0
    %1209 = vmatpush.msra.mxu0 0.0
    %1210 = vmatpush.msra.mxu0 0.0
    %1211 = vmatpush.msra.mxu0 %v942
    %1212 = vmatpush.msra.mxu0 %v940
    %1213 = vmatmul.f32.gmra.mxu0 %v1169
    %v1214 = vpop.f32.mrf.mxu0
    %v1215 = vadd.f32 %v1163, %v1214
    %1216 = vmatmul.f32.gmra.mxu0 %v1172
    %v1217 = vpop.f32.mrf.mxu0
    %v1218 = vadd.f32 %v1166, %v1217
    %1219 = vdwg.mxu0
    %1221 = vset.pattern.permute.xlu0 0
    %1222 = vperm.xlu0 %1221, %v943
    %v1223 = vpop.permute.xlu0 %1222
    %1226 = vset.pattern.permute.xlu0 0
    %1227 = vperm.xlu0 %1226, %v944
    %v1228 = vpop.permute.xlu0 %1227
    %v1230 = vadd.f32 %v1192, %v1223
    %v1231 = vadd.f32 %v1215, %v1223
    %v1232 = vadd.f32 %v1195, %v1228
    %v1233 = vadd.f32 %v1218, %v1228
    %v1234 = vmax.f32 %v1230, 0.0
    %v1235 = vmax.f32 %v1231, 0.0
    %v1236 = vmax.f32 %v1232, 0.0
    %v1237 = vmax.f32 %v1233, 0.0
    %v1238 = vadd.f32 %v1234, %v1235
    %1239 = vadd.xlane.f32.xlu0 %v1238
    %v1240 = vpop.xlane.xlu0 %1239
    %v1241 = vadd.f32 %v1236, %v1237
    %1242 = vadd.xlane.f32.xlu0 %v1241
    %v1243 = vpop.xlane.xlu0 %1242
    %v1244 = vmul.f32 %v1240, 0.00390625
    %v1245 = vmul.f32 %v1243, 0.00390625
    %v1246 = vsub.f32 %v1234, %v1244
    %v1247 = vsub.f32 %v1235, %v1244
    %v1248 = vsub.f32 %v1236, %v1245
    %v1249 = vsub.f32 %v1237, %v1245
    %v1250 = vmul.f32 %v1246, %v1246
    %v1251 = vmul.f32 %v1247, %v1247
    %v1252 = vmul.f32 %v1248, %v1248
    %v1253 = vmul.f32 %v1249, %v1249
    %v1254 = vadd.f32 %v1250, %v1251
    %1255 = vadd.xlane.f32.xlu0 %v1254
    %v1256 = vpop.xlane.xlu0 %1255
    %v1257 = vadd.f32 %v1252, %v1253
    %1258 = vadd.xlane.f32.xlu0 %v1257
    %v1259 = vpop.xlane.xlu0 %1258
    %v1260 = vmul.f32 %v1256, 0.00390625
    %v1261 = vmul.f32 %v1259, 0.00390625
    %v1262 = vadd.f32 %v1260, 1e-05
    %v1263 = vadd.f32 %v1261, 1e-05
    %v1264 = vrsqrt.pop %v1262
    %v1265 = vmul.f32 %v1264, %v1262
    %v1266 = vmul.f32 %v1265, %v1264
    %v1267 = vmul.f32 0.5, %v1266
    %v1268 = vsub.f32 1.5, %v1267
    %v1269 = vmul.f32 %v1264, %v1268
    %vm1270 = vweird.f32 %v1262
    %vm1271 = vweird.f32 %v1264
    %vm1272 = vmor %vm1270, %vm1271
    %v1273 = vsel %vm1272, %v1264, %v1269
    %v1274 = vrsqrt.pop %v1263
    %v1275 = vmul.f32 %v1274, %v1263
    %v1276 = vmul.f32 %v1275, %v1274
    %v1277 = vmul.f32 0.5, %v1276
    %v1278 = vsub.f32 1.5, %v1277
    %v1279 = vmul.f32 %v1274, %v1278
    %vm1280 = vweird.f32 %v1263
    %vm1281 = vweird.f32 %v1274
    %vm1282 = vmor %vm1280, %vm1281
    %v1283 = vsel %vm1282, %v1274, %v1279
    %v1284 = vmul.f32 %v1246, %v1273
    %v1285 = vmul.f32 %v1247, %v1273
    %v1286 = vmul.f32 %v1248, %v1283
    %v1287 = vmul.f32 %v1249, %v1283
    %1289 = vset.pattern.permute.xlu0 0
    %1290 = vperm.xlu0 %1289, %v945
    %v1291 = vpop.permute.xlu0 %1290
    %1294 = vset.pattern.permute.xlu0 0
    %1295 = vperm.xlu0 %1294, %v946
    %v1296 = vpop.permute.xlu0 %1295
    %v1298 = vmul.f32 %v1284, %v1291
    %v1299 = vmul.f32 %v1285, %v1291
    %v1300 = vmul.f32 %v1286, %v1296
    %v1301 = vmul.f32 %v1287, %v1296
    %1303 = vset.pattern.permute.xlu0 0
    %1304 = vperm.xlu0 %1303, %v947
    %v1305 = vpop.permute.xlu0 %1304
    %1308 = vset.pattern.permute.xlu0 0
    %1309 = vperm.xlu0 %1308, %v948
    %v1310 = vpop.permute.xlu0 %1309
    %v1312 = vadd.f32 %v1298, %v1305
    %v1313 = vadd.f32 %v1299, %v1305
    %v1314 = vadd.f32 %v1300, %v1310
    %v1315 = vadd.f32 %v1301, %v1310
    %s1316 = scalar_lea.vmem %s37, 16
    %v1317 = vld [vmem:[%s1316] sm:$0xff]
    %v1318 = vld [vmem:[%s1316 + $0x8] sm:$0xff]
    %1319 = vmatpush.msra.mxu0 %v988
    %1320 = vmatpush.msra.mxu0 %v986
    %1321 = vmatpush.msra.mxu0 %v984
    %1322 = vmatpush.msra.mxu0 %v982
    %1323 = vmatpush.msra.mxu0 %v980
    %1324 = vmatpush.msra.mxu0 %v978
    %1325 = vmatpush.msra.mxu0 %v976
    %1326 = vmatpush.msra.mxu0 %v974
    %1327 = vmatpush.msra.mxu0 %v972
    %1328 = vmatpush.msra.mxu0 %v970
    %1329 = vmatpush.msra.mxu0 %v968
    %1330 = vmatpush.msra.mxu0 %v966
    %1331 = vmatpush.msra.mxu0 %v964
    %1332 = vmatpush.msra.mxu0 %v962
    %1333 = vmatpush.msra.mxu0 %v960
    %1334 = vmatpush.msra.mxu0 %v958
    %1335 = vmatmul.f32.gmra.mxu0 %v1312
    %v1336 = vpop.f32.mrf.mxu0
    %v1337 = vadd.f32 0.0, %v1336
    %1338 = vmatmul.f32.gmra.mxu0 %v1314
    %v1339 = vpop.f32.mrf.mxu0
    %v1340 = vadd.f32 0.0, %v1339
    %1341 = vdwg.mxu0
    %1342 = vmatpush.msra.mxu0 %v1020
    %1343 = vmatpush.msra.mxu0 %v1018
    %1344 = vmatpush.msra.mxu0 %v1016
    %1345 = vmatpush.msra.mxu0 %v1014
    %1346 = vmatpush.msra.mxu0 %v1012
    %1347 = vmatpush.msra.mxu0 %v1010
    %1348 = vmatpush.msra.mxu0 %v1008
    %1349 = vmatpush.msra.mxu0 %v1006
    %1350 = vmatpush.msra.mxu0 %v1004
    %1351 = vmatpush.msra.mxu0 %v1002
    %1352 = vmatpush.msra.mxu0 %v1000
    %1353 = vmatpush.msra.mxu0 %v998
    %1354 = vmatpush.msra.mxu0 %v996
    %1355 = vmatpush.msra.mxu0 %v994
    %1356 = vmatpush.msra.mxu0 %v992
    %1357 = vmatpush.msra.mxu0 %v990
    %1358 = vmatmul.f32.gmra.mxu0 %v1313
    %v1359 = vpop.f32.mrf.mxu0
    %v1360 = vadd.f32 %v1337, %v1359
    %1361 = vmatmul.f32.gmra.mxu0 %v1315
    %v1362 = vpop.f32.mrf.mxu0
    %v1363 = vadd.f32 %v1340, %v1362
    %1364 = vdwg.mxu0
    %1365 = vmatpush.msra.mxu0 %v989
    %1366 = vmatpush.msra.mxu0 %v987
    %1367 = vmatpush.msra.mxu0 %v985
    %1368 = vmatpush.msra.mxu0 %v983
    %1369 = vmatpush.msra.mxu0 %v981
    %1370 = vmatpush.msra.mxu0 %v979
    %1371 = vmatpush.msra.mxu0 %v977
    %1372 = vmatpush.msra.mxu0 %v975
    %1373 = vmatpush.msra.mxu0 %v973
    %1374 = vmatpush.msra.mxu0 %v971
    %1375 = vmatpush.msra.mxu0 %v969
    %1376 = vmatpush.msra.mxu0 %v967
    %1377 = vmatpush.msra.mxu0 %v965
    %1378 = vmatpush.msra.mxu0 %v963
    %1379 = vmatpush.msra.mxu0 %v961
    %1380 = vmatpush.msra.mxu0 %v959
    %1381 = vmatmul.f32.gmra.mxu0 %v1312
    %v1382 = vpop.f32.mrf.mxu0
    %v1383 = vadd.f32 0.0, %v1382
    %1384 = vmatmul.f32.gmra.mxu0 %v1314
    %v1385 = vpop.f32.mrf.mxu0
    %v1386 = vadd.f32 0.0, %v1385
    %1387 = vdwg.mxu0
    %1388 = vmatpush.msra.mxu0 %v1021
    %1389 = vmatpush.msra.mxu0 %v1019
    %1390 = vmatpush.msra.mxu0 %v1017
    %1391 = vmatpush.msra.mxu0 %v1015
    %1392 = vmatpush.msra.mxu0 %v1013
    %1393 = vmatpush.msra.mxu0 %v1011
    %1394 = vmatpush.msra.mxu0 %v1009
    %1395 = vmatpush.msra.mxu0 %v1007
    %1396 = vmatpush.msra.mxu0 %v1005
    %1397 = vmatpush.msra.mxu0 %v1003
    %1398 = vmatpush.msra.mxu0 %v1001
    %1399 = vmatpush.msra.mxu0 %v999
    %1400 = vmatpush.msra.mxu0 %v997
    %1401 = vmatpush.msra.mxu0 %v995
    %1402 = vmatpush.msra.mxu0 %v993
    %1403 = vmatpush.msra.mxu0 %v991
    %1404 = vmatmul.f32.gmra.mxu0 %v1313
    %v1405 = vpop.f32.mrf.mxu0
    %v1406 = vadd.f32 %v1383, %v1405
    %1407 = vmatmul.f32.gmra.mxu0 %v1315
    %v1408 = vpop.f32.mrf.mxu0
    %v1409 = vadd.f32 %v1386, %v1408
    %1410 = vdwg.mxu0
    %v1411 = vld [vmem:[%s37] sm:$0xff]
    %v1412 = vld [vmem:[%s37 + $0x8] sm:$0xff]
    %v1414 = vsel %vm661, %v1411, 0
    %v1417 = vsel %vm661, %v1412, 0
    %1419 = vmatpush.msra.mxu0 0.0
    %1420 = vmatpush.msra.mxu0 0.0
    %1421 = vmatpush.msra.mxu0 0.0
    %1422 = vmatpush.msra.mxu0 0.0
    %1423 = vmatpush.msra.mxu0 0.0
    %1424 = vmatpush.msra.mxu0 0.0
    %1425 = vmatpush.msra.mxu0 0.0
    %1426 = vmatpush.msra.mxu0 0.0
    %1427 = vmatpush.msra.mxu0 0.0
    %1428 = vmatpush.msra.mxu0 0.0
    %1429 = vmatpush.msra.mxu0 0.0
    %1430 = vmatpush.msra.mxu0 0.0
    %1431 = vmatpush.msra.mxu0 0.0
    %1432 = vmatpush.msra.mxu0 0.0
    %1433 = vmatpush.msra.mxu0 %v1363
    %1434 = vmatpush.msra.mxu0 %v1360
    %1435 = vmatmul.f32.gmra.mxu0 %v1414
    %v1436 = vpop.f32.mrf.mxu0
    %v1437 = vadd.f32 0.0, %v1436
    %1438 = vmatmul.f32.gmra.mxu0 %v1417
    %v1439 = vpop.f32.mrf.mxu0
    %v1440 = vadd.f32 0.0, %v1439
    %1441 = vdwg.mxu0
    %1442 = vmatpush.msra.mxu0 0.0
    %1443 = vmatpush.msra.mxu0 0.0
    %1444 = vmatpush.msra.mxu0 0.0
    %1445 = vmatpush.msra.mxu0 0.0
    %1446 = vmatpush.msra.mxu0 0.0
    %1447 = vmatpush.msra.mxu0 0.0
    %1448 = vmatpush.msra.mxu0 0.0
    %1449 = vmatpush.msra.mxu0 0.0
    %1450 = vmatpush.msra.mxu0 0.0
    %1451 = vmatpush.msra.mxu0 0.0
    %1452 = vmatpush.msra.mxu0 0.0
    %1453 = vmatpush.msra.mxu0 0.0
    %1454 = vmatpush.msra.mxu0 0.0
    %1455 = vmatpush.msra.mxu0 0.0
    %1456 = vmatpush.msra.mxu0 %v1409
    %1457 = vmatpush.msra.mxu0 %v1406
    %1458 = vmatmul.f32.gmra.mxu0 %v1414
    %v1459 = vpop.f32.mrf.mxu0
    %v1460 = vadd.f32 0.0, %v1459
    %1461 = vmatmul.f32.gmra.mxu0 %v1417
    %v1462 = vpop.f32.mrf.mxu0
    %v1463 = vadd.f32 0.0, %v1462
    %1464 = vdwg.mxu0
    %v1466 = vsel %vm661, %v1317, 0
    %v1469 = vsel %vm661, %v1318, 0
    %1471 = vmatpush.msra.mxu0 0.0
    %1472 = vmatpush.msra.mxu0 0.0
    %1473 = vmatpush.msra.mxu0 0.0
    %1474 = vmatpush.msra.mxu0 0.0
    %1475 = vmatpush.msra.mxu0 0.0
    %1476 = vmatpush.msra.mxu0 0.0
    %1477 = vmatpush.msra.mxu0 0.0
    %1478 = vmatpush.msra.mxu0 0.0
    %1479 = vmatpush.msra.mxu0 0.0
    %1480 = vmatpush.msra.mxu0 0.0
    %1481 = vmatpush.msra.mxu0 0.0
    %1482 = vmatpush.msra.mxu0 0.0
    %1483 = vmatpush.msra.mxu0 0.0
    %1484 = vmatpush.msra.mxu0 0.0
    %1485 = vmatpush.msra.mxu0 %v1314
    %1486 = vmatpush.msra.mxu0 %v1312
    %1487 = vmatmul.f32.gmra.mxu0 %v1466
    %v1488 = vpop.f32.mrf.mxu0
    %v1489 = vadd.f32 %v1437, %v1488
    %1490 = vmatmul.f32.gmra.mxu0 %v1469
    %v1491 = vpop.f32.mrf.mxu0
    %v1492 = vadd.f32 %v1440, %v1491
    %1493 = vdwg.mxu0
    %1494 = vmatpush.msra.mxu0 0.0
    %1495 = vmatpush.msra.mxu0 0.0
    %1496 = vmatpush.msra.mxu0 0.0
    %1497 = vmatpush.msra.mxu0 0.0
    %1498 = vmatpush.msra.mxu0 0.0
    %1499 = vmatpush.msra.mxu0 0.0
    %1500 = vmatpush.msra.mxu0 0.0
    %1501 = vmatpush.msra.mxu0 0.0
    %1502 = vmatpush.msra.mxu0 0.0
    %1503 = vmatpush.msra.mxu0 0.0
    %1504 = vmatpush.msra.mxu0 0.0
    %1505 = vmatpush.msra.mxu0 0.0
    %1506 = vmatpush.msra.mxu0 0.0
    %1507 = vmatpush.msra.mxu0 0.0
    %1508 = vmatpush.msra.mxu0 %v1315
    %1509 = vmatpush.msra.mxu0 %v1313
    %1510 = vmatmul.f32.gmra.mxu0 %v1466
    %v1511 = vpop.f32.mrf.mxu0
    %v1512 = vadd.f32 %v1460, %v1511
    %1513 = vmatmul.f32.gmra.mxu0 %v1469
    %v1514 = vpop.f32.mrf.mxu0
    %v1515 = vadd.f32 %v1463, %v1514
    %1516 = vdwg.mxu0
    %1518 = vset.pattern.permute.xlu0 0
    %1519 = vperm.xlu0 %1518, %v949
    %v1520 = vpop.permute.xlu0 %1519
    %1523 = vset.pattern.permute.xlu0 0
    %1524 = vperm.xlu0 %1523, %v950
    %v1525 = vpop.permute.xlu0 %1524
    %v1527 = vadd.f32 %v1489, %v1520
    %v1528 = vadd.f32 %v1512, %v1520
    %v1529 = vadd.f32 %v1492, %v1525
    %v1530 = vadd.f32 %v1515, %v1525
    %v1531 = vmax.f32 %v1527, 0.0
    %v1532 = vmax.f32 %v1528, 0.0
    %v1533 = vmax.f32 %v1529, 0.0
    %v1534 = vmax.f32 %v1530, 0.0
    %v1535 = vadd.f32 %v1531, %v1532
    %1536 = vadd.xlane.f32.xlu0 %v1535
    %v1537 = vpop.xlane.xlu0 %1536
    %v1538 = vadd.f32 %v1533, %v1534
    %1539 = vadd.xlane.f32.xlu0 %v1538
    %v1540 = vpop.xlane.xlu0 %1539
    %v1541 = vmul.f32 %v1537, 0.00390625
    %v1542 = vmul.f32 %v1540, 0.00390625
    %v1543 = vsub.f32 %v1531, %v1541
    %v1544 = vsub.f32 %v1532, %v1541
    %v1545 = vsub.f32 %v1533, %v1542
    %v1546 = vsub.f32 %v1534, %v1542
    %v1547 = vmul.f32 %v1543, %v1543
    %v1548 = vmul.f32 %v1544, %v1544
    %v1549 = vmul.f32 %v1545, %v1545
    %v1550 = vmul.f32 %v1546, %v1546
    %v1551 = vadd.f32 %v1547, %v1548
    %1552 = vadd.xlane.f32.xlu0 %v1551
    %v1553 = vpop.xlane.xlu0 %1552
    %v1554 = vadd.f32 %v1549, %v1550
    %1555 = vadd.xlane.f32.xlu0 %v1554
    %v1556 = vpop.xlane.xlu0 %1555
    %v1557 = vmul.f32 %v1553, 0.00390625
    %v1558 = vmul.f32 %v1556, 0.00390625
    %v1559 = vadd.f32 %v1557, 1e-05
    %v1560 = vadd.f32 %v1558, 1e-05
    %v1561 = vrsqrt.pop %v1559
    %v1562 = vmul.f32 %v1561, %v1559
    %v1563 = vmul.f32 %v1562, %v1561
    %v1564 = vmul.f32 0.5, %v1563
    %v1565 = vsub.f32 1.5, %v1564
    %v1566 = vmul.f32 %v1561, %v1565
    %vm1567 = vweird.f32 %v1559
    %vm1568 = vweird.f32 %v1561
    %vm1569 = vmor %vm1567, %vm1568
    %v1570 = vsel %vm1569, %v1561, %v1566
    %v1571 = vrsqrt.pop %v1560
    %v1572 = vmul.f32 %v1571, %v1560
    %v1573 = vmul.f32 %v1572, %v1571
    %v1574 = vmul.f32 0.5, %v1573
    %v1575 = vsub.f32 1.5, %v1574
    %v1576 = vmul.f32 %v1571, %v1575
    %vm1577 = vweird.f32 %v1560
    %vm1578 = vweird.f32 %v1571
    %vm1579 = vmor %vm1577, %vm1578
    %v1580 = vsel %vm1579, %v1571, %v1576
    %v1581 = vmul.f32 %v1543, %v1570
    %v1582 = vmul.f32 %v1544, %v1570
    %v1583 = vmul.f32 %v1545, %v1580
    %v1584 = vmul.f32 %v1546, %v1580
    %1586 = vset.pattern.permute.xlu0 0
    %1587 = vperm.xlu0 %1586, %v951
    %v1588 = vpop.permute.xlu0 %1587
    %1591 = vset.pattern.permute.xlu0 0
    %1592 = vperm.xlu0 %1591, %v952
    %v1593 = vpop.permute.xlu0 %1592
    %v1595 = vmul.f32 %v1581, %v1588
    %v1596 = vmul.f32 %v1582, %v1588
    %v1597 = vmul.f32 %v1583, %v1593
    %v1598 = vmul.f32 %v1584, %v1593
    %1600 = vset.pattern.permute.xlu0 0
    %1601 = vperm.xlu0 %1600, %v953
    %v1602 = vpop.permute.xlu0 %1601
    %1605 = vset.pattern.permute.xlu0 0
    %1606 = vperm.xlu0 %1605, %v954
    %v1607 = vpop.permute.xlu0 %1606
    %v1609 = vadd.f32 %v1595, %v1602
    %v1610 = vadd.f32 %v1596, %v1602
    %v1611 = vadd.f32 %v1597, %v1607
    %v1612 = vadd.f32 %v1598, %v1607
    %v1613 = vadd.f32 %v1609, %v939
    %v1614 = vadd.f32 %v1610, %v940
    %v1615 = vadd.f32 %v1611, %v941
    %v1616 = vadd.f32 %v1612, %v942
    %v1617 = vmax.f32 %v1613, 0.0
    %v1618 = vmax.f32 %v1614, 0.0
    %v1619 = vmax.f32 %v1615, 0.0
    %v1620 = vmax.f32 %v1616, 0.0
    %v1621 = vld [vmem:[%s47] sm:$0xff]
    %v1622 = vld [vmem:[%s47 + $0x8] sm:$0xff]
    %v1623 = vld [vmem:[%s47 + $0x10] sm:$0xff]
    %v1624 = vld [vmem:[%s47 + $0x18] sm:$0xff]
    %v1625 = vld [vmem:[%s49] sm:$0xff]
    %v1626 = vld [vmem:[%s49 + $0x8] sm:$0xff]
    %v1627 = vld [vmem:[%s49 + $0x10] sm:$0xff]
    %v1628 = vld [vmem:[%s49 + $0x18] sm:$0xff]
    %v1629 = vld [vmem:[%s51] sm:$0xff]
    %v1630 = vld [vmem:[%s51 + $0x8] sm:$0xff]
    %v1631 = vld [vmem:[%s51 + $0x10] sm:$0xff]
    %v1632 = vld [vmem:[%s51 + $0x18] sm:$0xff]
    %v1633 = vld [vmem:[%s55] sm:$0xff]
    %v1634 = vld [vmem:[%s55 + $0x8] sm:$0xff]
    %v1635 = vld [vmem:[%s55 + $0x10] sm:$0xff]
    %v1636 = vld [vmem:[%s55 + $0x18] sm:$0xff]
    %v1637 = vld [vmem:[%s57] sm:$0xff]
    %v1638 = vld [vmem:[%s57 + $0x8] sm:$0xff]
    %v1639 = vld [vmem:[%s57 + $0x10] sm:$0xff]
    %v1640 = vld [vmem:[%s57 + $0x18] sm:$0xff]
    %v1641 = vld [vmem:[%s59] sm:$0xff]
    %v1642 = vld [vmem:[%s59 + $0x8] sm:$0xff]
    %v1643 = vld [vmem:[%s59 + $0x10] sm:$0xff]
    %v1644 = vld [vmem:[%s59 + $0x18] sm:$0xff]
    %s1645 = scalar_lea.vmem %s45, 32
    %v1646 = vld [vmem:[%s1645] sm:$0xff]
    %v1647 = vld [vmem:[%s1645 + $0x8] sm:$0xff]
    %v1648 = vld [vmem:[%s1645 + $0x10] sm:$0xff]
    %v1649 = vld [vmem:[%s1645 + $0x18] sm:$0xff]
    %v1650 = vld [vmem:[#allocation6] sm:$0xff]
    %v1651 = vld [vmem:[#allocation6 + $0x8] sm:$0xff]
    %v1652 = vld [vmem:[#allocation6 + $0x10] sm:$0xff]
    %v1653 = vld [vmem:[#allocation6 + $0x18] sm:$0xff]
    %v1654 = vld [vmem:[#allocation6 + $0x20] sm:$0xff]
    %v1655 = vld [vmem:[#allocation6 + $0x28] sm:$0xff]
    %v1656 = vld [vmem:[#allocation6 + $0x30] sm:$0xff]
    %v1657 = vld [vmem:[#allocation6 + $0x38] sm:$0xff]
    %v1658 = vld [vmem:[#allocation6 + $0x40] sm:$0xff]
    %v1659 = vld [vmem:[#allocation6 + $0x48] sm:$0xff]
    %v1660 = vld [vmem:[#allocation6 + $0x50] sm:$0xff]
    %v1661 = vld [vmem:[#allocation6 + $0x58] sm:$0xff]
    %v1662 = vld [vmem:[#allocation6 + $0x60] sm:$0xff]
    %v1663 = vld [vmem:[#allocation6 + $0x68] sm:$0xff]
    %v1664 = vld [vmem:[#allocation6 + $0x70] sm:$0xff]
    %v1665 = vld [vmem:[#allocation6 + $0x78] sm:$0xff]
    %v1666 = vld [vmem:[#allocation6 + $0x80] sm:$0xff]
    %v1667 = vld [vmem:[#allocation6 + $0x88] sm:$0xff]
    %v1668 = vld [vmem:[#allocation6 + $0x90] sm:$0xff]
    %v1669 = vld [vmem:[#allocation6 + $0x98] sm:$0xff]
    %v1670 = vld [vmem:[#allocation6 + $0xa0] sm:$0xff]
    %v1671 = vld [vmem:[#allocation6 + $0xa8] sm:$0xff]
    %v1672 = vld [vmem:[#allocation6 + $0xb0] sm:$0xff]
    %v1673 = vld [vmem:[#allocation6 + $0xb8] sm:$0xff]
    %v1674 = vld [vmem:[#allocation6 + $0xc0] sm:$0xff]
    %v1675 = vld [vmem:[#allocation6 + $0xc8] sm:$0xff]
    %v1676 = vld [vmem:[#allocation6 + $0xd0] sm:$0xff]
    %v1677 = vld [vmem:[#allocation6 + $0xd8] sm:$0xff]
    %v1678 = vld [vmem:[#allocation6 + $0xe0] sm:$0xff]
    %v1679 = vld [vmem:[#allocation6 + $0xe8] sm:$0xff]
    %v1680 = vld [vmem:[#allocation6 + $0xf0] sm:$0xff]
    %v1681 = vld [vmem:[#allocation6 + $0xf8] sm:$0xff]
    %v1682 = vld [vmem:[#allocation6 + $0x100] sm:$0xff]
    %v1683 = vld [vmem:[#allocation6 + $0x108] sm:$0xff]
    %v1684 = vld [vmem:[#allocation6 + $0x110] sm:$0xff]
    %v1685 = vld [vmem:[#allocation6 + $0x118] sm:$0xff]
    %v1686 = vld [vmem:[#allocation6 + $0x120] sm:$0xff]
    %v1687 = vld [vmem:[#allocation6 + $0x128] sm:$0xff]
    %v1688 = vld [vmem:[#allocation6 + $0x130] sm:$0xff]
    %v1689 = vld [vmem:[#allocation6 + $0x138] sm:$0xff]
    %v1690 = vld [vmem:[#allocation6 + $0x140] sm:$0xff]
    %v1691 = vld [vmem:[#allocation6 + $0x148] sm:$0xff]
    %v1692 = vld [vmem:[#allocation6 + $0x150] sm:$0xff]
    %v1693 = vld [vmem:[#allocation6 + $0x158] sm:$0xff]
    %v1694 = vld [vmem:[#allocation6 + $0x160] sm:$0xff]
    %v1695 = vld [vmem:[#allocation6 + $0x168] sm:$0xff]
    %v1696 = vld [vmem:[#allocation6 + $0x170] sm:$0xff]
    %v1697 = vld [vmem:[#allocation6 + $0x178] sm:$0xff]
    %v1698 = vld [vmem:[#allocation6 + $0x180] sm:$0xff]
    %v1699 = vld [vmem:[#allocation6 + $0x188] sm:$0xff]
    %v1700 = vld [vmem:[#allocation6 + $0x190] sm:$0xff]
    %v1701 = vld [vmem:[#allocation6 + $0x198] sm:$0xff]
    %v1702 = vld [vmem:[#allocation6 + $0x1a0] sm:$0xff]
    %v1703 = vld [vmem:[#allocation6 + $0x1a8] sm:$0xff]
    %v1704 = vld [vmem:[#allocation6 + $0x1b0] sm:$0xff]
    %v1705 = vld [vmem:[#allocation6 + $0x1b8] sm:$0xff]
    %v1706 = vld [vmem:[#allocation6 + $0x1c0] sm:$0xff]
    %v1707 = vld [vmem:[#allocation6 + $0x1c8] sm:$0xff]
    %v1708 = vld [vmem:[#allocation6 + $0x1d0] sm:$0xff]
    %v1709 = vld [vmem:[#allocation6 + $0x1d8] sm:$0xff]
    %v1710 = vld [vmem:[#allocation6 + $0x1e0] sm:$0xff]
    %v1711 = vld [vmem:[#allocation6 + $0x1e8] sm:$0xff]
    %v1712 = vld [vmem:[#allocation6 + $0x1f0] sm:$0xff]
    %v1713 = vld [vmem:[#allocation6 + $0x1f8] sm:$0xff]
    %1714 = vmatpush.msra.mxu0 %v1680
    %1715 = vmatpush.msra.mxu0 %v1678
    %1716 = vmatpush.msra.mxu0 %v1676
    %1717 = vmatpush.msra.mxu0 %v1674
    %1718 = vmatpush.msra.mxu0 %v1672
    %1719 = vmatpush.msra.mxu0 %v1670
    %1720 = vmatpush.msra.mxu0 %v1668
    %1721 = vmatpush.msra.mxu0 %v1666
    %1722 = vmatpush.msra.mxu0 %v1664
    %1723 = vmatpush.msra.mxu0 %v1662
    %1724 = vmatpush.msra.mxu0 %v1660
    %1725 = vmatpush.msra.mxu0 %v1658
    %1726 = vmatpush.msra.mxu0 %v1656
    %1727 = vmatpush.msra.mxu0 %v1654
    %1728 = vmatpush.msra.mxu0 %v1652
    %1729 = vmatpush.msra.mxu0 %v1650
    %1730 = vmatmul.f32.gmra.mxu0 %v1617
    %v1731 = vpop.f32.mrf.mxu0
    %v1732 = vadd.f32 0.0, %v1731
    %1733 = vmatmul.f32.gmra.mxu0 %v1619
    %v1734 = vpop.f32.mrf.mxu0
    %v1735 = vadd.f32 0.0, %v1734
    %1736 = vdwg.mxu0
    %1737 = vmatpush.msra.mxu0 %v1712
    %1738 = vmatpush.msra.mxu0 %v1710
    %1739 = vmatpush.msra.mxu0 %v1708
    %1740 = vmatpush.msra.mxu0 %v1706
    %1741 = vmatpush.msra.mxu0 %v1704
    %1742 = vmatpush.msra.mxu0 %v1702
    %1743 = vmatpush.msra.mxu0 %v1700
    %1744 = vmatpush.msra.mxu0 %v1698
    %1745 = vmatpush.msra.mxu0 %v1696
    %1746 = vmatpush.msra.mxu0 %v1694
    %1747 = vmatpush.msra.mxu0 %v1692
    %1748 = vmatpush.msra.mxu0 %v1690
    %1749 = vmatpush.msra.mxu0 %v1688
    %1750 = vmatpush.msra.mxu0 %v1686
    %1751 = vmatpush.msra.mxu0 %v1684
    %1752 = vmatpush.msra.mxu0 %v1682
    %1753 = vmatmul.f32.gmra.mxu0 %v1618
    %v1754 = vpop.f32.mrf.mxu0
    %v1755 = vadd.f32 %v1732, %v1754
    %1756 = vmatmul.f32.gmra.mxu0 %v1620
    %v1757 = vpop.f32.mrf.mxu0
    %v1758 = vadd.f32 %v1735, %v1757
    %1759 = vdwg.mxu0
    %1760 = vmatpush.msra.mxu0 %v1681
    %1761 = vmatpush.msra.mxu0 %v1679
    %1762 = vmatpush.msra.mxu0 %v1677
    %1763 = vmatpush.msra.mxu0 %v1675
    %1764 = vmatpush.msra.mxu0 %v1673
    %1765 = vmatpush.msra.mxu0 %v1671
    %1766 = vmatpush.msra.mxu0 %v1669
    %1767 = vmatpush.msra.mxu0 %v1667
    %1768 = vmatpush.msra.mxu0 %v1665
    %1769 = vmatpush.msra.mxu0 %v1663
    %1770 = vmatpush.msra.mxu0 %v1661
    %1771 = vmatpush.msra.mxu0 %v1659
    %1772 = vmatpush.msra.mxu0 %v1657
    %1773 = vmatpush.msra.mxu0 %v1655
    %1774 = vmatpush.msra.mxu0 %v1653
    %1775 = vmatpush.msra.mxu0 %v1651
    %1776 = vmatmul.f32.gmra.mxu0 %v1617
    %v1777 = vpop.f32.mrf.mxu0
    %v1778 = vadd.f32 0.0, %v1777
    %1779 = vmatmul.f32.gmra.mxu0 %v1619
    %v1780 = vpop.f32.mrf.mxu0
    %v1781 = vadd.f32 0.0, %v1780
    %1782 = vdwg.mxu0
    %1783 = vmatpush.msra.mxu0 %v1713
    %1784 = vmatpush.msra.mxu0 %v1711
    %1785 = vmatpush.msra.mxu0 %v1709
    %1786 = vmatpush.msra.mxu0 %v1707
    %1787 = vmatpush.msra.mxu0 %v1705
    %1788 = vmatpush.msra.mxu0 %v1703
    %1789 = vmatpush.msra.mxu0 %v1701
    %1790 = vmatpush.msra.mxu0 %v1699
    %1791 = vmatpush.msra.mxu0 %v1697
    %1792 = vmatpush.msra.mxu0 %v1695
    %1793 = vmatpush.msra.mxu0 %v1693
    %1794 = vmatpush.msra.mxu0 %v1691
    %1795 = vmatpush.msra.mxu0 %v1689
    %1796 = vmatpush.msra.mxu0 %v1687
    %1797 = vmatpush.msra.mxu0 %v1685
    %1798 = vmatpush.msra.mxu0 %v1683
    %1799 = vmatmul.f32.gmra.mxu0 %v1618
    %v1800 = vpop.f32.mrf.mxu0
    %v1801 = vadd.f32 %v1778, %v1800
    %1802 = vmatmul.f32.gmra.mxu0 %v1620
    %v1803 = vpop.f32.mrf.mxu0
    %v1804 = vadd.f32 %v1781, %v1803
    %1805 = vdwg.mxu0
    %v1806 = vld [vmem:[%s45] sm:$0xff]
    %v1807 = vld [vmem:[%s45 + $0x8] sm:$0xff]
    %v1808 = vld [vmem:[%s45 + $0x10] sm:$0xff]
    %v1809 = vld [vmem:[%s45 + $0x18] sm:$0xff]
    %v1811 = vsel %vm661, %v1806, 0
    %v1814 = vsel %vm661, %v1807, 0
    %v1817 = vsel %vm661, %v1808, 0
    %v1820 = vsel %vm661, %v1809, 0
    %1822 = vmatpush.msra.mxu0 0.0
    %1823 = vmatpush.msra.mxu0 0.0
    %1824 = vmatpush.msra.mxu0 0.0
    %1825 = vmatpush.msra.mxu0 0.0
    %1826 = vmatpush.msra.mxu0 0.0
    %1827 = vmatpush.msra.mxu0 0.0
    %1828 = vmatpush.msra.mxu0 0.0
    %1829 = vmatpush.msra.mxu0 0.0
    %1830 = vmatpush.msra.mxu0 0.0
    %1831 = vmatpush.msra.mxu0 0.0
    %1832 = vmatpush.msra.mxu0 0.0
    %1833 = vmatpush.msra.mxu0 0.0
    %1834 = vmatpush.msra.mxu0 0.0
    %1835 = vmatpush.msra.mxu0 0.0
    %1836 = vmatpush.msra.mxu0 %v1758
    %1837 = vmatpush.msra.mxu0 %v1755
    %1838 = vmatmul.f32.gmra.mxu0 %v1811
    %v1839 = vpop.f32.mrf.mxu0
    %v1840 = vadd.f32 0.0, %v1839
    %1841 = vmatmul.f32.gmra.mxu0 %v1814
    %v1842 = vpop.f32.mrf.mxu0
    %v1843 = vadd.f32 0.0, %v1842
    %1844 = vmatmul.f32.gmra.mxu0 %v1817
    %v1845 = vpop.f32.mrf.mxu0
    %v1846 = vadd.f32 0.0, %v1845
    %1847 = vmatmul.f32.gmra.mxu0 %v1820
    %v1848 = vpop.f32.mrf.mxu0
    %v1849 = vadd.f32 0.0, %v1848
    %1850 = vdwg.mxu0
    %1851 = vmatpush.msra.mxu0 0.0
    %1852 = vmatpush.msra.mxu0 0.0
    %1853 = vmatpush.msra.mxu0 0.0
    %1854 = vmatpush.msra.mxu0 0.0
    %1855 = vmatpush.msra.mxu0 0.0
    %1856 = vmatpush.msra.mxu0 0.0
    %1857 = vmatpush.msra.mxu0 0.0
    %1858 = vmatpush.msra.mxu0 0.0
    %1859 = vmatpush.msra.mxu0 0.0
    %1860 = vmatpush.msra.mxu0 0.0
    %1861 = vmatpush.msra.mxu0 0.0
    %1862 = vmatpush.msra.mxu0 0.0
    %1863 = vmatpush.msra.mxu0 0.0
    %1864 = vmatpush.msra.mxu0 0.0
    %1865 = vmatpush.msra.mxu0 %v1804
    %1866 = vmatpush.msra.mxu0 %v1801
    %1867 = vmatmul.f32.gmra.mxu0 %v1811
    %v1868 = vpop.f32.mrf.mxu0
    %v1869 = vadd.f32 0.0, %v1868
    %1870 = vmatmul.f32.gmra.mxu0 %v1814
    %v1871 = vpop.f32.mrf.mxu0
    %v1872 = vadd.f32 0.0, %v1871
    %1873 = vmatmul.f32.gmra.mxu0 %v1817
    %v1874 = vpop.f32.mrf.mxu0
    %v1875 = vadd.f32 0.0, %v1874
    %1876 = vmatmul.f32.gmra.mxu0 %v1820
    %v1877 = vpop.f32.mrf.mxu0
    %v1878 = vadd.f32 0.0, %v1877
    %1879 = vdwg.mxu0
    %v1881 = vsel %vm661, %v1646, 0
    %v1884 = vsel %vm661, %v1647, 0
    %v1887 = vsel %vm661, %v1648, 0
    %v1890 = vsel %vm661, %v1649, 0
    %1892 = vmatpush.msra.mxu0 0.0
    %1893 = vmatpush.msra.mxu0 0.0
    %1894 = vmatpush.msra.mxu0 0.0
    %1895 = vmatpush.msra.mxu0 0.0
    %1896 = vmatpush.msra.mxu0 0.0
    %1897 = vmatpush.msra.mxu0 0.0
    %1898 = vmatpush.msra.mxu0 0.0
    %1899 = vmatpush.msra.mxu0 0.0
    %1900 = vmatpush.msra.mxu0 0.0
    %1901 = vmatpush.msra.mxu0 0.0
    %1902 = vmatpush.msra.mxu0 0.0
    %1903 = vmatpush.msra.mxu0 0.0
    %1904 = vmatpush.msra.mxu0 0.0
    %1905 = vmatpush.msra.mxu0 0.0
    %1906 = vmatpush.msra.mxu0 %v1619
    %1907 = vmatpush.msra.mxu0 %v1617
    %1908 = vmatmul.f32.gmra.mxu0 %v1881
    %v1909 = vpop.f32.mrf.mxu0
    %v1910 = vadd.f32 %v1840, %v1909
    %1911 = vmatmul.f32.gmra.mxu0 %v1884
    %v1912 = vpop.f32.mrf.mxu0
    %v1913 = vadd.f32 %v1843, %v1912
    %1914 = vmatmul.f32.gmra.mxu0 %v1887
    %v1915 = vpop.f32.mrf.mxu0
    %v1916 = vadd.f32 %v1846, %v1915
    %1917 = vmatmul.f32.gmra.mxu0 %v1890
    %v1918 = vpop.f32.mrf.mxu0
    %v1919 = vadd.f32 %v1849, %v1918
    %1920 = vdwg.mxu0
    %1921 = vmatpush.msra.mxu0 0.0
    %1922 = vmatpush.msra.mxu0 0.0
    %1923 = vmatpush.msra.mxu0 0.0
    %1924 = vmatpush.msra.mxu0 0.0
    %1925 = vmatpush.msra.mxu0 0.0
    %1926 = vmatpush.msra.mxu0 0.0
    %1927 = vmatpush.msra.mxu0 0.0
    %1928 = vmatpush.msra.mxu0 0.0
    %1929 = vmatpush.msra.mxu0 0.0
    %1930 = vmatpush.msra.mxu0 0.0
    %1931 = vmatpush.msra.mxu0 0.0
    %1932 = vmatpush.msra.mxu0 0.0
    %1933 = vmatpush.msra.mxu0 0.0
    %1934 = vmatpush.msra.mxu0 0.0
    %1935 = vmatpush.msra.mxu0 %v1620
    %1936 = vmatpush.msra.mxu0 %v1618
    %1937 = vmatmul.f32.gmra.mxu0 %v1881
    %v1938 = vpop.f32.mrf.mxu0
    %v1939 = vadd.f32 %v1869, %v1938
    %1940 = vmatmul.f32.gmra.mxu0 %v1884
    %v1941 = vpop.f32.mrf.mxu0
    %v1942 = vadd.f32 %v1872, %v1941
    %1943 = vmatmul.f32.gmra.mxu0 %v1887
    %v1944 = vpop.f32.mrf.mxu0
    %v1945 = vadd.f32 %v1875, %v1944
    %1946 = vmatmul.f32.gmra.mxu0 %v1890
    %v1947 = vpop.f32.mrf.mxu0
    %v1948 = vadd.f32 %v1878, %v1947
    %1949 = vdwg.mxu0
    %1951 = vset.pattern.permute.xlu0 0
    %1952 = vperm.xlu0 %1951, %v1621
    %v1953 = vpop.permute.xlu0 %1952
    %1956 = vset.pattern.permute.xlu0 0
    %1957 = vperm.xlu0 %1956, %v1622
    %v1958 = vpop.permute.xlu0 %1957
    %1961 = vset.pattern.permute.xlu0 0
    %1962 = vperm.xlu0 %1961, %v1623
    %v1963 = vpop.permute.xlu0 %1962
    %1966 = vset.pattern.permute.xlu0 0
    %1967 = vperm.xlu0 %1966, %v1624
    %v1968 = vpop.permute.xlu0 %1967
    %v1970 = vadd.f32 %v1910, %v1953
    %v1971 = vadd.f32 %v1939, %v1953
    %v1972 = vadd.f32 %v1913, %v1958
    %v1973 = vadd.f32 %v1942, %v1958
    %v1974 = vadd.f32 %v1916, %v1963
    %v1975 = vadd.f32 %v1945, %v1963
    %v1976 = vadd.f32 %v1919, %v1968
    %v1977 = vadd.f32 %v1948, %v1968
    %v1978 = vmax.f32 %v1970, 0.0
    %v1979 = vmax.f32 %v1971, 0.0
    %v1980 = vmax.f32 %v1972, 0.0
    %v1981 = vmax.f32 %v1973, 0.0
    %v1982 = vmax.f32 %v1974, 0.0
    %v1983 = vmax.f32 %v1975, 0.0
    %v1984 = vmax.f32 %v1976, 0.0
    %v1985 = vmax.f32 %v1977, 0.0
    %v1986 = vadd.f32 %v1978, %v1979
    %1987 = vadd.xlane.f32.xlu0 %v1986
    %v1988 = vpop.xlane.xlu0 %1987
    %v1989 = vadd.f32 %v1980, %v1981
    %1990 = vadd.xlane.f32.xlu0 %v1989
    %v1991 = vpop.xlane.xlu0 %1990
    %v1992 = vadd.f32 %v1982, %v1983
    %1993 = vadd.xlane.f32.xlu0 %v1992
    %v1994 = vpop.xlane.xlu0 %1993
    %v1995 = vadd.f32 %v1984, %v1985
    %1996 = vadd.xlane.f32.xlu0 %v1995
    %v1997 = vpop.xlane.xlu0 %1996
    %v1998 = vmul.f32 %v1988, 0.00390625
    %v1999 = vmul.f32 %v1991, 0.00390625
    %v2000 = vmul.f32 %v1994, 0.00390625
    %v2001 = vmul.f32 %v1997, 0.00390625
    %v2002 = vsub.f32 %v1978, %v1998
    %v2003 = vsub.f32 %v1979, %v1998
    %v2004 = vsub.f32 %v1980, %v1999
    %v2005 = vsub.f32 %v1981, %v1999
    %v2006 = vsub.f32 %v1982, %v2000
    %v2007 = vsub.f32 %v1983, %v2000
    %v2008 = vsub.f32 %v1984, %v2001
    %v2009 = vsub.f32 %v1985, %v2001
    %v2010 = vmul.f32 %v2002, %v2002
    %v2011 = vmul.f32 %v2003, %v2003
    %v2012 = vmul.f32 %v2004, %v2004
    %v2013 = vmul.f32 %v2005, %v2005
    %v2014 = vmul.f32 %v2006, %v2006
    %v2015 = vmul.f32 %v2007, %v2007
    %v2016 = vmul.f32 %v2008, %v2008
    %v2017 = vmul.f32 %v2009, %v2009
    %v2018 = vadd.f32 %v2010, %v2011
    %2019 = vadd.xlane.f32.xlu0 %v2018
    %v2020 = vpop.xlane.xlu0 %2019
    %v2021 = vadd.f32 %v2012, %v2013
    %2022 = vadd.xlane.f32.xlu0 %v2021
    %v2023 = vpop.xlane.xlu0 %2022
    %v2024 = vadd.f32 %v2014, %v2015
    %2025 = vadd.xlane.f32.xlu0 %v2024
    %v2026 = vpop.xlane.xlu0 %2025
    %v2027 = vadd.f32 %v2016, %v2017
    %2028 = vadd.xlane.f32.xlu0 %v2027
    %v2029 = vpop.xlane.xlu0 %2028
    %v2030 = vmul.f32 %v2020, 0.00390625
    %v2031 = vmul.f32 %v2023, 0.00390625
    %v2032 = vmul.f32 %v2026, 0.00390625
    %v2033 = vmul.f32 %v2029, 0.00390625
    %v2034 = vadd.f32 %v2030, 1e-05
    %v2035 = vadd.f32 %v2031, 1e-05
    %v2036 = vadd.f32 %v2032, 1e-05
    %v2037 = vadd.f32 %v2033, 1e-05
    %v2038 = vrsqrt.pop %v2034
    %v2039 = vmul.f32 %v2038, %v2034
    %v2040 = vmul.f32 %v2039, %v2038
    %v2041 = vmul.f32 0.5, %v2040
    %v2042 = vsub.f32 1.5, %v2041
    %v2043 = vmul.f32 %v2038, %v2042
    %vm2044 = vweird.f32 %v2034
    %vm2045 = vweird.f32 %v2038
    %vm2046 = vmor %vm2044, %vm2045
    %v2047 = vsel %vm2046, %v2038, %v2043
    %v2048 = vrsqrt.pop %v2035
    %v2049 = vmul.f32 %v2048, %v2035
    %v2050 = vmul.f32 %v2049, %v2048
    %v2051 = vmul.f32 0.5, %v2050
    %v2052 = vsub.f32 1.5, %v2051
    %v2053 = vmul.f32 %v2048, %v2052
    %vm2054 = vweird.f32 %v2035
    %vm2055 = vweird.f32 %v2048
    %vm2056 = vmor %vm2054, %vm2055
    %v2057 = vsel %vm2056, %v2048, %v2053
    %v2058 = vrsqrt.pop %v2036
    %v2059 = vmul.f32 %v2058, %v2036
    %v2060 = vmul.f32 %v2059, %v2058
    %v2061 = vmul.f32 0.5, %v2060
    %v2062 = vsub.f32 1.5, %v2061
    %v2063 = vmul.f32 %v2058, %v2062
    %vm2064 = vweird.f32 %v2036
    %vm2065 = vweird.f32 %v2058
    %vm2066 = vmor %vm2064, %vm2065
    %v2067 = vsel %vm2066, %v2058, %v2063
    %v2068 = vrsqrt.pop %v2037
    %v2069 = vmul.f32 %v2068, %v2037
    %v2070 = vmul.f32 %v2069, %v2068
    %v2071 = vmul.f32 0.5, %v2070
    %v2072 = vsub.f32 1.5, %v2071
    %v2073 = vmul.f32 %v2068, %v2072
    %vm2074 = vweird.f32 %v2037
    %vm2075 = vweird.f32 %v2068
    %vm2076 = vmor %vm2074, %vm2075
    %v2077 = vsel %vm2076, %v2068, %v2073
    %v2078 = vmul.f32 %v2002, %v2047
    %v2079 = vmul.f32 %v2003, %v2047
    %v2080 = vmul.f32 %v2004, %v2057
    %v2081 = vmul.f32 %v2005, %v2057
    %v2082 = vmul.f32 %v2006, %v2067
    %v2083 = vmul.f32 %v2007, %v2067
    %v2084 = vmul.f32 %v2008, %v2077
    %v2085 = vmul.f32 %v2009, %v2077
    %2087 = vset.pattern.permute.xlu0 0
    %2088 = vperm.xlu0 %2087, %v1625
    %v2089 = vpop.permute.xlu0 %2088
    %2092 = vset.pattern.permute.xlu0 0
    %2093 = vperm.xlu0 %2092, %v1626
    %v2094 = vpop.permute.xlu0 %2093
    %2097 = vset.pattern.permute.xlu0 0
    %2098 = vperm.xlu0 %2097, %v1627
    %v2099 = vpop.permute.xlu0 %2098
    %2102 = vset.pattern.permute.xlu0 0
    %2103 = vperm.xlu0 %2102, %v1628
    %v2104 = vpop.permute.xlu0 %2103
    %v2106 = vmul.f32 %v2078, %v2089
    %v2107 = vmul.f32 %v2079, %v2089
    %v2108 = vmul.f32 %v2080, %v2094
    %v2109 = vmul.f32 %v2081, %v2094
    %v2110 = vmul.f32 %v2082, %v2099
    %v2111 = vmul.f32 %v2083, %v2099
    %v2112 = vmul.f32 %v2084, %v2104
    %v2113 = vmul.f32 %v2085, %v2104
    %2115 = vset.pattern.permute.xlu0 0
    %2116 = vperm.xlu0 %2115, %v1629
    %v2117 = vpop.permute.xlu0 %2116
    %2120 = vset.pattern.permute.xlu0 0
    %2121 = vperm.xlu0 %2120, %v1630
    %v2122 = vpop.permute.xlu0 %2121
    %2125 = vset.pattern.permute.xlu0 0
    %2126 = vperm.xlu0 %2125, %v1631
    %v2127 = vpop.permute.xlu0 %2126
    %2130 = vset.pattern.permute.xlu0 0
    %2131 = vperm.xlu0 %2130, %v1632
    %v2132 = vpop.permute.xlu0 %2131
    %v2134 = vadd.f32 %v2106, %v2117
    %v2135 = vadd.f32 %v2107, %v2117
    %v2136 = vadd.f32 %v2108, %v2122
    %v2137 = vadd.f32 %v2109, %v2122
    %v2138 = vadd.f32 %v2110, %v2127
    %v2139 = vadd.f32 %v2111, %v2127
    %v2140 = vadd.f32 %v2112, %v2132
    %v2141 = vadd.f32 %v2113, %v2132
    %s2142 = scalar_lea.vmem %s53, 32
    %v2143 = vld [vmem:[%s2142] sm:$0xff]
    %v2144 = vld [vmem:[%s2142 + $0x8] sm:$0xff]
    %v2145 = vld [vmem:[%s2142 + $0x10] sm:$0xff]
    %v2146 = vld [vmem:[%s2142 + $0x18] sm:$0xff]
    %2147 = vmatpush.msra.mxu0 %v1680
    %2148 = vmatpush.msra.mxu0 %v1678
    %2149 = vmatpush.msra.mxu0 %v1676
    %2150 = vmatpush.msra.mxu0 %v1674
    %2151 = vmatpush.msra.mxu0 %v1672
    %2152 = vmatpush.msra.mxu0 %v1670
    %2153 = vmatpush.msra.mxu0 %v1668
    %2154 = vmatpush.msra.mxu0 %v1666
    %2155 = vmatpush.msra.mxu0 %v1664
    %2156 = vmatpush.msra.mxu0 %v1662
    %2157 = vmatpush.msra.mxu0 %v1660
    %2158 = vmatpush.msra.mxu0 %v1658
    %2159 = vmatpush.msra.mxu0 %v1656
    %2160 = vmatpush.msra.mxu0 %v1654
    %2161 = vmatpush.msra.mxu0 %v1652
    %2162 = vmatpush.msra.mxu0 %v1650
    %2163 = vmatmul.f32.gmra.mxu0 %v2134
    %v2164 = vpop.f32.mrf.mxu0
    %v2165 = vadd.f32 0.0, %v2164
    %2166 = vmatmul.f32.gmra.mxu0 %v2136
    %v2167 = vpop.f32.mrf.mxu0
    %v2168 = vadd.f32 0.0, %v2167
    %2169 = vmatmul.f32.gmra.mxu0 %v2138
    %v2170 = vpop.f32.mrf.mxu0
    %v2171 = vadd.f32 0.0, %v2170
    %2172 = vmatmul.f32.gmra.mxu0 %v2140
    %v2173 = vpop.f32.mrf.mxu0
    %v2174 = vadd.f32 0.0, %v2173
    %2175 = vdwg.mxu0
    %2176 = vmatpush.msra.mxu0 %v1712
    %2177 = vmatpush.msra.mxu0 %v1710
    %2178 = vmatpush.msra.mxu0 %v1708
    %2179 = vmatpush.msra.mxu0 %v1706
    %2180 = vmatpush.msra.mxu0 %v1704
    %2181 = vmatpush.msra.mxu0 %v1702
    %2182 = vmatpush.msra.mxu0 %v1700
    %2183 = vmatpush.msra.mxu0 %v1698
    %2184 = vmatpush.msra.mxu0 %v1696
    %2185 = vmatpush.msra.mxu0 %v1694
    %2186 = vmatpush.msra.mxu0 %v1692
    %2187 = vmatpush.msra.mxu0 %v1690
    %2188 = vmatpush.msra.mxu0 %v1688
    %2189 = vmatpush.msra.mxu0 %v1686
    %2190 = vmatpush.msra.mxu0 %v1684
    %2191 = vmatpush.msra.mxu0 %v1682
    %2192 = vmatmul.f32.gmra.mxu0 %v2135
    %v2193 = vpop.f32.mrf.mxu0
    %v2194 = vadd.f32 %v2165, %v2193
    %2195 = vmatmul.f32.gmra.mxu0 %v2137
    %v2196 = vpop.f32.mrf.mxu0
    %v2197 = vadd.f32 %v2168, %v2196
    %2198 = vmatmul.f32.gmra.mxu0 %v2139
    %v2199 = vpop.f32.mrf.mxu0
    %v2200 = vadd.f32 %v2171, %v2199
    %2201 = vmatmul.f32.gmra.mxu0 %v2141
    %v2202 = vpop.f32.mrf.mxu0
    %v2203 = vadd.f32 %v2174, %v2202
    %2204 = vdwg.mxu0
    %2205 = vmatpush.msra.mxu0 %v1681
    %2206 = vmatpush.msra.mxu0 %v1679
    %2207 = vmatpush.msra.mxu0 %v1677
    %2208 = vmatpush.msra.mxu0 %v1675
    %2209 = vmatpush.msra.mxu0 %v1673
    %2210 = vmatpush.msra.mxu0 %v1671
    %2211 = vmatpush.msra.mxu0 %v1669
    %2212 = vmatpush.msra.mxu0 %v1667
    %2213 = vmatpush.msra.mxu0 %v1665
    %2214 = vmatpush.msra.mxu0 %v1663
    %2215 = vmatpush.msra.mxu0 %v1661
    %2216 = vmatpush.msra.mxu0 %v1659
    %2217 = vmatpush.msra.mxu0 %v1657
    %2218 = vmatpush.msra.mxu0 %v1655
    %2219 = vmatpush.msra.mxu0 %v1653
    %2220 = vmatpush.msra.mxu0 %v1651
    %2221 = vmatmul.f32.gmra.mxu0 %v2134
    %v2222 = vpop.f32.mrf.mxu0
    %v2223 = vadd.f32 0.0, %v2222
    %2224 = vmatmul.f32.gmra.mxu0 %v2136
    %v2225 = vpop.f32.mrf.mxu0
    %v2226 = vadd.f32 0.0, %v2225
    %2227 = vmatmul.f32.gmra.mxu0 %v2138
    %v2228 = vpop.f32.mrf.mxu0
    %v2229 = vadd.f32 0.0, %v2228
    %2230 = vmatmul.f32.gmra.mxu0 %v2140
    %v2231 = vpop.f32.mrf.mxu0
    %v2232 = vadd.f32 0.0, %v2231
    %2233 = vdwg.mxu0
    %2234 = vmatpush.msra.mxu0 %v1713
    %2235 = vmatpush.msra.mxu0 %v1711
    %2236 = vmatpush.msra.mxu0 %v1709
    %2237 = vmatpush.msra.mxu0 %v1707
    %2238 = vmatpush.msra.mxu0 %v1705
    %2239 = vmatpush.msra.mxu0 %v1703
    %2240 = vmatpush.msra.mxu0 %v1701
    %2241 = vmatpush.msra.mxu0 %v1699
    %2242 = vmatpush.msra.mxu0 %v1697
    %2243 = vmatpush.msra.mxu0 %v1695
    %2244 = vmatpush.msra.mxu0 %v1693
    %2245 = vmatpush.msra.mxu0 %v1691
    %2246 = vmatpush.msra.mxu0 %v1689
    %2247 = vmatpush.msra.mxu0 %v1687
    %2248 = vmatpush.msra.mxu0 %v1685
    %2249 = vmatpush.msra.mxu0 %v1683
    %2250 = vmatmul.f32.gmra.mxu0 %v2135
    %v2251 = vpop.f32.mrf.mxu0
    %v2252 = vadd.f32 %v2223, %v2251
    %2253 = vmatmul.f32.gmra.mxu0 %v2137
    %v2254 = vpop.f32.mrf.mxu0
    %v2255 = vadd.f32 %v2226, %v2254
    %2256 = vmatmul.f32.gmra.mxu0 %v2139
    %v2257 = vpop.f32.mrf.mxu0
    %v2258 = vadd.f32 %v2229, %v2257
    %2259 = vmatmul.f32.gmra.mxu0 %v2141
    %v2260 = vpop.f32.mrf.mxu0
    %v2261 = vadd.f32 %v2232, %v2260
    %2262 = vdwg.mxu0
    %v2263 = vld [vmem:[%s53] sm:$0xff]
    %v2264 = vld [vmem:[%s53 + $0x8] sm:$0xff]
    %v2265 = vld [vmem:[%s53 + $0x10] sm:$0xff]
    %v2266 = vld [vmem:[%s53 + $0x18] sm:$0xff]
    %vm2267 = vcmask 261120
    %v2269 = vsel %vm2267, %v2263, 0
    %v2272 = vsel %vm2267, %v2264, 0
    %v2275 = vsel %vm2267, %v2265, 0
    %v2278 = vsel %vm2267, %v2266, 0
    %2280 = vmatpush.msra.mxu0 0.0
    %2281 = vmatpush.msra.mxu0 0.0
    %2282 = vmatpush.msra.mxu0 0.0
    %2283 = vmatpush.msra.mxu0 0.0
    %2284 = vmatpush.msra.mxu0 0.0
    %2285 = vmatpush.msra.mxu0 0.0
    %2286 = vmatpush.msra.mxu0 0.0
    %2287 = vmatpush.msra.mxu0 0.0
    %2288 = vmatpush.msra.mxu0 0.0
    %2289 = vmatpush.msra.mxu0 0.0
    %2290 = vmatpush.msra.mxu0 0.0
    %2291 = vmatpush.msra.mxu0 0.0
    %2292 = vmatpush.msra.mxu0 %v2203
    %2293 = vmatpush.msra.mxu0 %v2200
    %2294 = vmatpush.msra.mxu0 %v2197
    %2295 = vmatpush.msra.mxu0 %v2194
    %2296 = vmatmul.f32.gmra.mxu0 %v2269
    %v2297 = vpop.f32.mrf.mxu0
    %v2298 = vadd.f32 0.0, %v2297
    %2299 = vmatmul.f32.gmra.mxu0 %v2272
    %v2300 = vpop.f32.mrf.mxu0
    %v2301 = vadd.f32 0.0, %v2300
    %2302 = vmatmul.f32.gmra.mxu0 %v2275
    %v2303 = vpop.f32.mrf.mxu0
    %v2304 = vadd.f32 0.0, %v2303
    %2305 = vmatmul.f32.gmra.mxu0 %v2278
    %v2306 = vpop.f32.mrf.mxu0
    %v2307 = vadd.f32 0.0, %v2306
    %2308 = vdwg.mxu0
    %2309 = vmatpush.msra.mxu0 0.0
    %2310 = vmatpush.msra.mxu0 0.0
    %2311 = vmatpush.msra.mxu0 0.0
    %2312 = vmatpush.msra.mxu0 0.0
    %2313 = vmatpush.msra.mxu0 0.0
    %2314 = vmatpush.msra.mxu0 0.0
    %2315 = vmatpush.msra.mxu0 0.0
    %2316 = vmatpush.msra.mxu0 0.0
    %2317 = vmatpush.msra.mxu0 0.0
    %2318 = vmatpush.msra.mxu0 0.0
    %2319 = vmatpush.msra.mxu0 0.0
    %2320 = vmatpush.msra.mxu0 0.0
    %2321 = vmatpush.msra.mxu0 %v2261
    %2322 = vmatpush.msra.mxu0 %v2258
    %2323 = vmatpush.msra.mxu0 %v2255
    %2324 = vmatpush.msra.mxu0 %v2252
    %2325 = vmatmul.f32.gmra.mxu0 %v2269
    %v2326 = vpop.f32.mrf.mxu0
    %v2327 = vadd.f32 0.0, %v2326
    %2328 = vmatmul.f32.gmra.mxu0 %v2272
    %v2329 = vpop.f32.mrf.mxu0
    %v2330 = vadd.f32 0.0, %v2329
    %2331 = vmatmul.f32.gmra.mxu0 %v2275
    %v2332 = vpop.f32.mrf.mxu0
    %v2333 = vadd.f32 0.0, %v2332
    %2334 = vmatmul.f32.gmra.mxu0 %v2278
    %v2335 = vpop.f32.mrf.mxu0
    %v2336 = vadd.f32 0.0, %v2335
    %2337 = vdwg.mxu0
    %v2339 = vsel %vm2267, %v2143, 0
    %v2342 = vsel %vm2267, %v2144, 0
    %v2345 = vsel %vm2267, %v2145, 0
    %v2348 = vsel %vm2267, %v2146, 0
    %2350 = vmatpush.msra.mxu0 0.0
    %2351 = vmatpush.msra.mxu0 0.0
    %2352 = vmatpush.msra.mxu0 0.0
    %2353 = vmatpush.msra.mxu0 0.0
    %2354 = vmatpush.msra.mxu0 0.0
    %2355 = vmatpush.msra.mxu0 0.0
    %2356 = vmatpush.msra.mxu0 0.0
    %2357 = vmatpush.msra.mxu0 0.0
    %2358 = vmatpush.msra.mxu0 0.0
    %2359 = vmatpush.msra.mxu0 0.0
    %2360 = vmatpush.msra.mxu0 0.0
    %2361 = vmatpush.msra.mxu0 0.0
    %2362 = vmatpush.msra.mxu0 %v2140
    %2363 = vmatpush.msra.mxu0 %v2138
    %2364 = vmatpush.msra.mxu0 %v2136
    %2365 = vmatpush.msra.mxu0 %v2134
    %2366 = vmatmul.f32.gmra.mxu0 %v2339
    %v2367 = vpop.f32.mrf.mxu0
    %v2368 = vadd.f32 %v2298, %v2367
    %2369 = vmatmul.f32.gmra.mxu0 %v2342
    %v2370 = vpop.f32.mrf.mxu0
    %v2371 = vadd.f32 %v2301, %v2370
    %2372 = vmatmul.f32.gmra.mxu0 %v2345
    %v2373 = vpop.f32.mrf.mxu0
    %v2374 = vadd.f32 %v2304, %v2373
    %2375 = vmatmul.f32.gmra.mxu0 %v2348
    %v2376 = vpop.f32.mrf.mxu0
    %v2377 = vadd.f32 %v2307, %v2376
    %2378 = vdwg.mxu0
    %2379 = vmatpush.msra.mxu0 0.0
    %2380 = vmatpush.msra.mxu0 0.0
    %2381 = vmatpush.msra.mxu0 0.0
    %2382 = vmatpush.msra.mxu0 0.0
    %2383 = vmatpush.msra.mxu0 0.0
    %2384 = vmatpush.msra.mxu0 0.0
    %2385 = vmatpush.msra.mxu0 0.0
    %2386 = vmatpush.msra.mxu0 0.0
    %2387 = vmatpush.msra.mxu0 0.0
    %2388 = vmatpush.msra.mxu0 0.0
    %2389 = vmatpush.msra.mxu0 0.0
    %2390 = vmatpush.msra.mxu0 0.0
    %2391 = vmatpush.msra.mxu0 %v2141
    %2392 = vmatpush.msra.mxu0 %v2139
    %2393 = vmatpush.msra.mxu0 %v2137
    %2394 = vmatpush.msra.mxu0 %v2135
    %2395 = vmatmul.f32.gmra.mxu0 %v2339
    %v2396 = vpop.f32.mrf.mxu0
    %v2397 = vadd.f32 %v2327, %v2396
    %2398 = vmatmul.f32.gmra.mxu0 %v2342
    %v2399 = vpop.f32.mrf.mxu0
    %v2400 = vadd.f32 %v2330, %v2399
    %2401 = vmatmul.f32.gmra.mxu0 %v2345
    %v2402 = vpop.f32.mrf.mxu0
    %v2403 = vadd.f32 %v2333, %v2402
    %2404 = vmatmul.f32.gmra.mxu0 %v2348
    %v2405 = vpop.f32.mrf.mxu0
    %v2406 = vadd.f32 %v2336, %v2405
    %2407 = vdwg.mxu0
    %2409 = vset.pattern.permute.xlu0 0
    %2410 = vperm.xlu0 %2409, %v1633
    %v2411 = vpop.permute.xlu0 %2410
    %2414 = vset.pattern.permute.xlu0 0
    %2415 = vperm.xlu0 %2414, %v1634
    %v2416 = vpop.permute.xlu0 %2415
    %2419 = vset.pattern.permute.xlu0 0
    %2420 = vperm.xlu0 %2419, %v1635
    %v2421 = vpop.permute.xlu0 %2420
    %2424 = vset.pattern.permute.xlu0 0
    %2425 = vperm.xlu0 %2424, %v1636
    %v2426 = vpop.permute.xlu0 %2425
    %v2428 = vadd.f32 %v2368, %v2411
    %v2429 = vadd.f32 %v2397, %v2411
    %v2430 = vadd.f32 %v2371, %v2416
    %v2431 = vadd.f32 %v2400, %v2416
    %v2432 = vadd.f32 %v2374, %v2421
    %v2433 = vadd.f32 %v2403, %v2421
    %v2434 = vadd.f32 %v2377, %v2426
    %v2435 = vadd.f32 %v2406, %v2426
    %v2436 = vmax.f32 %v2428, 0.0
    %v2437 = vmax.f32 %v2429, 0.0
    %v2438 = vmax.f32 %v2430, 0.0
    %v2439 = vmax.f32 %v2431, 0.0
    %v2440 = vmax.f32 %v2432, 0.0
    %v2441 = vmax.f32 %v2433, 0.0
    %v2442 = vmax.f32 %v2434, 0.0
    %v2443 = vmax.f32 %v2435, 0.0
    %v2444 = vadd.f32 %v2436, %v2437
    %2445 = vadd.xlane.f32.xlu0 %v2444
    %v2446 = vpop.xlane.xlu0 %2445
    %v2447 = vadd.f32 %v2438, %v2439
    %2448 = vadd.xlane.f32.xlu0 %v2447
    %v2449 = vpop.xlane.xlu0 %2448
    %v2450 = vadd.f32 %v2440, %v2441
    %2451 = vadd.xlane.f32.xlu0 %v2450
    %v2452 = vpop.xlane.xlu0 %2451
    %v2453 = vadd.f32 %v2442, %v2443
    %2454 = vadd.xlane.f32.xlu0 %v2453
    %v2455 = vpop.xlane.xlu0 %2454
    %v2456 = vmul.f32 %v2446, 0.00390625
    %v2457 = vmul.f32 %v2449, 0.00390625
    %v2458 = vmul.f32 %v2452, 0.00390625
    %v2459 = vmul.f32 %v2455, 0.00390625
    %v2460 = vsub.f32 %v2436, %v2456
    %v2461 = vsub.f32 %v2437, %v2456
    %v2462 = vsub.f32 %v2438, %v2457
    %v2463 = vsub.f32 %v2439, %v2457
    %v2464 = vsub.f32 %v2440, %v2458
    %v2465 = vsub.f32 %v2441, %v2458
    %v2466 = vsub.f32 %v2442, %v2459
    %v2467 = vsub.f32 %v2443, %v2459
    %v2468 = vmul.f32 %v2460, %v2460
    %v2469 = vmul.f32 %v2461, %v2461
    %v2470 = vmul.f32 %v2462, %v2462
    %v2471 = vmul.f32 %v2463, %v2463
    %v2472 = vmul.f32 %v2464, %v2464
    %v2473 = vmul.f32 %v2465, %v2465
    %v2474 = vmul.f32 %v2466, %v2466
    %v2475 = vmul.f32 %v2467, %v2467
    %v2476 = vadd.f32 %v2468, %v2469
    %2477 = vadd.xlane.f32.xlu0 %v2476
    %v2478 = vpop.xlane.xlu0 %2477
    %v2479 = vadd.f32 %v2470, %v2471
    %2480 = vadd.xlane.f32.xlu0 %v2479
    %v2481 = vpop.xlane.xlu0 %2480
    %v2482 = vadd.f32 %v2472, %v2473
    %2483 = vadd.xlane.f32.xlu0 %v2482
    %v2484 = vpop.xlane.xlu0 %2483
    %v2485 = vadd.f32 %v2474, %v2475
    %2486 = vadd.xlane.f32.xlu0 %v2485
    %v2487 = vpop.xlane.xlu0 %2486
    %v2488 = vmul.f32 %v2478, 0.00390625
    %v2489 = vmul.f32 %v2481, 0.00390625
    %v2490 = vmul.f32 %v2484, 0.00390625
    %v2491 = vmul.f32 %v2487, 0.00390625
    %v2492 = vadd.f32 %v2488, 1e-05
    %v2493 = vadd.f32 %v2489, 1e-05
    %v2494 = vadd.f32 %v2490, 1e-05
    %v2495 = vadd.f32 %v2491, 1e-05
    %v2496 = vrsqrt.pop %v2492
    %v2497 = vmul.f32 %v2496, %v2492
    %v2498 = vmul.f32 %v2497, %v2496
    %v2499 = vmul.f32 0.5, %v2498
    %v2500 = vsub.f32 1.5, %v2499
    %v2501 = vmul.f32 %v2496, %v2500
    %vm2502 = vweird.f32 %v2492
    %vm2503 = vweird.f32 %v2496
    %vm2504 = vmor %vm2502, %vm2503
    %v2505 = vsel %vm2504, %v2496, %v2501
    %v2506 = vrsqrt.pop %v2493
    %v2507 = vmul.f32 %v2506, %v2493
    %v2508 = vmul.f32 %v2507, %v2506
    %v2509 = vmul.f32 0.5, %v2508
    %v2510 = vsub.f32 1.5, %v2509
    %v2511 = vmul.f32 %v2506, %v2510
    %vm2512 = vweird.f32 %v2493
    %vm2513 = vweird.f32 %v2506
    %vm2514 = vmor %vm2512, %vm2513
    %v2515 = vsel %vm2514, %v2506, %v2511
    %v2516 = vrsqrt.pop %v2494
    %v2517 = vmul.f32 %v2516, %v2494
    %v2518 = vmul.f32 %v2517, %v2516
    %v2519 = vmul.f32 0.5, %v2518
    %v2520 = vsub.f32 1.5, %v2519
    %v2521 = vmul.f32 %v2516, %v2520
    %vm2522 = vweird.f32 %v2494
    %vm2523 = vweird.f32 %v2516
    %vm2524 = vmor %vm2522, %vm2523
    %v2525 = vsel %vm2524, %v2516, %v2521
    %v2526 = vrsqrt.pop %v2495
    %v2527 = vmul.f32 %v2526, %v2495
    %v2528 = vmul.f32 %v2527, %v2526
    %v2529 = vmul.f32 0.5, %v2528
    %v2530 = vsub.f32 1.5, %v2529
    %v2531 = vmul.f32 %v2526, %v2530
    %vm2532 = vweird.f32 %v2495
    %vm2533 = vweird.f32 %v2526
    %vm2534 = vmor %vm2532, %vm2533
    %v2535 = vsel %vm2534, %v2526, %v2531
    %v2536 = vmul.f32 %v2460, %v2505
    %v2537 = vmul.f32 %v2461, %v2505
    %v2538 = vmul.f32 %v2462, %v2515
    %v2539 = vmul.f32 %v2463, %v2515
    %v2540 = vmul.f32 %v2464, %v2525
    %v2541 = vmul.f32 %v2465, %v2525
    %v2542 = vmul.f32 %v2466, %v2535
    %v2543 = vmul.f32 %v2467, %v2535
    %2545 = vset.pattern.permute.xlu0 0
    %2546 = vperm.xlu0 %2545, %v1637
    %v2547 = vpop.permute.xlu0 %2546
    %2550 = vset.pattern.permute.xlu0 0
    %2551 = vperm.xlu0 %2550, %v1638
    %v2552 = vpop.permute.xlu0 %2551
    %2555 = vset.pattern.permute.xlu0 0
    %2556 = vperm.xlu0 %2555, %v1639
    %v2557 = vpop.permute.xlu0 %2556
    %2560 = vset.pattern.permute.xlu0 0
    %2561 = vperm.xlu0 %2560, %v1640
    %v2562 = vpop.permute.xlu0 %2561
    %v2564 = vmul.f32 %v2536, %v2547
    %v2565 = vmul.f32 %v2537, %v2547
    %v2566 = vmul.f32 %v2538, %v2552
    %v2567 = vmul.f32 %v2539, %v2552
    %v2568 = vmul.f32 %v2540, %v2557
    %v2569 = vmul.f32 %v2541, %v2557
    %v2570 = vmul.f32 %v2542, %v2562
    %v2571 = vmul.f32 %v2543, %v2562
    %2573 = vset.pattern.permute.xlu0 0
    %2574 = vperm.xlu0 %2573, %v1641
    %v2575 = vpop.permute.xlu0 %2574
    %2578 = vset.pattern.permute.xlu0 0
    %2579 = vperm.xlu0 %2578, %v1642
    %v2580 = vpop.permute.xlu0 %2579
    %2583 = vset.pattern.permute.xlu0 0
    %2584 = vperm.xlu0 %2583, %v1643
    %v2585 = vpop.permute.xlu0 %2584
    %2588 = vset.pattern.permute.xlu0 0
    %2589 = vperm.xlu0 %2588, %v1644
    %v2590 = vpop.permute.xlu0 %2589
    %v2592 = vadd.f32 %v2564, %v2575
    %v2593 = vadd.f32 %v2565, %v2575
    %v2594 = vadd.f32 %v2566, %v2580
    %v2595 = vadd.f32 %v2567, %v2580
    %v2596 = vadd.f32 %v2568, %v2585
    %v2597 = vadd.f32 %v2569, %v2585
    %v2598 = vadd.f32 %v2570, %v2590
    %v2599 = vadd.f32 %v2571, %v2590
    %v2600 = vld [vmem:[%s61] sm:$0xff]
    %v2601 = vld [vmem:[%s61 + $0x8] sm:$0xff]
    %v2602 = vld [vmem:[%s61 + $0x10] sm:$0xff]
    %v2603 = vld [vmem:[%s61 + $0x18] sm:$0xff]
    %v2604 = vld [vmem:[%s63] sm:$0xff]
    %v2605 = vld [vmem:[%s63 + $0x8] sm:$0xff]
    %v2606 = vld [vmem:[%s63 + $0x10] sm:$0xff]
    %v2607 = vld [vmem:[%s63 + $0x18] sm:$0xff]
    %2609 = vset.pattern.permute.xlu0 0
    %2610 = vperm.xlu0 %2609, %v2604
    %v2611 = vpop.permute.xlu0 %2610
    %2614 = vset.pattern.permute.xlu0 0
    %2615 = vperm.xlu0 %2614, %v2605
    %v2616 = vpop.permute.xlu0 %2615
    %2619 = vset.pattern.permute.xlu0 0
    %2620 = vperm.xlu0 %2619, %v2606
    %v2621 = vpop.permute.xlu0 %2620
    %2624 = vset.pattern.permute.xlu0 0
    %2625 = vperm.xlu0 %2624, %v2607
    %v2626 = vpop.permute.xlu0 %2625
    %v2629 = vsel %vm661, %v2600, 0
    %v2632 = vsel %vm661, %v2601, 0
    %v2635 = vsel %vm661, %v2602, 0
    %v2638 = vsel %vm661, %v2603, 0
    %2640 = vmatpush.msra.mxu0 0.0
    %2641 = vmatpush.msra.mxu0 0.0
    %2642 = vmatpush.msra.mxu0 0.0
    %2643 = vmatpush.msra.mxu0 0.0
    %2644 = vmatpush.msra.mxu0 0.0
    %2645 = vmatpush.msra.mxu0 0.0
    %2646 = vmatpush.msra.mxu0 0.0
    %2647 = vmatpush.msra.mxu0 0.0
    %2648 = vmatpush.msra.mxu0 0.0
    %2649 = vmatpush.msra.mxu0 0.0
    %2650 = vmatpush.msra.mxu0 0.0
    %2651 = vmatpush.msra.mxu0 0.0
    %2652 = vmatpush.msra.mxu0 0.0
    %2653 = vmatpush.msra.mxu0 0.0
    %2654 = vmatpush.msra.mxu0 %v1619
    %2655 = vmatpush.msra.mxu0 %v1617
    %2656 = vmatmul.f32.gmra.mxu0 %v2629
    %v2657 = vpop.f32.mrf.mxu0
    %v2658 = vadd.f32 %v2611, %v2657
    %2659 = vmatmul.f32.gmra.mxu0 %v2632
    %v2660 = vpop.f32.mrf.mxu0
    %v2661 = vadd.f32 %v2616, %v2660
    %2662 = vmatmul.f32.gmra.mxu0 %v2635
    %v2663 = vpop.f32.mrf.mxu0
    %v2664 = vadd.f32 %v2621, %v2663
    %2665 = vmatmul.f32.gmra.mxu0 %v2638
    %v2666 = vpop.f32.mrf.mxu0
    %v2667 = vadd.f32 %v2626, %v2666
    %2668 = vdwg.mxu0
    %2669 = vmatpush.msra.mxu0 0.0
    %2670 = vmatpush.msra.mxu0 0.0
    %2671 = vmatpush.msra.mxu0 0.0
    %2672 = vmatpush.msra.mxu0 0.0
    %2673 = vmatpush.msra.mxu0 0.0
    %2674 = vmatpush.msra.mxu0 0.0
    %2675 = vmatpush.msra.mxu0 0.0
    %2676 = vmatpush.msra.mxu0 0.0
    %2677 = vmatpush.msra.mxu0 0.0
    %2678 = vmatpush.msra.mxu0 0.0
    %2679 = vmatpush.msra.mxu0 0.0
    %2680 = vmatpush.msra.mxu0 0.0
    %2681 = vmatpush.msra.mxu0 0.0
    %2682 = vmatpush.msra.mxu0 0.0
    %2683 = vmatpush.msra.mxu0 %v1620
    %2684 = vmatpush.msra.mxu0 %v1618
    %2685 = vmatmul.f32.gmra.mxu0 %v2629
    %v2686 = vpop.f32.mrf.mxu0
    %v2687 = vadd.f32 %v2611, %v2686
    %2688 = vmatmul.f32.gmra.mxu0 %v2632
    %v2689 = vpop.f32.mrf.mxu0
    %v2690 = vadd.f32 %v2616, %v2689
    %2691 = vmatmul.f32.gmra.mxu0 %v2635
    %v2692 = vpop.f32.mrf.mxu0
    %v2693 = vadd.f32 %v2621, %v2692
    %2694 = vmatmul.f32.gmra.mxu0 %v2638
    %v2695 = vpop.f32.mrf.mxu0
    %v2696 = vadd.f32 %v2626, %v2695
    %2697 = vdwg.mxu0
    %v2698 = vadd.f32 %v2592, %v2658
    %v2699 = vadd.f32 %v2593, %v2687
    %v2700 = vadd.f32 %v2594, %v2661
    %v2701 = vadd.f32 %v2595, %v2690
    %v2702 = vadd.f32 %v2596, %v2664
    %v2703 = vadd.f32 %v2597, %v2693
    %v2704 = vadd.f32 %v2598, %v2667
    %v2705 = vadd.f32 %v2599, %v2696
    %v2706 = vmax.f32 %v2698, 0.0
    %v2707 = vmax.f32 %v2699, 0.0
    %v2708 = vmax.f32 %v2700, 0.0
    %v2709 = vmax.f32 %v2701, 0.0
    %v2710 = vmax.f32 %v2702, 0.0
    %v2711 = vmax.f32 %v2703, 0.0
    %v2712 = vmax.f32 %v2704, 0.0
    %v2713 = vmax.f32 %v2705, 0.0
    %2714 = vst [vmem:[%s65] sm:$0xff] %v2706
    %2715 = vst [vmem:[%s65 + $0x8] sm:$0xff] %v2707
    %2716 = vst [vmem:[%s65 + $0x10] sm:$0xff] %v2708
    %2717 = vst [vmem:[%s65 + $0x18] sm:$0xff] %v2709
    %2718 = vst [vmem:[%s65 + $0x20] sm:$0xff] %v2710
    %2719 = vst [vmem:[%s65 + $0x28] sm:$0xff] %v2711
    %2720 = vst [vmem:[%s65 + $0x30] sm:$0xff] %v2712
    %2721 = vst [vmem:[%s65 + $0x38] sm:$0xff] %v2713
    // Predicated region
    $region142: #{temporal_conv_net.1} parent=1 // pred_check
      _
    $region143: #{temporal_conv_net.1} parent=1 // pred_check_branch
      %2723 = sbr.rel (0) target = $region145
    $region144: #{temporal_conv_net.1} parent=1 // pred_region
      _
    $region145: #{temporal_conv_net.1} parent=1 // pred_fallthru
      _
    // Predicated region
    $region146: #{temporal_conv_net.1} parent=1 // pred_check
      _
    $region147: #{temporal_conv_net.1} parent=1 // pred_check_branch
      %2725 = sbr.rel (0) target = $region149
    $region148: #{temporal_conv_net.1} parent=1 // pred_region
      _
    $region149: #{temporal_conv_net.1} parent=1 // pred_fallthru
      _
    %2726 = vsyncpa [#allocation3], 1
    %2727 = vsyncpa [#allocation5], 1

</llo_original>
